<compile_context>
chip_gen: v7x
topology: tpu7x:2x2x1
jax: 0.10.0
libtpu: 0.0.40
codegen_flags: <defaults>
</compile_context>

<pallas_src>
import functools

import numpy as np
import jax
import jax.numpy as jnp
from jax.experimental import pallas as pl
from jax.experimental.pallas import tpu as pltpu

EPS = 1e-5
_INV_SQRT2 = 0.7071067811865476


# ---------------------------------------------------------------------------
# exact-GELU helper (erf via A&S 7.1.26; |error| < 1.5e-7)
# ---------------------------------------------------------------------------
def _erf(x):
    a1, a2, a3, a4, a5 = 0.254829592, -0.284496736, 1.421413741, -1.453152027, 1.061405429
    p = 0.3275911
    z = jnp.abs(x)
    t = 1.0 / (1.0 + p * z)
    poly = ((((a5 * t + a4) * t + a3) * t + a2) * t + a1) * t
    r = 1.0 - poly * jnp.exp(-z * z)
    return jnp.where(x < 0, -r, r)


def _gelu(x):
    return 0.5 * x * (1.0 + _erf(x * _INV_SQRT2))


# ---------------------------------------------------------------------------
# structural (data-independent) 0/1 matrices, built with numpy -> jit constants
# ---------------------------------------------------------------------------
def _structural(N, H_in, W_in, C, cols):
    H_up, W_up = 2 * H_in, 2 * W_in
    R = N * (H_up + 2)
    L = cols * C

    # P[kh]: scatter ConvTranspose row-planes (rows = (n, input row)) into padded slab rows
    P = np.zeros((2, R, N * H_in), np.float32)
    for kh in range(2):
        for n in range(N):
            for i in range(H_in):
                P[kh, n * (H_up + 2) + 1 + 2 * i + kh, n * H_in + i] = 1.0

    # rmask: which conv-output rows are real pixels (acc row k <-> slab row k+1)
    # E: re-embed conv output rows into a fresh zero-padded slab (kills garbage rows)
    rmask = np.zeros((1, R - 2), np.float32)
    E = np.zeros((R, R - 2), np.float32)
    for n in range(N):
        for q in range(H_up):
            r = n * (H_up + 2) + 1 + q
            rmask[0, r - 1] = 1.0
            E[r, r - 1] = 1.0

    # S: per-channel column-selection (sums lanes over interior columns only)
    S = np.zeros((cols, C, C), np.float32)
    S[1:W_up + 1] = np.eye(C, dtype=np.float32)
    S = S.reshape(L, C)
    return P, rmask, E, S


# ---------------------------------------------------------------------------
# weight-dependent structured matrices (tiny, built once per call from params)
# ---------------------------------------------------------------------------
def _upsample_mats(w_ct, cols, W_in, C_out):
    # w_ct: (Cin, Cout, 2, 2) PyTorch ConvTranspose2d layout, Cin = 2*C_half.
    # Returns two (2, W_in*C_half, cols*C_out) stacks: one for x's channels, one for skip's.
    Cin = w_ct.shape[0]
    C_half = Cin // 2
    L = cols * C_out

    def part(wp):
        mats = []
        for kh in range(2):
            m = jnp.zeros((W_in, C_half, cols, C_out), jnp.float32)
            for kw in range(2):
                sel = np.zeros((W_in, cols), np.float32)
                sel[np.arange(W_in), 1 + 2 * np.arange(W_in) + kw] = 1.0
                m = m + jnp.einsum("jp,co->jcpo", jnp.asarray(sel), wp[:, :, kh, kw])
            mats.append(m.reshape(W_in * C_half, L))
        return jnp.stack(mats, axis=0)

    return part(w_ct[:C_half]), part(w_ct[C_half:])


def _band_mats(w_conv, cols, W_up, C):
    # w_conv: (Cout, Cin, 3, 3) with Cin == Cout == C.
    # Returns (3, L, L) banded matrices (one per kernel row) mapping padded-slab lanes
    # (col, cin) -> (col, cout); padding columns map to zero.
    L = cols * C
    mats = []
    for di in range(3):
        m = jnp.zeros((cols, C, cols, C), jnp.float32)
        for dw in range(3):
            sel = np.zeros((cols, cols), np.float32)
            jout = np.arange(1, W_up + 1)
            sel[jout - 1 + dw, jout] = 1.0
            m = m + jnp.einsum("pq,oc->pcqo", jnp.asarray(sel), w_conv[:, :, di, dw])
        mats.append(m.reshape(L, L))
    return jnp.stack(mats, axis=0)


# ---------------------------------------------------------------------------
# the single fused kernel
# ---------------------------------------------------------------------------
def _unet_up_kernel(xs_ref, ss_ref, wupx_ref, wups_ref, bct_ref, p_ref,
                    wb_ref, cb_ref, g_ref, be_ref, s_ref, st_ref, rm_ref, e_ref,
                    o_ref, *, n_valid):
    f32 = jnp.float32
    R, L = o_ref.shape
    Rv = R - 2

    xs, ss = xs_ref[...], ss_ref[...]
    S, ST = s_ref[...], st_ref[...]
    rm, E = rm_ref[...], e_ref[...]

    # --- ConvTranspose2d(k=2, s=2) + channel-concat + 2x2 interleave + zero padding ---
    slab = None
    for kh in range(2):
        tmp = (jnp.dot(xs, wupx_ref[kh], preferred_element_type=f32)
               + jnp.dot(ss, wups_ref[kh], preferred_element_type=f32)
               + bct_ref[...])
        part = jnp.dot(p_ref[kh], tmp, preferred_element_type=f32)
        slab = part if slab is None else slab + part

    inv_cnt = 1.0 / float(n_valid)

    # --- 4 x (Conv3x3 pad=1 + BatchNorm2d(batch stats, biased var) + exact GELU) ---
    for blk in range(4):
        acc = jnp.dot(slab[0:Rv, :], wb_ref[blk, 0], preferred_element_type=f32)
        acc = acc + jnp.dot(slab[1:Rv + 1, :], wb_ref[blk, 1], preferred_element_type=f32)
        acc = acc + jnp.dot(slab[2:Rv + 2, :], wb_ref[blk, 2], preferred_element_type=f32)
        acc = acc + cb_ref[blk:blk + 1, :]

        # per-channel batch statistics over valid rows / interior columns only,
        # expressed as lane-dense matmul reductions.
        mean_c = jnp.dot(jnp.dot(rm, acc, preferred_element_type=f32), S,
                         preferred_element_type=f32) * inv_cnt              # (1, C)
        mean_l = jnp.dot(mean_c, ST, preferred_element_type=f32)            # (1, L)
        cen = acc - mean_l
        var_c = jnp.dot(jnp.dot(rm, cen * cen, preferred_element_type=f32), S,
                        preferred_element_type=f32) * inv_cnt               # (1, C)
        scale_c = g_ref[blk:blk + 1, :] * jax.lax.rsqrt(var_c + EPS)
        shift_c = be_ref[blk:blk + 1, :] - mean_c * scale_c
        y = (acc * jnp.dot(scale_c, ST, preferred_element_type=f32)
             + jnp.dot(shift_c, ST, preferred_element_type=f32))
        y = _gelu(y)

        # re-embed into a zero-padded slab (also zeroes inter-image garbage rows).
        slab = jnp.dot(E, y, preferred_element_type=f32)

    o_ref[...] = slab


# ---------------------------------------------------------------------------
# wrapper
# ---------------------------------------------------------------------------
def unet_up_forward(x, skip, params):
    # x, skip: NCHW with identical shapes (N, C_half, H, W); returns (N, C_out, 2H, 2W).
    N, C_half, H_in, W_in = x.shape
    C_out = params["ct_w"].shape[1]
    H_up, W_up = 2 * H_in, 2 * W_in

    # lane width = padded columns * channels, rounded up to a multiple of 128 if possible
    cols = W_up + 2
    if 128 % C_out == 0:
        cols = (((cols * C_out + 127) // 128) * 128) // C_out
    L = cols * C_out
    R = N * (H_up + 2)

    P, rmask, E, S = _structural(N, H_in, W_in, C_out, cols)
    ST = np.ascontiguousarray(S.T)

    wupx, wups = _upsample_mats(params["ct_w"], cols, W_in, C_out)
    bct = jnp.dot(params["ct_b"], jnp.asarray(ST))[None, :]

    wb, cb, gam, bet = [], [], [], []
    for blk in ("res1", "res2"):
        p = params[blk]
        for (w, b, g, be) in ((p["w1"], p["b1"], p["g1"], p["be1"]),
                              (p["w2"], p["b2"], p["g2"], p["be2"])):
            wb.append(_band_mats(w, cols, W_up, C_out))
            cb.append(jnp.dot(b, jnp.asarray(ST)))
            gam.append(g)
            bet.append(be)
    wb = jnp.stack(wb, 0)    # (4, 3, L, L)
    cb = jnp.stack(cb, 0)    # (4, L)
    gam = jnp.stack(gam, 0)  # (4, C)
    bet = jnp.stack(bet, 0)  # (4, C)

    # inputs as lane-dense 2-D slabs: rows = (n, input row), lanes = (input col, channel)
    xs = jnp.transpose(x, (0, 2, 3, 1)).reshape(N * H_in, W_in * C_half)
    ss = jnp.transpose(skip, (0, 2, 3, 1)).reshape(N * H_in, W_in * C_half)

    kernel = functools.partial(_unet_up_kernel, n_valid=N * H_up * W_up)
    vmem = pl.BlockSpec(memory_space=pltpu.MemorySpace.VMEM)
    slab_out = pl.pallas_call(
        kernel,
        out_shape=jax.ShapeDtypeStruct((R, L), jnp.float32),
        in_specs=[vmem] * 14,
        out_specs=vmem,
    )(xs, ss, wupx, wups, bct, jnp.asarray(P), wb, cb, gam, bet,
      jnp.asarray(S), jnp.asarray(ST), jnp.asarray(rmask), jnp.asarray(E))

    # unpack the padded slab back to NCHW (tiny epilogue on the final tensor only)
    out = slab_out.reshape(N, H_up + 2, cols, C_out)[:, 1:H_up + 1, 1:W_up + 1, :]
    return jnp.transpose(out, (0, 3, 1, 2))


# ---------------------------------------------------------------------------
# parameter init (PyTorch layouts) — fixed: exactly 18 keys are needed
# ---------------------------------------------------------------------------
def init_params(key, in_channels, out_channels):
    ks = iter(jax.random.split(key, 18))
    f32 = jnp.float32

    def nrm(shape, scale=0.1):
        return scale * jax.random.normal(next(ks), shape, dtype=f32)

    params = {
        "ct_w": nrm((in_channels, out_channels, 2, 2)),   # ConvTranspose2d: (Cin, Cout, 2, 2)
        "ct_b": nrm((out_channels,)),
    }
    for blk in ("res1", "res2"):
        params[blk] = {
            "w1": nrm((out_channels, out_channels, 3, 3)),  # Conv2d: (Cout, Cin, 3, 3)
            "b1": nrm((out_channels,)),
            "g1": 1.0 + nrm((out_channels,), 0.05),
            "be1": nrm((out_channels,), 0.05),
            "w2": nrm((out_channels, out_channels, 3, 3)),
            "b2": nrm((out_channels,)),
            "g2": 1.0 + nrm((out_channels,), 0.05),
            "be2": nrm((out_channels,), 0.05),
        }
    return params


if __name__ == "__main__":
    key = jax.random.PRNGKey(0)
    k_x, k_s, k_p = jax.random.split(key, 3)

    # UnetUp(in_channels=8, out_channels=4); x and skip each carry 4 channels.
    N, C_half, H, W = 2, 4, 8, 8
    in_channels, out_channels = 2 * C_half, 4

    x = jax.random.normal(k_x, (N, C_half, H, W), dtype=jnp.float32)     # NCHW
    skip = jax.random.normal(k_s, (N, C_half, H, W), dtype=jnp.float32)  # NCHW
    params = init_params(k_p, in_channels, out_channels)

    out = jax.jit(unet_up_forward)(x, skip, params)
    out = jax.block_until_ready(out)
    assert out.shape == (N, out_channels, 2 * H, 2 * W), out.shape
    assert out.dtype == jnp.float32
    assert bool(jnp.all(jnp.isfinite(out)))
    print("KERNEL_OK")
</pallas_src>

<mosaic_0001>
module attributes {stable_mosaic.version = 11 : i64} {
  func.func @_unet_up_kernel(%arg0: memref<16x32xf32, #tpu.memory_space<vmem>>, %arg1: memref<16x32xf32, #tpu.memory_space<vmem>>, %arg2: memref<2x32x128xf32, #tpu.memory_space<vmem>>, %arg3: memref<2x32x128xf32, #tpu.memory_space<vmem>>, %arg4: memref<1x128xf32, #tpu.memory_space<vmem>>, %arg5: memref<2x36x16xf32, #tpu.memory_space<vmem>>, %arg6: memref<4x3x128x128xf32, #tpu.memory_space<vmem>>, %arg7: memref<4x128xf32, #tpu.memory_space<vmem>>, %arg8: memref<4x4xf32, #tpu.memory_space<vmem>>, %arg9: memref<4x4xf32, #tpu.memory_space<vmem>>, %arg10: memref<128x4xf32, #tpu.memory_space<vmem>>, %arg11: memref<4x128xf32, #tpu.memory_space<vmem>>, %arg12: memref<1x34xf32, #tpu.memory_space<vmem>>, %arg13: memref<36x34xf32, #tpu.memory_space<vmem>>, %arg14: memref<36x128xf32, #tpu.memory_space<vmem>>) attributes {dimension_semantics = [], scalar_prefetch = 0 : i64, scratch_operands = 0 : i64, tpu.core_type = #tpu.core_type<tc>} {
    %c0 = arith.constant 0 : index
    %c0_0 = arith.constant 0 : index
    %0 = vector.load %arg0[%c0, %c0_0] : memref<16x32xf32, #tpu.memory_space<vmem>>, vector<16x32xf32>
    %c0_1 = arith.constant 0 : index
    %c0_2 = arith.constant 0 : index
    %1 = vector.load %arg1[%c0_1, %c0_2] : memref<16x32xf32, #tpu.memory_space<vmem>>, vector<16x32xf32>
    %c0_3 = arith.constant 0 : index
    %c0_4 = arith.constant 0 : index
    %2 = vector.load %arg10[%c0_3, %c0_4] : memref<128x4xf32, #tpu.memory_space<vmem>>, vector<128x4xf32>
    %c0_5 = arith.constant 0 : index
    %c0_6 = arith.constant 0 : index
    %3 = vector.load %arg11[%c0_5, %c0_6] : memref<4x128xf32, #tpu.memory_space<vmem>>, vector<4x128xf32>
    %c0_7 = arith.constant 0 : index
    %c0_8 = arith.constant 0 : index
    %4 = vector.load %arg12[%c0_7, %c0_8] : memref<1x34xf32, #tpu.memory_space<vmem>>, vector<1x34xf32>
    %c0_9 = arith.constant 0 : index
    %c0_10 = arith.constant 0 : index
    %5 = vector.load %arg13[%c0_9, %c0_10] : memref<36x34xf32, #tpu.memory_space<vmem>>, vector<36x34xf32>
    %c0_11 = arith.constant 0 : index
    %c0_12 = arith.constant 0 : index
    %c0_13 = arith.constant 0 : index
    %6 = vector.load %arg2[%c0_11, %c0_12, %c0_13] : memref<2x32x128xf32, #tpu.memory_space<vmem>>, vector<1x32x128xf32>
    %7 = vector.shape_cast %6 : vector<1x32x128xf32> to vector<32x128xf32>
    %cst = arith.constant dense<0.000000e+00> : vector<16x128xf32>
    %8 = tpu.matmul %0, %7, %cst {dimension_numbers = #tpu.dot_dimension_numbers<[1], [0], [0], [1], [0, 0, 1, 1], [], []>} : vector<16x32xf32>, vector<32x128xf32>, vector<16x128xf32> -> vector<16x128xf32>
    %c0_14 = arith.constant 0 : index
    %c0_15 = arith.constant 0 : index
    %c0_16 = arith.constant 0 : index
    %9 = vector.load %arg3[%c0_14, %c0_15, %c0_16] : memref<2x32x128xf32, #tpu.memory_space<vmem>>, vector<1x32x128xf32>
    %10 = vector.shape_cast %9 : vector<1x32x128xf32> to vector<32x128xf32>
    %cst_17 = arith.constant dense<0.000000e+00> : vector<16x128xf32>
    %11 = tpu.matmul %1, %10, %cst_17 {dimension_numbers = #tpu.dot_dimension_numbers<[1], [0], [0], [1], [0, 0, 1, 1], [], []>} : vector<16x32xf32>, vector<32x128xf32>, vector<16x128xf32> -> vector<16x128xf32>
    %12 = arith.addf %8, %11 : vector<16x128xf32>
    %c0_18 = arith.constant 0 : index
    %c0_19 = arith.constant 0 : index
    %13 = vector.load %arg4[%c0_18, %c0_19] : memref<1x128xf32, #tpu.memory_space<vmem>>, vector<1x128xf32>
    %14 = vector.broadcast %13 : vector<1x128xf32> to vector<16x128xf32>
    %15 = arith.addf %12, %14 : vector<16x128xf32>
    %c0_20 = arith.constant 0 : index
    %c0_21 = arith.constant 0 : index
    %c0_22 = arith.constant 0 : index
    %16 = vector.load %arg5[%c0_20, %c0_21, %c0_22] : memref<2x36x16xf32, #tpu.memory_space<vmem>>, vector<1x36x16xf32>
    %17 = vector.shape_cast %16 : vector<1x36x16xf32> to vector<36x16xf32>
    %cst_23 = arith.constant dense<0.000000e+00> : vector<36x128xf32>
    %18 = tpu.matmul %17, %15, %cst_23 {dimension_numbers = #tpu.dot_dimension_numbers<[1], [0], [0], [1], [0, 0, 1, 1], [], []>} : vector<36x16xf32>, vector<16x128xf32>, vector<36x128xf32> -> vector<36x128xf32>
    %c1 = arith.constant 1 : index
    %c0_24 = arith.constant 0 : index
    %c0_25 = arith.constant 0 : index
    %19 = vector.load %arg2[%c1, %c0_24, %c0_25] : memref<2x32x128xf32, #tpu.memory_space<vmem>>, vector<1x32x128xf32>
    %20 = vector.shape_cast %19 : vector<1x32x128xf32> to vector<32x128xf32>
    %cst_26 = arith.constant dense<0.000000e+00> : vector<16x128xf32>
    %21 = tpu.matmul %0, %20, %cst_26 {dimension_numbers = #tpu.dot_dimension_numbers<[1], [0], [0], [1], [0, 0, 1, 1], [], []>} : vector<16x32xf32>, vector<32x128xf32>, vector<16x128xf32> -> vector<16x128xf32>
    %c1_27 = arith.constant 1 : index
    %c0_28 = arith.constant 0 : index
    %c0_29 = arith.constant 0 : index
    %22 = vector.load %arg3[%c1_27, %c0_28, %c0_29] : memref<2x32x128xf32, #tpu.memory_space<vmem>>, vector<1x32x128xf32>
    %23 = vector.shape_cast %22 : vector<1x32x128xf32> to vector<32x128xf32>
    %cst_30 = arith.constant dense<0.000000e+00> : vector<16x128xf32>
    %24 = tpu.matmul %1, %23, %cst_30 {dimension_numbers = #tpu.dot_dimension_numbers<[1], [0], [0], [1], [0, 0, 1, 1], [], []>} : vector<16x32xf32>, vector<32x128xf32>, vector<16x128xf32> -> vector<16x128xf32>
    %25 = arith.addf %21, %24 : vector<16x128xf32>
    %c0_31 = arith.constant 0 : index
    %c0_32 = arith.constant 0 : index
    %26 = vector.load %arg4[%c0_31, %c0_32] : memref<1x128xf32, #tpu.memory_space<vmem>>, vector<1x128xf32>
    %27 = vector.broadcast %26 : vector<1x128xf32> to vector<16x128xf32>
    %28 = arith.addf %25, %27 : vector<16x128xf32>
    %c1_33 = arith.constant 1 : index
    %c0_34 = arith.constant 0 : index
    %c0_35 = arith.constant 0 : index
    %29 = vector.load %arg5[%c1_33, %c0_34, %c0_35] : memref<2x36x16xf32, #tpu.memory_space<vmem>>, vector<1x36x16xf32>
    %30 = vector.shape_cast %29 : vector<1x36x16xf32> to vector<36x16xf32>
    %cst_36 = arith.constant dense<0.000000e+00> : vector<36x128xf32>
    %31 = tpu.matmul %30, %28, %cst_36 {dimension_numbers = #tpu.dot_dimension_numbers<[1], [0], [0], [1], [0, 0, 1, 1], [], []>} : vector<36x16xf32>, vector<16x128xf32>, vector<36x128xf32> -> vector<36x128xf32>
    %32 = arith.addf %18, %31 : vector<36x128xf32>
    %33 = vector.extract_strided_slice %32 {offsets = [0, 0], sizes = [34, 128], strides = [1, 1]} : vector<36x128xf32> to vector<34x128xf32>
    %c0_37 = arith.constant 0 : index
    %c0_38 = arith.constant 0 : index
    %c0_39 = arith.constant 0 : index
    %c0_40 = arith.constant 0 : index
    %34 = vector.load %arg6[%c0_37, %c0_38, %c0_39, %c0_40] : memref<4x3x128x128xf32, #tpu.memory_space<vmem>>, vector<1x1x128x128xf32>
    %35 = vector.shape_cast %34 : vector<1x1x128x128xf32> to vector<128x128xf32>
    %cst_41 = arith.constant dense<0.000000e+00> : vector<34x128xf32>
    %36 = tpu.matmul %33, %35, %cst_41 {dimension_numbers = #tpu.dot_dimension_numbers<[1], [0], [0], [1], [0, 0, 1, 1], [], []>} : vector<34x128xf32>, vector<128x128xf32>, vector<34x128xf32> -> vector<34x128xf32>
    %37 = vector.extract_strided_slice %32 {offsets = [1, 0], sizes = [34, 128], strides = [1, 1]} : vector<36x128xf32> to vector<34x128xf32>
    %c0_42 = arith.constant 0 : index
    %c1_43 = arith.constant 1 : index
    %c0_44 = arith.constant 0 : index
    %c0_45 = arith.constant 0 : index
    %38 = vector.load %arg6[%c0_42, %c1_43, %c0_44, %c0_45] : memref<4x3x128x128xf32, #tpu.memory_space<vmem>>, vector<1x1x128x128xf32>
    %39 = vector.shape_cast %38 : vector<1x1x128x128xf32> to vector<128x128xf32>
    %cst_46 = arith.constant dense<0.000000e+00> : vector<34x128xf32>
    %40 = tpu.matmul %37, %39, %cst_46 {dimension_numbers = #tpu.dot_dimension_numbers<[1], [0], [0], [1], [0, 0, 1, 1], [], []>} : vector<34x128xf32>, vector<128x128xf32>, vector<34x128xf32> -> vector<34x128xf32>
    %41 = arith.addf %36, %40 : vector<34x128xf32>
    %42 = vector.extract_strided_slice %32 {offsets = [2, 0], sizes = [34, 128], strides = [1, 1]} : vector<36x128xf32> to vector<34x128xf32>
    %c0_47 = arith.constant 0 : index
    %c2 = arith.constant 2 : index
    %c0_48 = arith.constant 0 : index
    %c0_49 = arith.constant 0 : index
    %43 = vector.load %arg6[%c0_47, %c2, %c0_48, %c0_49] : memref<4x3x128x128xf32, #tpu.memory_space<vmem>>, vector<1x1x128x128xf32>
    %44 = vector.shape_cast %43 : vector<1x1x128x128xf32> to vector<128x128xf32>
    %cst_50 = arith.constant dense<0.000000e+00> : vector<34x128xf32>
    %45 = tpu.matmul %42, %44, %cst_50 {dimension_numbers = #tpu.dot_dimension_numbers<[1], [0], [0], [1], [0, 0, 1, 1], [], []>} : vector<34x128xf32>, vector<128x128xf32>, vector<34x128xf32> -> vector<34x128xf32>
    %46 = arith.addf %41, %45 : vector<34x128xf32>
    %c0_51 = arith.constant 0 : index
    %c0_52 = arith.constant 0 : index
    %47 = vector.load %arg7[%c0_51, %c0_52] : memref<4x128xf32, #tpu.memory_space<vmem>>, vector<1x128xf32>
    %48 = vector.broadcast %47 : vector<1x128xf32> to vector<34x128xf32>
    %49 = arith.addf %46, %48 : vector<34x128xf32>
    %cst_53 = arith.constant dense<0.000000e+00> : vector<1x128xf32>
    %50 = tpu.matmul %4, %49, %cst_53 {dimension_numbers = #tpu.dot_dimension_numbers<[1], [0], [0], [1], [0, 0, 1, 1], [], []>} : vector<1x34xf32>, vector<34x128xf32>, vector<1x128xf32> -> vector<1x128xf32>
    %cst_54 = arith.constant dense<0.000000e+00> : vector<1x4xf32>
    %51 = tpu.matmul %50, %2, %cst_54 {dimension_numbers = #tpu.dot_dimension_numbers<[1], [0], [0], [1], [0, 0, 1, 1], [], []>} : vector<1x128xf32>, vector<128x4xf32>, vector<1x4xf32> -> vector<1x4xf32>
    %cst_55 = arith.constant 0.001953125 : f32
    %52 = vector.broadcast %cst_55 : f32 to vector<1x4xf32>
    %53 = arith.mulf %51, %52 : vector<1x4xf32>
    %cst_56 = arith.constant dense<0.000000e+00> : vector<1x128xf32>
    %54 = tpu.matmul %53, %3, %cst_56 {dimension_numbers = #tpu.dot_dimension_numbers<[1], [0], [0], [1], [0, 0, 1, 1], [], []>} : vector<1x4xf32>, vector<4x128xf32>, vector<1x128xf32> -> vector<1x128xf32>
    %55 = vector.broadcast %54 : vector<1x128xf32> to vector<34x128xf32>
    %56 = arith.subf %49, %55 : vector<34x128xf32>
    %57 = arith.mulf %56, %56 : vector<34x128xf32>
    %cst_57 = arith.constant dense<0.000000e+00> : vector<1x128xf32>
    %58 = tpu.matmul %4, %57, %cst_57 {dimension_numbers = #tpu.dot_dimension_numbers<[1], [0], [0], [1], [0, 0, 1, 1], [], []>} : vector<1x34xf32>, vector<34x128xf32>, vector<1x128xf32> -> vector<1x128xf32>
    %cst_58 = arith.constant dense<0.000000e+00> : vector<1x4xf32>
    %59 = tpu.matmul %58, %2, %cst_58 {dimension_numbers = #tpu.dot_dimension_numbers<[1], [0], [0], [1], [0, 0, 1, 1], [], []>} : vector<1x128xf32>, vector<128x4xf32>, vector<1x4xf32> -> vector<1x4xf32>
    %cst_59 = arith.constant 0.001953125 : f32
    %60 = vector.broadcast %cst_59 : f32 to vector<1x4xf32>
    %61 = arith.mulf %59, %60 : vector<1x4xf32>
    %c0_60 = arith.constant 0 : index
    %c0_61 = arith.constant 0 : index
    %62 = vector.load %arg8[%c0_60, %c0_61] : memref<4x4xf32, #tpu.memory_space<vmem>>, vector<1x4xf32>
    %cst_62 = arith.constant 9.99999974E-6 : f32
    %63 = vector.broadcast %cst_62 : f32 to vector<1x4xf32>
    %64 = arith.addf %61, %63 : vector<1x4xf32>
    %65 = math.rsqrt %64 : vector<1x4xf32>
    %66 = arith.mulf %62, %65 : vector<1x4xf32>
    %c0_63 = arith.constant 0 : index
    %c0_64 = arith.constant 0 : index
    %67 = vector.load %arg9[%c0_63, %c0_64] : memref<4x4xf32, #tpu.memory_space<vmem>>, vector<1x4xf32>
    %68 = arith.mulf %53, %66 : vector<1x4xf32>
    %69 = arith.subf %67, %68 : vector<1x4xf32>
    %cst_65 = arith.constant dense<0.000000e+00> : vector<1x128xf32>
    %70 = tpu.matmul %66, %3, %cst_65 {dimension_numbers = #tpu.dot_dimension_numbers<[1], [0], [0], [1], [0, 0, 1, 1], [], []>} : vector<1x4xf32>, vector<4x128xf32>, vector<1x128xf32> -> vector<1x128xf32>
    %71 = vector.broadcast %70 : vector<1x128xf32> to vector<34x128xf32>
    %72 = arith.mulf %49, %71 : vector<34x128xf32>
    %cst_66 = arith.constant dense<0.000000e+00> : vector<1x128xf32>
    %73 = tpu.matmul %69, %3, %cst_66 {dimension_numbers = #tpu.dot_dimension_numbers<[1], [0], [0], [1], [0, 0, 1, 1], [], []>} : vector<1x4xf32>, vector<4x128xf32>, vector<1x128xf32> -> vector<1x128xf32>
    %74 = vector.broadcast %73 : vector<1x128xf32> to vector<34x128xf32>
    %75 = arith.addf %72, %74 : vector<34x128xf32>
    %cst_67 = arith.constant 5.000000e-01 : f32
    %76 = vector.broadcast %cst_67 : f32 to vector<34x128xf32>
    %77 = arith.mulf %76, %75 : vector<34x128xf32>
    %cst_68 = arith.constant 0.707106769 : f32
    %78 = vector.broadcast %cst_68 : f32 to vector<34x128xf32>
    %79 = arith.mulf %75, %78 : vector<34x128xf32>
    %80 = math.absf %79 : vector<34x128xf32>
    %cst_69 = arith.constant 0.327591091 : f32
    %81 = vector.broadcast %cst_69 : f32 to vector<34x128xf32>
    %82 = arith.mulf %81, %80 : vector<34x128xf32>
    %cst_70 = arith.constant 1.000000e+00 : f32
    %83 = vector.broadcast %cst_70 : f32 to vector<34x128xf32>
    %84 = arith.addf %83, %82 : vector<34x128xf32>
    %cst_71 = arith.constant 1.000000e+00 : f32
    %85 = vector.broadcast %cst_71 : f32 to vector<34x128xf32>
    %86 = arith.divf %85, %84 : vector<34x128xf32>
    %cst_72 = arith.constant 1.06140542 : f32
    %87 = vector.broadcast %cst_72 : f32 to vector<34x128xf32>
    %88 = arith.mulf %87, %86 : vector<34x128xf32>
    %cst_73 = arith.constant -1.45315206 : f32
    %89 = vector.broadcast %cst_73 : f32 to vector<34x128xf32>
    %90 = arith.addf %88, %89 : vector<34x128xf32>
    %91 = arith.mulf %90, %86 : vector<34x128xf32>
    %cst_74 = arith.constant 1.42141378 : f32
    %92 = vector.broadcast %cst_74 : f32 to vector<34x128xf32>
    %93 = arith.addf %91, %92 : vector<34x128xf32>
    %94 = arith.mulf %93, %86 : vector<34x128xf32>
    %cst_75 = arith.constant -0.284496725 : f32
    %95 = vector.broadcast %cst_75 : f32 to vector<34x128xf32>
    %96 = arith.addf %94, %95 : vector<34x128xf32>
    %97 = arith.mulf %96, %86 : vector<34x128xf32>
    %cst_76 = arith.constant 0.254829586 : f32
    %98 = vector.broadcast %cst_76 : f32 to vector<34x128xf32>
    %99 = arith.addf %97, %98 : vector<34x128xf32>
    %100 = arith.mulf %99, %86 : vector<34x128xf32>
    %cst_77 = arith.constant 0.000000e+00 : f32
    %101 = vector.broadcast %cst_77 : f32 to vector<34x128xf32>
    %102 = arith.subf %101, %80 : vector<34x128xf32>
    %103 = arith.mulf %102, %80 : vector<34x128xf32>
    %104 = math.exp %103 : vector<34x128xf32>
    %105 = arith.mulf %100, %104 : vector<34x128xf32>
    %cst_78 = arith.constant 1.000000e+00 : f32
    %106 = vector.broadcast %cst_78 : f32 to vector<34x128xf32>
    %107 = arith.subf %106, %105 : vector<34x128xf32>
    %cst_79 = arith.constant 0.000000e+00 : f32
    %108 = vector.broadcast %cst_79 : f32 to vector<34x128xf32>
    %109 = arith.cmpf olt, %79, %108 : vector<34x128xf32>
    %cst_80 = arith.constant 0.000000e+00 : f32
    %110 = vector.broadcast %cst_80 : f32 to vector<34x128xf32>
    %111 = arith.subf %110, %107 : vector<34x128xf32>
    %112 = arith.select %109, %111, %107 : vector<34x128xi1>, vector<34x128xf32>
    %cst_81 = arith.constant 1.000000e+00 : f32
    %113 = vector.broadcast %cst_81 : f32 to vector<34x128xf32>
    %114 = arith.addf %113, %112 : vector<34x128xf32>
    %115 = arith.mulf %77, %114 : vector<34x128xf32>
    %cst_82 = arith.constant dense<0.000000e+00> : vector<36x128xf32>
    %116 = tpu.matmul %5, %115, %cst_82 {dimension_numbers = #tpu.dot_dimension_numbers<[1], [0], [0], [1], [0, 0, 1, 1], [], []>} : vector<36x34xf32>, vector<34x128xf32>, vector<36x128xf32> -> vector<36x128xf32>
    %117 = vector.extract_strided_slice %116 {offsets = [0, 0], sizes = [34, 128], strides = [1, 1]} : vector<36x128xf32> to vector<34x128xf32>
    %c1_83 = arith.constant 1 : index
    %c0_84 = arith.constant 0 : index
    %c0_85 = arith.constant 0 : index
    %c0_86 = arith.constant 0 : index
    %118 = vector.load %arg6[%c1_83, %c0_84, %c0_85, %c0_86] : memref<4x3x128x128xf32, #tpu.memory_space<vmem>>, vector<1x1x128x128xf32>
    %119 = vector.shape_cast %118 : vector<1x1x128x128xf32> to vector<128x128xf32>
    %cst_87 = arith.constant dense<0.000000e+00> : vector<34x128xf32>
    %120 = tpu.matmul %117, %119, %cst_87 {dimension_numbers = #tpu.dot_dimension_numbers<[1], [0], [0], [1], [0, 0, 1, 1], [], []>} : vector<34x128xf32>, vector<128x128xf32>, vector<34x128xf32> -> vector<34x128xf32>
    %121 = vector.extract_strided_slice %116 {offsets = [1, 0], sizes = [34, 128], strides = [1, 1]} : vector<36x128xf32> to vector<34x128xf32>
    %c1_88 = arith.constant 1 : index
    %c1_89 = arith.constant 1 : index
    %c0_90 = arith.constant 0 : index
    %c0_91 = arith.constant 0 : index
    %122 = vector.load %arg6[%c1_88, %c1_89, %c0_90, %c0_91] : memref<4x3x128x128xf32, #tpu.memory_space<vmem>>, vector<1x1x128x128xf32>
    %123 = vector.shape_cast %122 : vector<1x1x128x128xf32> to vector<128x128xf32>
    %cst_92 = arith.constant dense<0.000000e+00> : vector<34x128xf32>
    %124 = tpu.matmul %121, %123, %cst_92 {dimension_numbers = #tpu.dot_dimension_numbers<[1], [0], [0], [1], [0, 0, 1, 1], [], []>} : vector<34x128xf32>, vector<128x128xf32>, vector<34x128xf32> -> vector<34x128xf32>
    %125 = arith.addf %120, %124 : vector<34x128xf32>
    %126 = vector.extract_strided_slice %116 {offsets = [2, 0], sizes = [34, 128], strides = [1, 1]} : vector<36x128xf32> to vector<34x128xf32>
    %c1_93 = arith.constant 1 : index
    %c2_94 = arith.constant 2 : index
    %c0_95 = arith.constant 0 : index
    %c0_96 = arith.constant 0 : index
    %127 = vector.load %arg6[%c1_93, %c2_94, %c0_95, %c0_96] : memref<4x3x128x128xf32, #tpu.memory_space<vmem>>, vector<1x1x128x128xf32>
    %128 = vector.shape_cast %127 : vector<1x1x128x128xf32> to vector<128x128xf32>
    %cst_97 = arith.constant dense<0.000000e+00> : vector<34x128xf32>
    %129 = tpu.matmul %126, %128, %cst_97 {dimension_numbers = #tpu.dot_dimension_numbers<[1], [0], [0], [1], [0, 0, 1, 1], [], []>} : vector<34x128xf32>, vector<128x128xf32>, vector<34x128xf32> -> vector<34x128xf32>
    %130 = arith.addf %125, %129 : vector<34x128xf32>
    %c1_98 = arith.constant 1 : index
    %c0_99 = arith.constant 0 : index
    %131 = vector.load %arg7[%c1_98, %c0_99] : memref<4x128xf32, #tpu.memory_space<vmem>>, vector<1x128xf32>
    %132 = vector.broadcast %131 : vector<1x128xf32> to vector<34x128xf32>
    %133 = arith.addf %130, %132 : vector<34x128xf32>
    %cst_100 = arith.constant dense<0.000000e+00> : vector<1x128xf32>
    %134 = tpu.matmul %4, %133, %cst_100 {dimension_numbers = #tpu.dot_dimension_numbers<[1], [0], [0], [1], [0, 0, 1, 1], [], []>} : vector<1x34xf32>, vector<34x128xf32>, vector<1x128xf32> -> vector<1x128xf32>
    %cst_101 = arith.constant dense<0.000000e+00> : vector<1x4xf32>
    %135 = tpu.matmul %134, %2, %cst_101 {dimension_numbers = #tpu.dot_dimension_numbers<[1], [0], [0], [1], [0, 0, 1, 1], [], []>} : vector<1x128xf32>, vector<128x4xf32>, vector<1x4xf32> -> vector<1x4xf32>
    %cst_102 = arith.constant 0.001953125 : f32
    %136 = vector.broadcast %cst_102 : f32 to vector<1x4xf32>
    %137 = arith.mulf %135, %136 : vector<1x4xf32>
    %cst_103 = arith.constant dense<0.000000e+00> : vector<1x128xf32>
    %138 = tpu.matmul %137, %3, %cst_103 {dimension_numbers = #tpu.dot_dimension_numbers<[1], [0], [0], [1], [0, 0, 1, 1], [], []>} : vector<1x4xf32>, vector<4x128xf32>, vector<1x128xf32> -> vector<1x128xf32>
    %139 = vector.broadcast %138 : vector<1x128xf32> to vector<34x128xf32>
    %140 = arith.subf %133, %139 : vector<34x128xf32>
    %141 = arith.mulf %140, %140 : vector<34x128xf32>
    %cst_104 = arith.constant dense<0.000000e+00> : vector<1x128xf32>
    %142 = tpu.matmul %4, %141, %cst_104 {dimension_numbers = #tpu.dot_dimension_numbers<[1], [0], [0], [1], [0, 0, 1, 1], [], []>} : vector<1x34xf32>, vector<34x128xf32>, vector<1x128xf32> -> vector<1x128xf32>
    %cst_105 = arith.constant dense<0.000000e+00> : vector<1x4xf32>
    %143 = tpu.matmul %142, %2, %cst_105 {dimension_numbers = #tpu.dot_dimension_numbers<[1], [0], [0], [1], [0, 0, 1, 1], [], []>} : vector<1x128xf32>, vector<128x4xf32>, vector<1x4xf32> -> vector<1x4xf32>
    %cst_106 = arith.constant 0.001953125 : f32
    %144 = vector.broadcast %cst_106 : f32 to vector<1x4xf32>
    %145 = arith.mulf %143, %144 : vector<1x4xf32>
    %c1_107 = arith.constant 1 : index
    %c0_108 = arith.constant 0 : index
    %146 = vector.load %arg8[%c1_107, %c0_108] : memref<4x4xf32, #tpu.memory_space<vmem>>, vector<1x4xf32>
    %cst_109 = arith.constant 9.99999974E-6 : f32
    %147 = vector.broadcast %cst_109 : f32 to vector<1x4xf32>
    %148 = arith.addf %145, %147 : vector<1x4xf32>
    %149 = math.rsqrt %148 : vector<1x4xf32>
    %150 = arith.mulf %146, %149 : vector<1x4xf32>
    %c1_110 = arith.constant 1 : index
    %c0_111 = arith.constant 0 : index
    %151 = vector.load %arg9[%c1_110, %c0_111] : memref<4x4xf32, #tpu.memory_space<vmem>>, vector<1x4xf32>
    %152 = arith.mulf %137, %150 : vector<1x4xf32>
    %153 = arith.subf %151, %152 : vector<1x4xf32>
    %cst_112 = arith.constant dense<0.000000e+00> : vector<1x128xf32>
    %154 = tpu.matmul %150, %3, %cst_112 {dimension_numbers = #tpu.dot_dimension_numbers<[1], [0], [0], [1], [0, 0, 1, 1], [], []>} : vector<1x4xf32>, vector<4x128xf32>, vector<1x128xf32> -> vector<1x128xf32>
    %155 = vector.broadcast %154 : vector<1x128xf32> to vector<34x128xf32>
    %156 = arith.mulf %133, %155 : vector<34x128xf32>
    %cst_113 = arith.constant dense<0.000000e+00> : vector<1x128xf32>
    %157 = tpu.matmul %153, %3, %cst_113 {dimension_numbers = #tpu.dot_dimension_numbers<[1], [0], [0], [1], [0, 0, 1, 1], [], []>} : vector<1x4xf32>, vector<4x128xf32>, vector<1x128xf32> -> vector<1x128xf32>
    %158 = vector.broadcast %157 : vector<1x128xf32> to vector<34x128xf32>
    %159 = arith.addf %156, %158 : vector<34x128xf32>
    %cst_114 = arith.constant 5.000000e-01 : f32
    %160 = vector.broadcast %cst_114 : f32 to vector<34x128xf32>
    %161 = arith.mulf %160, %159 : vector<34x128xf32>
    %cst_115 = arith.constant 0.707106769 : f32
    %162 = vector.broadcast %cst_115 : f32 to vector<34x128xf32>
    %163 = arith.mulf %159, %162 : vector<34x128xf32>
    %164 = math.absf %163 : vector<34x128xf32>
    %cst_116 = arith.constant 0.327591091 : f32
    %165 = vector.broadcast %cst_116 : f32 to vector<34x128xf32>
    %166 = arith.mulf %165, %164 : vector<34x128xf32>
    %cst_117 = arith.constant 1.000000e+00 : f32
    %167 = vector.broadcast %cst_117 : f32 to vector<34x128xf32>
    %168 = arith.addf %167, %166 : vector<34x128xf32>
    %cst_118 = arith.constant 1.000000e+00 : f32
    %169 = vector.broadcast %cst_118 : f32 to vector<34x128xf32>
    %170 = arith.divf %169, %168 : vector<34x128xf32>
    %cst_119 = arith.constant 1.06140542 : f32
    %171 = vector.broadcast %cst_119 : f32 to vector<34x128xf32>
    %172 = arith.mulf %171, %170 : vector<34x128xf32>
    %cst_120 = arith.constant -1.45315206 : f32
    %173 = vector.broadcast %cst_120 : f32 to vector<34x128xf32>
    %174 = arith.addf %172, %173 : vector<34x128xf32>
    %175 = arith.mulf %174, %170 : vector<34x128xf32>
    %cst_121 = arith.constant 1.42141378 : f32
    %176 = vector.broadcast %cst_121 : f32 to vector<34x128xf32>
    %177 = arith.addf %175, %176 : vector<34x128xf32>
    %178 = arith.mulf %177, %170 : vector<34x128xf32>
    %cst_122 = arith.constant -0.284496725 : f32
    %179 = vector.broadcast %cst_122 : f32 to vector<34x128xf32>
    %180 = arith.addf %178, %179 : vector<34x128xf32>
    %181 = arith.mulf %180, %170 : vector<34x128xf32>
    %cst_123 = arith.constant 0.254829586 : f32
    %182 = vector.broadcast %cst_123 : f32 to vector<34x128xf32>
    %183 = arith.addf %181, %182 : vector<34x128xf32>
    %184 = arith.mulf %183, %170 : vector<34x128xf32>
    %cst_124 = arith.constant 0.000000e+00 : f32
    %185 = vector.broadcast %cst_124 : f32 to vector<34x128xf32>
    %186 = arith.subf %185, %164 : vector<34x128xf32>
    %187 = arith.mulf %186, %164 : vector<34x128xf32>
    %188 = math.exp %187 : vector<34x128xf32>
    %189 = arith.mulf %184, %188 : vector<34x128xf32>
    %cst_125 = arith.constant 1.000000e+00 : f32
    %190 = vector.broadcast %cst_125 : f32 to vector<34x128xf32>
    %191 = arith.subf %190, %189 : vector<34x128xf32>
    %cst_126 = arith.constant 0.000000e+00 : f32
    %192 = vector.broadcast %cst_126 : f32 to vector<34x128xf32>
    %193 = arith.cmpf olt, %163, %192 : vector<34x128xf32>
    %cst_127 = arith.constant 0.000000e+00 : f32
    %194 = vector.broadcast %cst_127 : f32 to vector<34x128xf32>
    %195 = arith.subf %194, %191 : vector<34x128xf32>
    %196 = arith.select %193, %195, %191 : vector<34x128xi1>, vector<34x128xf32>
    %cst_128 = arith.constant 1.000000e+00 : f32
    %197 = vector.broadcast %cst_128 : f32 to vector<34x128xf32>
    %198 = arith.addf %197, %196 : vector<34x128xf32>
    %199 = arith.mulf %161, %198 : vector<34x128xf32>
    %cst_129 = arith.constant dense<0.000000e+00> : vector<36x128xf32>
    %200 = tpu.matmul %5, %199, %cst_129 {dimension_numbers = #tpu.dot_dimension_numbers<[1], [0], [0], [1], [0, 0, 1, 1], [], []>} : vector<36x34xf32>, vector<34x128xf32>, vector<36x128xf32> -> vector<36x128xf32>
    %201 = vector.extract_strided_slice %200 {offsets = [0, 0], sizes = [34, 128], strides = [1, 1]} : vector<36x128xf32> to vector<34x128xf32>
    %c2_130 = arith.constant 2 : index
    %c0_131 = arith.constant 0 : index
    %c0_132 = arith.constant 0 : index
    %c0_133 = arith.constant 0 : index
    %202 = vector.load %arg6[%c2_130, %c0_131, %c0_132, %c0_133] : memref<4x3x128x128xf32, #tpu.memory_space<vmem>>, vector<1x1x128x128xf32>
    %203 = vector.shape_cast %202 : vector<1x1x128x128xf32> to vector<128x128xf32>
    %cst_134 = arith.constant dense<0.000000e+00> : vector<34x128xf32>
    %204 = tpu.matmul %201, %203, %cst_134 {dimension_numbers = #tpu.dot_dimension_numbers<[1], [0], [0], [1], [0, 0, 1, 1], [], []>} : vector<34x128xf32>, vector<128x128xf32>, vector<34x128xf32> -> vector<34x128xf32>
    %205 = vector.extract_strided_slice %200 {offsets = [1, 0], sizes = [34, 128], strides = [1, 1]} : vector<36x128xf32> to vector<34x128xf32>
    %c2_135 = arith.constant 2 : index
    %c1_136 = arith.constant 1 : index
    %c0_137 = arith.constant 0 : index
    %c0_138 = arith.constant 0 : index
    %206 = vector.load %arg6[%c2_135, %c1_136, %c0_137, %c0_138] : memref<4x3x128x128xf32, #tpu.memory_space<vmem>>, vector<1x1x128x128xf32>
    %207 = vector.shape_cast %206 : vector<1x1x128x128xf32> to vector<128x128xf32>
    %cst_139 = arith.constant dense<0.000000e+00> : vector<34x128xf32>
    %208 = tpu.matmul %205, %207, %cst_139 {dimension_numbers = #tpu.dot_dimension_numbers<[1], [0], [0], [1], [0, 0, 1, 1], [], []>} : vector<34x128xf32>, vector<128x128xf32>, vector<34x128xf32> -> vector<34x128xf32>
    %209 = arith.addf %204, %208 : vector<34x128xf32>
    %210 = vector.extract_strided_slice %200 {offsets = [2, 0], sizes = [34, 128], strides = [1, 1]} : vector<36x128xf32> to vector<34x128xf32>
    %c2_140 = arith.constant 2 : index
    %c2_141 = arith.constant 2 : index
    %c0_142 = arith.constant 0 : index
    %c0_143 = arith.constant 0 : index
    %211 = vector.load %arg6[%c2_140, %c2_141, %c0_142, %c0_143] : memref<4x3x128x128xf32, #tpu.memory_space<vmem>>, vector<1x1x128x128xf32>
    %212 = vector.shape_cast %211 : vector<1x1x128x128xf32> to vector<128x128xf32>
    %cst_144 = arith.constant dense<0.000000e+00> : vector<34x128xf32>
    %213 = tpu.matmul %210, %212, %cst_144 {dimension_numbers = #tpu.dot_dimension_numbers<[1], [0], [0], [1], [0, 0, 1, 1], [], []>} : vector<34x128xf32>, vector<128x128xf32>, vector<34x128xf32> -> vector<34x128xf32>
    %214 = arith.addf %209, %213 : vector<34x128xf32>
    %c2_145 = arith.constant 2 : index
    %c0_146 = arith.constant 0 : index
    %215 = vector.load %arg7[%c2_145, %c0_146] : memref<4x128xf32, #tpu.memory_space<vmem>>, vector<1x128xf32>
    %216 = vector.broadcast %215 : vector<1x128xf32> to vector<34x128xf32>
    %217 = arith.addf %214, %216 : vector<34x128xf32>
    %cst_147 = arith.constant dense<0.000000e+00> : vector<1x128xf32>
    %218 = tpu.matmul %4, %217, %cst_147 {dimension_numbers = #tpu.dot_dimension_numbers<[1], [0], [0], [1], [0, 0, 1, 1], [], []>} : vector<1x34xf32>, vector<34x128xf32>, vector<1x128xf32> -> vector<1x128xf32>
    %cst_148 = arith.constant dense<0.000000e+00> : vector<1x4xf32>
    %219 = tpu.matmul %218, %2, %cst_148 {dimension_numbers = #tpu.dot_dimension_numbers<[1], [0], [0], [1], [0, 0, 1, 1], [], []>} : vector<1x128xf32>, vector<128x4xf32>, vector<1x4xf32> -> vector<1x4xf32>
    %cst_149 = arith.constant 0.001953125 : f32
    %220 = vector.broadcast %cst_149 : f32 to vector<1x4xf32>
    %221 = arith.mulf %219, %220 : vector<1x4xf32>
    %cst_150 = arith.constant dense<0.000000e+00> : vector<1x128xf32>
    %222 = tpu.matmul %221, %3, %cst_150 {dimension_numbers = #tpu.dot_dimension_numbers<[1], [0], [0], [1], [0, 0, 1, 1], [], []>} : vector<1x4xf32>, vector<4x128xf32>, vector<1x128xf32> -> vector<1x128xf32>
    %223 = vector.broadcast %222 : vector<1x128xf32> to vector<34x128xf32>
    %224 = arith.subf %217, %223 : vector<34x128xf32>
    %225 = arith.mulf %224, %224 : vector<34x128xf32>
    %cst_151 = arith.constant dense<0.000000e+00> : vector<1x128xf32>
    %226 = tpu.matmul %4, %225, %cst_151 {dimension_numbers = #tpu.dot_dimension_numbers<[1], [0], [0], [1], [0, 0, 1, 1], [], []>} : vector<1x34xf32>, vector<34x128xf32>, vector<1x128xf32> -> vector<1x128xf32>
    %cst_152 = arith.constant dense<0.000000e+00> : vector<1x4xf32>
    %227 = tpu.matmul %226, %2, %cst_152 {dimension_numbers = #tpu.dot_dimension_numbers<[1], [0], [0], [1], [0, 0, 1, 1], [], []>} : vector<1x128xf32>, vector<128x4xf32>, vector<1x4xf32> -> vector<1x4xf32>
    %cst_153 = arith.constant 0.001953125 : f32
    %228 = vector.broadcast %cst_153 : f32 to vector<1x4xf32>
    %229 = arith.mulf %227, %228 : vector<1x4xf32>
    %c2_154 = arith.constant 2 : index
    %c0_155 = arith.constant 0 : index
    %230 = vector.load %arg8[%c2_154, %c0_155] : memref<4x4xf32, #tpu.memory_space<vmem>>, vector<1x4xf32>
    %cst_156 = arith.constant 9.99999974E-6 : f32
    %231 = vector.broadcast %cst_156 : f32 to vector<1x4xf32>
    %232 = arith.addf %229, %231 : vector<1x4xf32>
    %233 = math.rsqrt %232 : vector<1x4xf32>
    %234 = arith.mulf %230, %233 : vector<1x4xf32>
    %c2_157 = arith.constant 2 : index
    %c0_158 = arith.constant 0 : index
    %235 = vector.load %arg9[%c2_157, %c0_158] : memref<4x4xf32, #tpu.memory_space<vmem>>, vector<1x4xf32>
    %236 = arith.mulf %221, %234 : vector<1x4xf32>
    %237 = arith.subf %235, %236 : vector<1x4xf32>
    %cst_159 = arith.constant dense<0.000000e+00> : vector<1x128xf32>
    %238 = tpu.matmul %234, %3, %cst_159 {dimension_numbers = #tpu.dot_dimension_numbers<[1], [0], [0], [1], [0, 0, 1, 1], [], []>} : vector<1x4xf32>, vector<4x128xf32>, vector<1x128xf32> -> vector<1x128xf32>
    %239 = vector.broadcast %238 : vector<1x128xf32> to vector<34x128xf32>
    %240 = arith.mulf %217, %239 : vector<34x128xf32>
    %cst_160 = arith.constant dense<0.000000e+00> : vector<1x128xf32>
    %241 = tpu.matmul %237, %3, %cst_160 {dimension_numbers = #tpu.dot_dimension_numbers<[1], [0], [0], [1], [0, 0, 1, 1], [], []>} : vector<1x4xf32>, vector<4x128xf32>, vector<1x128xf32> -> vector<1x128xf32>
    %242 = vector.broadcast %241 : vector<1x128xf32> to vector<34x128xf32>
    %243 = arith.addf %240, %242 : vector<34x128xf32>
    %cst_161 = arith.constant 5.000000e-01 : f32
    %244 = vector.broadcast %cst_161 : f32 to vector<34x128xf32>
    %245 = arith.mulf %244, %243 : vector<34x128xf32>
    %cst_162 = arith.constant 0.707106769 : f32
    %246 = vector.broadcast %cst_162 : f32 to vector<34x128xf32>
    %247 = arith.mulf %243, %246 : vector<34x128xf32>
    %248 = math.absf %247 : vector<34x128xf32>
    %cst_163 = arith.constant 0.327591091 : f32
    %249 = vector.broadcast %cst_163 : f32 to vector<34x128xf32>
    %250 = arith.mulf %249, %248 : vector<34x128xf32>
    %cst_164 = arith.constant 1.000000e+00 : f32
    %251 = vector.broadcast %cst_164 : f32 to vector<34x128xf32>
    %252 = arith.addf %251, %250 : vector<34x128xf32>
    %cst_165 = arith.constant 1.000000e+00 : f32
    %253 = vector.broadcast %cst_165 : f32 to vector<34x128xf32>
    %254 = arith.divf %253, %252 : vector<34x128xf32>
    %cst_166 = arith.constant 1.06140542 : f32
    %255 = vector.broadcast %cst_166 : f32 to vector<34x128xf32>
    %256 = arith.mulf %255, %254 : vector<34x128xf32>
    %cst_167 = arith.constant -1.45315206 : f32
    %257 = vector.broadcast %cst_167 : f32 to vector<34x128xf32>
    %258 = arith.addf %256, %257 : vector<34x128xf32>
    %259 = arith.mulf %258, %254 : vector<34x128xf32>
    %cst_168 = arith.constant 1.42141378 : f32
    %260 = vector.broadcast %cst_168 : f32 to vector<34x128xf32>
    %261 = arith.addf %259, %260 : vector<34x128xf32>
    %262 = arith.mulf %261, %254 : vector<34x128xf32>
    %cst_169 = arith.constant -0.284496725 : f32
    %263 = vector.broadcast %cst_169 : f32 to vector<34x128xf32>
    %264 = arith.addf %262, %263 : vector<34x128xf32>
    %265 = arith.mulf %264, %254 : vector<34x128xf32>
    %cst_170 = arith.constant 0.254829586 : f32
    %266 = vector.broadcast %cst_170 : f32 to vector<34x128xf32>
    %267 = arith.addf %265, %266 : vector<34x128xf32>
    %268 = arith.mulf %267, %254 : vector<34x128xf32>
    %cst_171 = arith.constant 0.000000e+00 : f32
    %269 = vector.broadcast %cst_171 : f32 to vector<34x128xf32>
    %270 = arith.subf %269, %248 : vector<34x128xf32>
    %271 = arith.mulf %270, %248 : vector<34x128xf32>
    %272 = math.exp %271 : vector<34x128xf32>
    %273 = arith.mulf %268, %272 : vector<34x128xf32>
    %cst_172 = arith.constant 1.000000e+00 : f32
    %274 = vector.broadcast %cst_172 : f32 to vector<34x128xf32>
    %275 = arith.subf %274, %273 : vector<34x128xf32>
    %cst_173 = arith.constant 0.000000e+00 : f32
    %276 = vector.broadcast %cst_173 : f32 to vector<34x128xf32>
    %277 = arith.cmpf olt, %247, %276 : vector<34x128xf32>
    %cst_174 = arith.constant 0.000000e+00 : f32
    %278 = vector.broadcast %cst_174 : f32 to vector<34x128xf32>
    %279 = arith.subf %278, %275 : vector<34x128xf32>
    %280 = arith.select %277, %279, %275 : vector<34x128xi1>, vector<34x128xf32>
    %cst_175 = arith.constant 1.000000e+00 : f32
    %281 = vector.broadcast %cst_175 : f32 to vector<34x128xf32>
    %282 = arith.addf %281, %280 : vector<34x128xf32>
    %283 = arith.mulf %245, %282 : vector<34x128xf32>
    %cst_176 = arith.constant dense<0.000000e+00> : vector<36x128xf32>
    %284 = tpu.matmul %5, %283, %cst_176 {dimension_numbers = #tpu.dot_dimension_numbers<[1], [0], [0], [1], [0, 0, 1, 1], [], []>} : vector<36x34xf32>, vector<34x128xf32>, vector<36x128xf32> -> vector<36x128xf32>
    %285 = vector.extract_strided_slice %284 {offsets = [0, 0], sizes = [34, 128], strides = [1, 1]} : vector<36x128xf32> to vector<34x128xf32>
    %c3 = arith.constant 3 : index
    %c0_177 = arith.constant 0 : index
    %c0_178 = arith.constant 0 : index
    %c0_179 = arith.constant 0 : index
    %286 = vector.load %arg6[%c3, %c0_177, %c0_178, %c0_179] : memref<4x3x128x128xf32, #tpu.memory_space<vmem>>, vector<1x1x128x128xf32>
    %287 = vector.shape_cast %286 : vector<1x1x128x128xf32> to vector<128x128xf32>
    %cst_180 = arith.constant dense<0.000000e+00> : vector<34x128xf32>
    %288 = tpu.matmul %285, %287, %cst_180 {dimension_numbers = #tpu.dot_dimension_numbers<[1], [0], [0], [1], [0, 0, 1, 1], [], []>} : vector<34x128xf32>, vector<128x128xf32>, vector<34x128xf32> -> vector<34x128xf32>
    %289 = vector.extract_strided_slice %284 {offsets = [1, 0], sizes = [34, 128], strides = [1, 1]} : vector<36x128xf32> to vector<34x128xf32>
    %c3_181 = arith.constant 3 : index
    %c1_182 = arith.constant 1 : index
    %c0_183 = arith.constant 0 : index
    %c0_184 = arith.constant 0 : index
    %290 = vector.load %arg6[%c3_181, %c1_182, %c0_183, %c0_184] : memref<4x3x128x128xf32, #tpu.memory_space<vmem>>, vector<1x1x128x128xf32>
    %291 = vector.shape_cast %290 : vector<1x1x128x128xf32> to vector<128x128xf32>
    %cst_185 = arith.constant dense<0.000000e+00> : vector<34x128xf32>
    %292 = tpu.matmul %289, %291, %cst_185 {dimension_numbers = #tpu.dot_dimension_numbers<[1], [0], [0], [1], [0, 0, 1, 1], [], []>} : vector<34x128xf32>, vector<128x128xf32>, vector<34x128xf32> -> vector<34x128xf32>
    %293 = arith.addf %288, %292 : vector<34x128xf32>
    %294 = vector.extract_strided_slice %284 {offsets = [2, 0], sizes = [34, 128], strides = [1, 1]} : vector<36x128xf32> to vector<34x128xf32>
    %c3_186 = arith.constant 3 : index
    %c2_187 = arith.constant 2 : index
    %c0_188 = arith.constant 0 : index
    %c0_189 = arith.constant 0 : index
    %295 = vector.load %arg6[%c3_186, %c2_187, %c0_188, %c0_189] : memref<4x3x128x128xf32, #tpu.memory_space<vmem>>, vector<1x1x128x128xf32>
    %296 = vector.shape_cast %295 : vector<1x1x128x128xf32> to vector<128x128xf32>
    %cst_190 = arith.constant dense<0.000000e+00> : vector<34x128xf32>
    %297 = tpu.matmul %294, %296, %cst_190 {dimension_numbers = #tpu.dot_dimension_numbers<[1], [0], [0], [1], [0, 0, 1, 1], [], []>} : vector<34x128xf32>, vector<128x128xf32>, vector<34x128xf32> -> vector<34x128xf32>
    %298 = arith.addf %293, %297 : vector<34x128xf32>
    %c3_191 = arith.constant 3 : index
    %c0_192 = arith.constant 0 : index
    %299 = vector.load %arg7[%c3_191, %c0_192] : memref<4x128xf32, #tpu.memory_space<vmem>>, vector<1x128xf32>
    %300 = vector.broadcast %299 : vector<1x128xf32> to vector<34x128xf32>
    %301 = arith.addf %298, %300 : vector<34x128xf32>
    %cst_193 = arith.constant dense<0.000000e+00> : vector<1x128xf32>
    %302 = tpu.matmul %4, %301, %cst_193 {dimension_numbers = #tpu.dot_dimension_numbers<[1], [0], [0], [1], [0, 0, 1, 1], [], []>} : vector<1x34xf32>, vector<34x128xf32>, vector<1x128xf32> -> vector<1x128xf32>
    %cst_194 = arith.constant dense<0.000000e+00> : vector<1x4xf32>
    %303 = tpu.matmul %302, %2, %cst_194 {dimension_numbers = #tpu.dot_dimension_numbers<[1], [0], [0], [1], [0, 0, 1, 1], [], []>} : vector<1x128xf32>, vector<128x4xf32>, vector<1x4xf32> -> vector<1x4xf32>
    %cst_195 = arith.constant 0.001953125 : f32
    %304 = vector.broadcast %cst_195 : f32 to vector<1x4xf32>
    %305 = arith.mulf %303, %304 : vector<1x4xf32>
    %cst_196 = arith.constant dense<0.000000e+00> : vector<1x128xf32>
    %306 = tpu.matmul %305, %3, %cst_196 {dimension_numbers = #tpu.dot_dimension_numbers<[1], [0], [0], [1], [0, 0, 1, 1], [], []>} : vector<1x4xf32>, vector<4x128xf32>, vector<1x128xf32> -> vector<1x128xf32>
    %307 = vector.broadcast %306 : vector<1x128xf32> to vector<34x128xf32>
    %308 = arith.subf %301, %307 : vector<34x128xf32>
    %309 = arith.mulf %308, %308 : vector<34x128xf32>
    %cst_197 = arith.constant dense<0.000000e+00> : vector<1x128xf32>
    %310 = tpu.matmul %4, %309, %cst_197 {dimension_numbers = #tpu.dot_dimension_numbers<[1], [0], [0], [1], [0, 0, 1, 1], [], []>} : vector<1x34xf32>, vector<34x128xf32>, vector<1x128xf32> -> vector<1x128xf32>
    %cst_198 = arith.constant dense<0.000000e+00> : vector<1x4xf32>
    %311 = tpu.matmul %310, %2, %cst_198 {dimension_numbers = #tpu.dot_dimension_numbers<[1], [0], [0], [1], [0, 0, 1, 1], [], []>} : vector<1x128xf32>, vector<128x4xf32>, vector<1x4xf32> -> vector<1x4xf32>
    %cst_199 = arith.constant 0.001953125 : f32
    %312 = vector.broadcast %cst_199 : f32 to vector<1x4xf32>
    %313 = arith.mulf %311, %312 : vector<1x4xf32>
    %c3_200 = arith.constant 3 : index
    %c0_201 = arith.constant 0 : index
    %314 = vector.load %arg8[%c3_200, %c0_201] : memref<4x4xf32, #tpu.memory_space<vmem>>, vector<1x4xf32>
    %cst_202 = arith.constant 9.99999974E-6 : f32
    %315 = vector.broadcast %cst_202 : f32 to vector<1x4xf32>
    %316 = arith.addf %313, %315 : vector<1x4xf32>
    %317 = math.rsqrt %316 : vector<1x4xf32>
    %318 = arith.mulf %314, %317 : vector<1x4xf32>
    %c3_203 = arith.constant 3 : index
    %c0_204 = arith.constant 0 : index
    %319 = vector.load %arg9[%c3_203, %c0_204] : memref<4x4xf32, #tpu.memory_space<vmem>>, vector<1x4xf32>
    %320 = arith.mulf %305, %318 : vector<1x4xf32>
    %321 = arith.subf %319, %320 : vector<1x4xf32>
    %cst_205 = arith.constant dense<0.000000e+00> : vector<1x128xf32>
    %322 = tpu.matmul %318, %3, %cst_205 {dimension_numbers = #tpu.dot_dimension_numbers<[1], [0], [0], [1], [0, 0, 1, 1], [], []>} : vector<1x4xf32>, vector<4x128xf32>, vector<1x128xf32> -> vector<1x128xf32>
    %323 = vector.broadcast %322 : vector<1x128xf32> to vector<34x128xf32>
    %324 = arith.mulf %301, %323 : vector<34x128xf32>
    %cst_206 = arith.constant dense<0.000000e+00> : vector<1x128xf32>
    %325 = tpu.matmul %321, %3, %cst_206 {dimension_numbers = #tpu.dot_dimension_numbers<[1], [0], [0], [1], [0, 0, 1, 1], [], []>} : vector<1x4xf32>, vector<4x128xf32>, vector<1x128xf32> -> vector<1x128xf32>
    %326 = vector.broadcast %325 : vector<1x128xf32> to vector<34x128xf32>
    %327 = arith.addf %324, %326 : vector<34x128xf32>
    %cst_207 = arith.constant 5.000000e-01 : f32
    %328 = vector.broadcast %cst_207 : f32 to vector<34x128xf32>
    %329 = arith.mulf %328, %327 : vector<34x128xf32>
    %cst_208 = arith.constant 0.707106769 : f32
    %330 = vector.broadcast %cst_208 : f32 to vector<34x128xf32>
    %331 = arith.mulf %327, %330 : vector<34x128xf32>
    %332 = math.absf %331 : vector<34x128xf32>
    %cst_209 = arith.constant 0.327591091 : f32
    %333 = vector.broadcast %cst_209 : f32 to vector<34x128xf32>
    %334 = arith.mulf %333, %332 : vector<34x128xf32>
    %cst_210 = arith.constant 1.000000e+00 : f32
    %335 = vector.broadcast %cst_210 : f32 to vector<34x128xf32>
    %336 = arith.addf %335, %334 : vector<34x128xf32>
    %cst_211 = arith.constant 1.000000e+00 : f32
    %337 = vector.broadcast %cst_211 : f32 to vector<34x128xf32>
    %338 = arith.divf %337, %336 : vector<34x128xf32>
    %cst_212 = arith.constant 1.06140542 : f32
    %339 = vector.broadcast %cst_212 : f32 to vector<34x128xf32>
    %340 = arith.mulf %339, %338 : vector<34x128xf32>
    %cst_213 = arith.constant -1.45315206 : f32
    %341 = vector.broadcast %cst_213 : f32 to vector<34x128xf32>
    %342 = arith.addf %340, %341 : vector<34x128xf32>
    %343 = arith.mulf %342, %338 : vector<34x128xf32>
    %cst_214 = arith.constant 1.42141378 : f32
    %344 = vector.broadcast %cst_214 : f32 to vector<34x128xf32>
    %345 = arith.addf %343, %344 : vector<34x128xf32>
    %346 = arith.mulf %345, %338 : vector<34x128xf32>
    %cst_215 = arith.constant -0.284496725 : f32
    %347 = vector.broadcast %cst_215 : f32 to vector<34x128xf32>
    %348 = arith.addf %346, %347 : vector<34x128xf32>
    %349 = arith.mulf %348, %338 : vector<34x128xf32>
    %cst_216 = arith.constant 0.254829586 : f32
    %350 = vector.broadcast %cst_216 : f32 to vector<34x128xf32>
    %351 = arith.addf %349, %350 : vector<34x128xf32>
    %352 = arith.mulf %351, %338 : vector<34x128xf32>
    %cst_217 = arith.constant 0.000000e+00 : f32
    %353 = vector.broadcast %cst_217 : f32 to vector<34x128xf32>
    %354 = arith.subf %353, %332 : vector<34x128xf32>
    %355 = arith.mulf %354, %332 : vector<34x128xf32>
    %356 = math.exp %355 : vector<34x128xf32>
    %357 = arith.mulf %352, %356 : vector<34x128xf32>
    %cst_218 = arith.constant 1.000000e+00 : f32
    %358 = vector.broadcast %cst_218 : f32 to vector<34x128xf32>
    %359 = arith.subf %358, %357 : vector<34x128xf32>
    %cst_219 = arith.constant 0.000000e+00 : f32
    %360 = vector.broadcast %cst_219 : f32 to vector<34x128xf32>
    %361 = arith.cmpf olt, %331, %360 : vector<34x128xf32>
    %cst_220 = arith.constant 0.000000e+00 : f32
    %362 = vector.broadcast %cst_220 : f32 to vector<34x128xf32>
    %363 = arith.subf %362, %359 : vector<34x128xf32>
    %364 = arith.select %361, %363, %359 : vector<34x128xi1>, vector<34x128xf32>
    %cst_221 = arith.constant 1.000000e+00 : f32
    %365 = vector.broadcast %cst_221 : f32 to vector<34x128xf32>
    %366 = arith.addf %365, %364 : vector<34x128xf32>
    %367 = arith.mulf %329, %366 : vector<34x128xf32>
    %cst_222 = arith.constant dense<0.000000e+00> : vector<36x128xf32>
    %368 = tpu.matmul %5, %367, %cst_222 {dimension_numbers = #tpu.dot_dimension_numbers<[1], [0], [0], [1], [0, 0, 1, 1], [], []>} : vector<36x34xf32>, vector<34x128xf32>, vector<36x128xf32> -> vector<36x128xf32>
    %c0_223 = arith.constant 0 : index
    %c0_224 = arith.constant 0 : index
    %369 = vector.load %arg14[%c0_223, %c0_224] : memref<36x128xf32, #tpu.memory_space<vmem>>, vector<36x128xf32>
    tpu.vector_store %arg14[%c0_223, %c0_224], %368 {strides = array<i32>} : memref<36x128xf32, #tpu.memory_space<vmem>>, vector<36x128xf32>,
    return
  }
}

</mosaic_0001>

<llo_original>
// kernel: unet_up_forward.1
$region0: #{unet_up_forward.1}
  #allocation0 [shape = 'u32[]', space=smem, size = 0x4, offset = 0x4, fixed_abs, tag = 'smem constant byte address 0x4 - core index']
  #allocation1 [shape = 'u32[144,128]{1,0:T(1,128)}', space=vmem, size = 0x12000, scoped, tag = 'internal scratch']
  %s0 = inlined_call_operand.vmem [shape: f32[16,32], index: 0, kind: input, shape index: {}]
  %s1 = inlined_call_operand.vmem [shape: f32[16,32], index: 1, kind: input, shape index: {}]
  %s2 = inlined_call_operand.vmem [shape: f32[2,32,128], index: 2, kind: input, shape index: {}]
  %s3 = inlined_call_operand.vmem [shape: f32[2,32,128], index: 3, kind: input, shape index: {}]
  %s4 = inlined_call_operand.vmem [shape: f32[1,128], index: 4, kind: input, shape index: {}]
  %s5 = inlined_call_operand.vmem [shape: f32[2,36,16], index: 5, kind: input, shape index: {}]
  %s6 = inlined_call_operand.vmem [shape: f32[4,3,128,128], index: 6, kind: input, shape index: {}]
  %s7 = inlined_call_operand.vmem [shape: f32[4,128], index: 7, kind: input, shape index: {}]
  %s8 = inlined_call_operand.vmem [shape: f32[4,4], index: 8, kind: input, shape index: {}]
  %s9 = inlined_call_operand.vmem [shape: f32[4,4], index: 9, kind: input, shape index: {}]
  %s10 = inlined_call_operand.vmem [shape: f32[128,4], index: 10, kind: input, shape index: {}]
  %s11 = inlined_call_operand.vmem [shape: f32[4,128], index: 11, kind: input, shape index: {}]
  %s12 = inlined_call_operand.vmem [shape: f32[1,34], index: 12, kind: input, shape index: {}]
  %s13 = inlined_call_operand.vmem [shape: f32[36,34], index: 13, kind: input, shape index: {}]
  %s14 = inlined_call_operand.vmem [shape: f32[36,128], index: 14, kind: output, shape index: {}]
  %s15 = sld [smem:[#allocation0]]
  $region66: #{unet_up_forward.1} parent=0
    _
  %s17 = ssub.s32 1, %s15
  %s18 = scalar_select 0, %s17, %s15
  // Predicated region
  $region2: #{unet_up_forward.1} parent=0 // pred_check
    _
  $region3: #{unet_up_forward.1} parent=0 // pred_check_branch
    %20 = sbr.rel (0) target = $region5
  $region4: #{unet_up_forward.1} parent=0 // pred_region
    _
  $region5: #{unet_up_forward.1} parent=0 // pred_fallthru
    _
  // Predicated region
  $region6: #{unet_up_forward.1} parent=0 // pred_check
    _
  $region7: #{unet_up_forward.1} parent=0 // pred_check_branch
    %22 = sbr.rel (0) target = $region9
  $region8: #{unet_up_forward.1} parent=0 // pred_region
    _
  $region9: #{unet_up_forward.1} parent=0 // pred_fallthru
    _
  // Predicated region
  $region10: #{unet_up_forward.1} parent=0 // pred_check
    _
  $region11: #{unet_up_forward.1} parent=0 // pred_check_branch
    %24 = sbr.rel (0) target = $region13
  $region12: #{unet_up_forward.1} parent=0 // pred_region
    _
  $region13: #{unet_up_forward.1} parent=0 // pred_fallthru
    _
  // Predicated region
  $region14: #{unet_up_forward.1} parent=0 // pred_check
    _
  $region15: #{unet_up_forward.1} parent=0 // pred_check_branch
    %26 = sbr.rel (0) target = $region17
  $region16: #{unet_up_forward.1} parent=0 // pred_region
    _
  $region17: #{unet_up_forward.1} parent=0 // pred_fallthru
    _
  // Predicated region
  $region18: #{unet_up_forward.1} parent=0 // pred_check
    _
  $region19: #{unet_up_forward.1} parent=0 // pred_check_branch
    %28 = sbr.rel (0) target = $region21
  $region20: #{unet_up_forward.1} parent=0 // pred_region
    _
  $region21: #{unet_up_forward.1} parent=0 // pred_fallthru
    _
  // Predicated region
  $region22: #{unet_up_forward.1} parent=0 // pred_check
    _
  $region23: #{unet_up_forward.1} parent=0 // pred_check_branch
    %30 = sbr.rel (0) target = $region25
  $region24: #{unet_up_forward.1} parent=0 // pred_region
    _
  $region25: #{unet_up_forward.1} parent=0 // pred_fallthru
    _
  // Predicated region
  $region26: #{unet_up_forward.1} parent=0 // pred_check
    _
  $region27: #{unet_up_forward.1} parent=0 // pred_check_branch
    %32 = sbr.rel (0) target = $region29
  $region28: #{unet_up_forward.1} parent=0 // pred_region
    _
  $region29: #{unet_up_forward.1} parent=0 // pred_fallthru
    _
  // Predicated region
  $region30: #{unet_up_forward.1} parent=0 // pred_check
    _
  $region31: #{unet_up_forward.1} parent=0 // pred_check_branch
    %34 = sbr.rel (0) target = $region33
  $region32: #{unet_up_forward.1} parent=0 // pred_region
    _
  $region33: #{unet_up_forward.1} parent=0 // pred_fallthru
    _
  // Predicated region
  $region34: #{unet_up_forward.1} parent=0 // pred_check
    _
  $region35: #{unet_up_forward.1} parent=0 // pred_check_branch
    %36 = sbr.rel (0) target = $region37
  $region36: #{unet_up_forward.1} parent=0 // pred_region
    _
  $region37: #{unet_up_forward.1} parent=0 // pred_fallthru
    _
  // Predicated region
  $region38: #{unet_up_forward.1} parent=0 // pred_check
    _
  $region39: #{unet_up_forward.1} parent=0 // pred_check_branch
    %38 = sbr.rel (0) target = $region41
  $region40: #{unet_up_forward.1} parent=0 // pred_region
    _
  $region41: #{unet_up_forward.1} parent=0 // pred_fallthru
    _
  // Predicated region
  $region42: #{unet_up_forward.1} parent=0 // pred_check
    _
  $region43: #{unet_up_forward.1} parent=0 // pred_check_branch
    %40 = sbr.rel (0) target = $region45
  $region44: #{unet_up_forward.1} parent=0 // pred_region
    _
  $region45: #{unet_up_forward.1} parent=0 // pred_fallthru
    _
  // Predicated region
  $region46: #{unet_up_forward.1} parent=0 // pred_check
    _
  $region47: #{unet_up_forward.1} parent=0 // pred_check_branch
    %42 = sbr.rel (0) target = $region49
  $region48: #{unet_up_forward.1} parent=0 // pred_region
    _
  $region49: #{unet_up_forward.1} parent=0 // pred_fallthru
    _
  // Predicated region
  $region50: #{unet_up_forward.1} parent=0 // pred_check
    _
  $region51: #{unet_up_forward.1} parent=0 // pred_check_branch
    %44 = sbr.rel (0) target = $region53
  $region52: #{unet_up_forward.1} parent=0 // pred_region
    _
  $region53: #{unet_up_forward.1} parent=0 // pred_fallthru
    _
  // Predicated region
  $region54: #{unet_up_forward.1} parent=0 // pred_check
    _
  $region55: #{unet_up_forward.1} parent=0 // pred_check_branch
    %46 = sbr.rel (0) target = $region57
  $region56: #{unet_up_forward.1} parent=0 // pred_region
    _
  $region57: #{unet_up_forward.1} parent=0 // pred_fallthru
    _
  %v47 = vld [vmem:[%s0] sm:$0xff]
  %v48 = vld [vmem:[%s0 + $0x8] sm:$0xff]
  %v49 = vld [vmem:[%s1] sm:$0xff]
  %v50 = vld [vmem:[%s1 + $0x8] sm:$0xff]
  %v51 = vld [vmem:[%s10] sm:$0xff]
  %v52 = vld [vmem:[%s10 + $0x8] sm:$0xff]
  %v53 = vld [vmem:[%s10 + $0x10] sm:$0xff]
  %v54 = vld [vmem:[%s10 + $0x18] sm:$0xff]
  %v55 = vld [vmem:[%s10 + $0x20] sm:$0xff]
  %v56 = vld [vmem:[%s10 + $0x28] sm:$0xff]
  %v57 = vld [vmem:[%s10 + $0x30] sm:$0xff]
  %v58 = vld [vmem:[%s10 + $0x38] sm:$0xff]
  %v59 = vld [vmem:[%s10 + $0x40] sm:$0xff]
  %v60 = vld [vmem:[%s10 + $0x48] sm:$0xff]
  %v61 = vld [vmem:[%s10 + $0x50] sm:$0xff]
  %v62 = vld [vmem:[%s10 + $0x58] sm:$0xff]
  %v63 = vld [vmem:[%s10 + $0x60] sm:$0xff]
  %v64 = vld [vmem:[%s10 + $0x68] sm:$0xff]
  %v65 = vld [vmem:[%s10 + $0x70] sm:$0xff]
  %v66 = vld [vmem:[%s10 + $0x78] sm:$0xff]
  %v67 = vld [vmem:[%s11] sm:$0xf]
  %v68 = vld [vmem:[%s12] sm:$0x1]
  %v69 = vld [vmem:[%s13] sm:$0xff]
  %v70 = vld [vmem:[%s13 + $0x8] sm:$0xff]
  %v71 = vld [vmem:[%s13 + $0x10] sm:$0xff]
  %v72 = vld [vmem:[%s13 + $0x18] sm:$0xff]
  %v73 = vld [vmem:[%s13 + $0x20] sm:$0xf]
  %v74 = vld [vmem:[%s2] sm:$0xff]
  %v75 = vld [vmem:[%s2 + $0x8] sm:$0xff]
  %v76 = vld [vmem:[%s2 + $0x10] sm:$0xff]
  %v77 = vld [vmem:[%s2 + $0x18] sm:$0xff]
  %v78 = vld [vmem:[%s3] sm:$0xff]
  %v79 = vld [vmem:[%s3 + $0x8] sm:$0xff]
  %v80 = vld [vmem:[%s3 + $0x10] sm:$0xff]
  %v81 = vld [vmem:[%s3 + $0x18] sm:$0xff]
  %vm82 = vcmask 261120
  %v84 = vsel %vm82, %v49, 0
  %v87 = vsel %vm82, %v50, 0
  %89 = vmatprep.subr.mxu0 0.0
  %90 = vmatpush1.msra.mxu0 %v78
  %91 = vmatprep.subr.mxu0 0.0
  %92 = vmatpush1.msra.mxu0 %v79
  %93 = vmatprep.subr.mxu0 0.0
  %94 = vmatpush1.msra.mxu0 %v80
  %95 = vmatprep.subr.mxu0 0.0
  %96 = vmatpush1.msra.mxu0 %v81
  %97 = vmatprep.subr.mxu0 0.0
  %98 = vmatpush1.msra.mxu0 0.0
  %99 = vmatprep.subr.mxu0 0.0
  %100 = vmatpush1.msra.mxu0 0.0
  %101 = vmatprep.subr.mxu0 0.0
  %102 = vmatpush1.msra.mxu0 0.0
  %103 = vmatprep.subr.mxu0 0.0
  %104 = vmatpush1.msra.mxu0 0.0
  %105 = vmatprep.subr.mxu0 0.0
  %106 = vmatpush1.msra.mxu0 0.0
  %107 = vmatprep.subr.mxu0 0.0
  %108 = vmatpush1.msra.mxu0 0.0
  %109 = vmatprep.subr.mxu0 0.0
  %110 = vmatpush1.msra.mxu0 0.0
  %111 = vmatprep.subr.mxu0 0.0
  %112 = vmatpush1.msra.mxu0 0.0
  %113 = vmatprep.subr.mxu0 0.0
  %114 = vmatpush1.msra.mxu0 0.0
  %115 = vmatprep.subr.mxu0 0.0
  %116 = vmatpush1.msra.mxu0 0.0
  %117 = vmatprep.subr.mxu0 0.0
  %118 = vmatpush1.msra.mxu0 0.0
  %119 = vmatprep.subr.mxu0 0.0
  %120 = vmatpush1.msra.mxu0 0.0
  %121 = vmatprep.subr.mxu0 0.0
  %122 = vmatpush1.msra.mxu0 0.0
  %123 = vmatprep.subr.mxu0 0.0
  %124 = vmatpush1.msra.mxu0 0.0
  %125 = vmatprep.subr.mxu0 0.0
  %126 = vmatpush1.msra.mxu0 0.0
  %127 = vmatprep.subr.mxu0 0.0
  %128 = vmatpush1.msra.mxu0 0.0
  %129 = vmatprep.subr.mxu0 0.0
  %130 = vmatpush1.msra.mxu0 0.0
  %131 = vmatprep.subr.mxu0 0.0
  %132 = vmatpush1.msra.mxu0 0.0
  %133 = vmatprep.subr.mxu0 0.0
  %134 = vmatpush1.msra.mxu0 0.0
  %135 = vmatprep.subr.mxu0 0.0
  %136 = vmatpush1.msra.mxu0 0.0
  %137 = vmatprep.subr.mxu0 0.0
  %138 = vmatpush1.msra.mxu0 0.0
  %139 = vmatprep.subr.mxu0 0.0
  %140 = vmatpush1.msra.mxu0 0.0
  %141 = vmatprep.subr.mxu0 0.0
  %142 = vmatpush1.msra.mxu0 0.0
  %143 = vmatprep.subr.mxu0 0.0
  %144 = vmatpush1.msra.mxu0 0.0
  %145 = vmatprep.subr.mxu0 0.0
  %146 = vmatpush1.msra.mxu0 0.0
  %147 = vmatprep.subr.mxu0 0.0
  %148 = vmatpush1.msra.mxu0 0.0
  %149 = vmatprep.subr.mxu0 0.0
  %150 = vmatpush1.msra.mxu0 0.0
  %151 = vmatprep.subr.mxu0 0.0
  %152 = vmatpush1.msra.mxu0 0.0
  %153 = vmatprep.mubr.f32.mxu0 0.0
  %154 = vmatmul.mubr.f32.gmra.mrb[0].mxu0 %v84
  %v155 = vpop.f32.mrb[0].mxu0
  %v156 = vadd.f32 0.0, %v155
  %v157 = vpop.f32.mrb[0].mxu0
  %158 = vmatprep.mubr.f32.mxu0 0.0
  %159 = vmatmul.mubr.f32.gmra.mrb[0].mxu0 %v87
  %v160 = vpop.f32.mrb[0].mxu0
  %v161 = vadd.f32 0.0, %v160
  %v162 = vpop.f32.mrb[0].mxu0
  %163 = vdwg.mxu0
  %v165 = vsel %vm82, %v47, 0
  %v168 = vsel %vm82, %v48, 0
  %170 = vmatprep.subr.mxu0 0.0
  %171 = vmatpush1.msra.mxu0 %v74
  %172 = vmatprep.subr.mxu0 0.0
  %173 = vmatpush1.msra.mxu0 %v75
  %174 = vmatprep.subr.mxu0 0.0
  %175 = vmatpush1.msra.mxu0 %v76
  %176 = vmatprep.subr.mxu0 0.0
  %177 = vmatpush1.msra.mxu0 %v77
  %178 = vmatprep.subr.mxu0 0.0
  %179 = vmatpush1.msra.mxu0 0.0
  %180 = vmatprep.subr.mxu0 0.0
  %181 = vmatpush1.msra.mxu0 0.0
  %182 = vmatprep.subr.mxu0 0.0
  %183 = vmatpush1.msra.mxu0 0.0
  %184 = vmatprep.subr.mxu0 0.0
  %185 = vmatpush1.msra.mxu0 0.0
  %186 = vmatprep.subr.mxu0 0.0
  %187 = vmatpush1.msra.mxu0 0.0
  %188 = vmatprep.subr.mxu0 0.0
  %189 = vmatpush1.msra.mxu0 0.0
  %190 = vmatprep.subr.mxu0 0.0
  %191 = vmatpush1.msra.mxu0 0.0
  %192 = vmatprep.subr.mxu0 0.0
  %193 = vmatpush1.msra.mxu0 0.0
  %194 = vmatprep.subr.mxu0 0.0
  %195 = vmatpush1.msra.mxu0 0.0
  %196 = vmatprep.subr.mxu0 0.0
  %197 = vmatpush1.msra.mxu0 0.0
  %198 = vmatprep.subr.mxu0 0.0
  %199 = vmatpush1.msra.mxu0 0.0
  %200 = vmatprep.subr.mxu0 0.0
  %201 = vmatpush1.msra.mxu0 0.0
  %202 = vmatprep.subr.mxu0 0.0
  %203 = vmatpush1.msra.mxu0 0.0
  %204 = vmatprep.subr.mxu0 0.0
  %205 = vmatpush1.msra.mxu0 0.0
  %206 = vmatprep.subr.mxu0 0.0
  %207 = vmatpush1.msra.mxu0 0.0
  %208 = vmatprep.subr.mxu0 0.0
  %209 = vmatpush1.msra.mxu0 0.0
  %210 = vmatprep.subr.mxu0 0.0
  %211 = vmatpush1.msra.mxu0 0.0
  %212 = vmatprep.subr.mxu0 0.0
  %213 = vmatpush1.msra.mxu0 0.0
  %214 = vmatprep.subr.mxu0 0.0
  %215 = vmatpush1.msra.mxu0 0.0
  %216 = vmatprep.subr.mxu0 0.0
  %217 = vmatpush1.msra.mxu0 0.0
  %218 = vmatprep.subr.mxu0 0.0
  %219 = vmatpush1.msra.mxu0 0.0
  %220 = vmatprep.subr.mxu0 0.0
  %221 = vmatpush1.msra.mxu0 0.0
  %222 = vmatprep.subr.mxu0 0.0
  %223 = vmatpush1.msra.mxu0 0.0
  %224 = vmatprep.subr.mxu0 0.0
  %225 = vmatpush1.msra.mxu0 0.0
  %226 = vmatprep.subr.mxu0 0.0
  %227 = vmatpush1.msra.mxu0 0.0
  %228 = vmatprep.subr.mxu0 0.0
  %229 = vmatpush1.msra.mxu0 0.0
  %230 = vmatprep.subr.mxu0 0.0
  %231 = vmatpush1.msra.mxu0 0.0
  %232 = vmatprep.subr.mxu0 0.0
  %233 = vmatpush1.msra.mxu0 0.0
  %234 = vmatprep.mubr.f32.mxu0 0.0
  %235 = vmatmul.mubr.f32.gmra.mrb[0].mxu0 %v165
  %v236 = vpop.f32.mrb[0].mxu0
  %v237 = vadd.f32 %v156, %v236
  %v238 = vpop.f32.mrb[0].mxu0
  %239 = vmatprep.mubr.f32.mxu0 0.0
  %240 = vmatmul.mubr.f32.gmra.mrb[0].mxu0 %v168
  %v241 = vpop.f32.mrb[0].mxu0
  %v242 = vadd.f32 %v161, %v241
  %v243 = vpop.f32.mrb[0].mxu0
  %244 = vdwg.mxu0
  %v245 = vld [vmem:[%s4] sm:$0x1]
  %v247 = vlaneseq
  %v248 = vshrl.u32 %v247, 7
  %v249 = vsub.s32 0, %v248
  %v250 = vrot.slane %v245, %v249
  %v252 = vadd.f32 %v237, %v250
  %v253 = vadd.f32 %v242, %v250
  %v254 = vld [vmem:[%s5] sm:$0xff]
  %v255 = vld [vmem:[%s5 + $0x8] sm:$0xff]
  %v256 = vld [vmem:[%s5 + $0x10] sm:$0xff]
  %v257 = vld [vmem:[%s5 + $0x18] sm:$0xff]
  %v258 = vld [vmem:[%s5 + $0x20] sm:$0xf]
  %s259 = scalar_lea.vmem %s2, 32
  %v260 = vld [vmem:[%s259] sm:$0xff]
  %v261 = vld [vmem:[%s259 + $0x8] sm:$0xff]
  %v262 = vld [vmem:[%s259 + $0x10] sm:$0xff]
  %v263 = vld [vmem:[%s259 + $0x18] sm:$0xff]
  %s264 = scalar_lea.vmem %s3, 32
  %v265 = vld [vmem:[%s264] sm:$0xff]
  %v266 = vld [vmem:[%s264 + $0x8] sm:$0xff]
  %v267 = vld [vmem:[%s264 + $0x10] sm:$0xff]
  %v268 = vld [vmem:[%s264 + $0x18] sm:$0xff]
  %269 = vmatprep.subr.mxu0 0.0
  %270 = vmatpush1.msra.mxu0 %v265
  %271 = vmatprep.subr.mxu0 0.0
  %272 = vmatpush1.msra.mxu0 %v266
  %273 = vmatprep.subr.mxu0 0.0
  %274 = vmatpush1.msra.mxu0 %v267
  %275 = vmatprep.subr.mxu0 0.0
  %276 = vmatpush1.msra.mxu0 %v268
  %277 = vmatprep.subr.mxu0 0.0
  %278 = vmatpush1.msra.mxu0 0.0
  %279 = vmatprep.subr.mxu0 0.0
  %280 = vmatpush1.msra.mxu0 0.0
  %281 = vmatprep.subr.mxu0 0.0
  %282 = vmatpush1.msra.mxu0 0.0
  %283 = vmatprep.subr.mxu0 0.0
  %284 = vmatpush1.msra.mxu0 0.0
  %285 = vmatprep.subr.mxu0 0.0
  %286 = vmatpush1.msra.mxu0 0.0
  %287 = vmatprep.subr.mxu0 0.0
  %288 = vmatpush1.msra.mxu0 0.0
  %289 = vmatprep.subr.mxu0 0.0
  %290 = vmatpush1.msra.mxu0 0.0
  %291 = vmatprep.subr.mxu0 0.0
  %292 = vmatpush1.msra.mxu0 0.0
  %293 = vmatprep.subr.mxu0 0.0
  %294 = vmatpush1.msra.mxu0 0.0
  %295 = vmatprep.subr.mxu0 0.0
  %296 = vmatpush1.msra.mxu0 0.0
  %297 = vmatprep.subr.mxu0 0.0
  %298 = vmatpush1.msra.mxu0 0.0
  %299 = vmatprep.subr.mxu0 0.0
  %300 = vmatpush1.msra.mxu0 0.0
  %301 = vmatprep.subr.mxu0 0.0
  %302 = vmatpush1.msra.mxu0 0.0
  %303 = vmatprep.subr.mxu0 0.0
  %304 = vmatpush1.msra.mxu0 0.0
  %305 = vmatprep.subr.mxu0 0.0
  %306 = vmatpush1.msra.mxu0 0.0
  %307 = vmatprep.subr.mxu0 0.0
  %308 = vmatpush1.msra.mxu0 0.0
  %309 = vmatprep.subr.mxu0 0.0
  %310 = vmatpush1.msra.mxu0 0.0
  %311 = vmatprep.subr.mxu0 0.0
  %312 = vmatpush1.msra.mxu0 0.0
  %313 = vmatprep.subr.mxu0 0.0
  %314 = vmatpush1.msra.mxu0 0.0
  %315 = vmatprep.subr.mxu0 0.0
  %316 = vmatpush1.msra.mxu0 0.0
  %317 = vmatprep.subr.mxu0 0.0
  %318 = vmatpush1.msra.mxu0 0.0
  %319 = vmatprep.subr.mxu0 0.0
  %320 = vmatpush1.msra.mxu0 0.0
  %321 = vmatprep.subr.mxu0 0.0
  %322 = vmatpush1.msra.mxu0 0.0
  %323 = vmatprep.subr.mxu0 0.0
  %324 = vmatpush1.msra.mxu0 0.0
  %325 = vmatprep.subr.mxu0 0.0
  %326 = vmatpush1.msra.mxu0 0.0
  %327 = vmatprep.subr.mxu0 0.0
  %328 = vmatpush1.msra.mxu0 0.0
  %329 = vmatprep.subr.mxu0 0.0
  %330 = vmatpush1.msra.mxu0 0.0
  %331 = vmatprep.subr.mxu0 0.0
  %332 = vmatpush1.msra.mxu0 0.0
  %333 = vmatprep.mubr.f32.mxu0 0.0
  %334 = vmatmul.mubr.f32.gmra.mrb[0].mxu0 %v84
  %v335 = vpop.f32.mrb[0].mxu0
  %v336 = vadd.f32 0.0, %v335
  %v337 = vpop.f32.mrb[0].mxu0
  %338 = vmatprep.mubr.f32.mxu0 0.0
  %339 = vmatmul.mubr.f32.gmra.mrb[0].mxu0 %v87
  %v340 = vpop.f32.mrb[0].mxu0
  %v341 = vadd.f32 0.0, %v340
  %v342 = vpop.f32.mrb[0].mxu0
  %343 = vdwg.mxu0
  %344 = vmatprep.subr.mxu0 0.0
  %345 = vmatpush1.msra.mxu0 %v260
  %346 = vmatprep.subr.mxu0 0.0
  %347 = vmatpush1.msra.mxu0 %v261
  %348 = vmatprep.subr.mxu0 0.0
  %349 = vmatpush1.msra.mxu0 %v262
  %350 = vmatprep.subr.mxu0 0.0
  %351 = vmatpush1.msra.mxu0 %v263
  %352 = vmatprep.subr.mxu0 0.0
  %353 = vmatpush1.msra.mxu0 0.0
  %354 = vmatprep.subr.mxu0 0.0
  %355 = vmatpush1.msra.mxu0 0.0
  %356 = vmatprep.subr.mxu0 0.0
  %357 = vmatpush1.msra.mxu0 0.0
  %358 = vmatprep.subr.mxu0 0.0
  %359 = vmatpush1.msra.mxu0 0.0
  %360 = vmatprep.subr.mxu0 0.0
  %361 = vmatpush1.msra.mxu0 0.0
  %362 = vmatprep.subr.mxu0 0.0
  %363 = vmatpush1.msra.mxu0 0.0
  %364 = vmatprep.subr.mxu0 0.0
  %365 = vmatpush1.msra.mxu0 0.0
  %366 = vmatprep.subr.mxu0 0.0
  %367 = vmatpush1.msra.mxu0 0.0
  %368 = vmatprep.subr.mxu0 0.0
  %369 = vmatpush1.msra.mxu0 0.0
  %370 = vmatprep.subr.mxu0 0.0
  %371 = vmatpush1.msra.mxu0 0.0
  %372 = vmatprep.subr.mxu0 0.0
  %373 = vmatpush1.msra.mxu0 0.0
  %374 = vmatprep.subr.mxu0 0.0
  %375 = vmatpush1.msra.mxu0 0.0
  %376 = vmatprep.subr.mxu0 0.0
  %377 = vmatpush1.msra.mxu0 0.0
  %378 = vmatprep.subr.mxu0 0.0
  %379 = vmatpush1.msra.mxu0 0.0
  %380 = vmatprep.subr.mxu0 0.0
  %381 = vmatpush1.msra.mxu0 0.0
  %382 = vmatprep.subr.mxu0 0.0
  %383 = vmatpush1.msra.mxu0 0.0
  %384 = vmatprep.subr.mxu0 0.0
  %385 = vmatpush1.msra.mxu0 0.0
  %386 = vmatprep.subr.mxu0 0.0
  %387 = vmatpush1.msra.mxu0 0.0
  %388 = vmatprep.subr.mxu0 0.0
  %389 = vmatpush1.msra.mxu0 0.0
  %390 = vmatprep.subr.mxu0 0.0
  %391 = vmatpush1.msra.mxu0 0.0
  %392 = vmatprep.subr.mxu0 0.0
  %393 = vmatpush1.msra.mxu0 0.0
  %394 = vmatprep.subr.mxu0 0.0
  %395 = vmatpush1.msra.mxu0 0.0
  %396 = vmatprep.subr.mxu0 0.0
  %397 = vmatpush1.msra.mxu0 0.0
  %398 = vmatprep.subr.mxu0 0.0
  %399 = vmatpush1.msra.mxu0 0.0
  %400 = vmatprep.subr.mxu0 0.0
  %401 = vmatpush1.msra.mxu0 0.0
  %402 = vmatprep.subr.mxu0 0.0
  %403 = vmatpush1.msra.mxu0 0.0
  %404 = vmatprep.subr.mxu0 0.0
  %405 = vmatpush1.msra.mxu0 0.0
  %406 = vmatprep.subr.mxu0 0.0
  %407 = vmatpush1.msra.mxu0 0.0
  %408 = vmatprep.mubr.f32.mxu0 0.0
  %409 = vmatmul.mubr.f32.gmra.mrb[0].mxu0 %v165
  %v410 = vpop.f32.mrb[0].mxu0
  %v411 = vadd.f32 %v336, %v410
  %v412 = vpop.f32.mrb[0].mxu0
  %413 = vmatprep.mubr.f32.mxu0 0.0
  %414 = vmatmul.mubr.f32.gmra.mrb[0].mxu0 %v168
  %v415 = vpop.f32.mrb[0].mxu0
  %v416 = vadd.f32 %v341, %v415
  %v417 = vpop.f32.mrb[0].mxu0
  %418 = vdwg.mxu0
  %v419 = vadd.f32 %v411, %v250
  %v420 = vadd.f32 %v416, %v250
  %s421 = scalar_lea.vmem %s5, 40
  %v422 = vld [vmem:[%s421] sm:$0xff]
  %v423 = vld [vmem:[%s421 + $0x8] sm:$0xff]
  %v424 = vld [vmem:[%s421 + $0x10] sm:$0xff]
  %v425 = vld [vmem:[%s421 + $0x18] sm:$0xff]
  %v426 = vld [vmem:[%s421 + $0x20] sm:$0xf]
  %vm427 = vcmask 130048
  %v429 = vsel %vm427, %v422, 0
  %v432 = vsel %vm427, %v423, 0
  %v435 = vsel %vm427, %v424, 0
  %v438 = vsel %vm427, %v425, 0
  %v441 = vsel %vm427, %v426, 0
  %443 = vmatprep.subr.mxu0 0.0
  %444 = vmatpush1.msra.mxu0 %v419
  %445 = vmatprep.subr.mxu0 0.0
  %446 = vmatpush1.msra.mxu0 %v420
  %447 = vmatprep.subr.mxu0 0.0
  %448 = vmatpush1.msra.mxu0 0.0
  %449 = vmatprep.subr.mxu0 0.0
  %450 = vmatpush1.msra.mxu0 0.0
  %451 = vmatprep.subr.mxu0 0.0
  %452 = vmatpush1.msra.mxu0 0.0
  %453 = vmatprep.subr.mxu0 0.0
  %454 = vmatpush1.msra.mxu0 0.0
  %455 = vmatprep.subr.mxu0 0.0
  %456 = vmatpush1.msra.mxu0 0.0
  %457 = vmatprep.subr.mxu0 0.0
  %458 = vmatpush1.msra.mxu0 0.0
  %459 = vmatprep.subr.mxu0 0.0
  %460 = vmatpush1.msra.mxu0 0.0
  %461 = vmatprep.subr.mxu0 0.0
  %462 = vmatpush1.msra.mxu0 0.0
  %463 = vmatprep.subr.mxu0 0.0
  %464 = vmatpush1.msra.mxu0 0.0
  %465 = vmatprep.subr.mxu0 0.0
  %466 = vmatpush1.msra.mxu0 0.0
  %467 = vmatprep.subr.mxu0 0.0
  %468 = vmatpush1.msra.mxu0 0.0
  %469 = vmatprep.subr.mxu0 0.0
  %470 = vmatpush1.msra.mxu0 0.0
  %471 = vmatprep.subr.mxu0 0.0
  %472 = vmatpush1.msra.mxu0 0.0
  %473 = vmatprep.subr.mxu0 0.0
  %474 = vmatpush1.msra.mxu0 0.0
  %475 = vmatprep.subr.mxu0 0.0
  %476 = vmatpush1.msra.mxu0 0.0
  %477 = vmatprep.subr.mxu0 0.0
  %478 = vmatpush1.msra.mxu0 0.0
  %479 = vmatprep.subr.mxu0 0.0
  %480 = vmatpush1.msra.mxu0 0.0
  %481 = vmatprep.subr.mxu0 0.0
  %482 = vmatpush1.msra.mxu0 0.0
  %483 = vmatprep.subr.mxu0 0.0
  %484 = vmatpush1.msra.mxu0 0.0
  %485 = vmatprep.subr.mxu0 0.0
  %486 = vmatpush1.msra.mxu0 0.0
  %487 = vmatprep.subr.mxu0 0.0
  %488 = vmatpush1.msra.mxu0 0.0
  %489 = vmatprep.subr.mxu0 0.0
  %490 = vmatpush1.msra.mxu0 0.0
  %491 = vmatprep.subr.mxu0 0.0
  %492 = vmatpush1.msra.mxu0 0.0
  %493 = vmatprep.subr.mxu0 0.0
  %494 = vmatpush1.msra.mxu0 0.0
  %495 = vmatprep.subr.mxu0 0.0
  %496 = vmatpush1.msra.mxu0 0.0
  %497 = vmatprep.subr.mxu0 0.0
  %498 = vmatpush1.msra.mxu0 0.0
  %499 = vmatprep.subr.mxu0 0.0
  %500 = vmatpush1.msra.mxu0 0.0
  %501 = vmatprep.subr.mxu0 0.0
  %502 = vmatpush1.msra.mxu0 0.0
  %503 = vmatprep.subr.mxu0 0.0
  %504 = vmatpush1.msra.mxu0 0.0
  %505 = vmatprep.subr.mxu0 0.0
  %506 = vmatpush1.msra.mxu0 0.0
  %507 = vmatprep.mubr.f32.mxu0 0.0
  %508 = vmatmul.mubr.f32.gmra.mrb[0].mxu0 %v429
  %v509 = vpop.f32.mrb[0].mxu0
  %v510 = vadd.f32 0.0, %v509
  %v511 = vpop.f32.mrb[0].mxu0
  %512 = vmatprep.mubr.f32.mxu0 0.0
  %513 = vmatmul.mubr.f32.gmra.mrb[0].mxu0 %v432
  %v514 = vpop.f32.mrb[0].mxu0
  %v515 = vadd.f32 0.0, %v514
  %v516 = vpop.f32.mrb[0].mxu0
  %517 = vmatprep.mubr.f32.mxu0 0.0
  %518 = vmatmul.mubr.f32.gmra.mrb[0].mxu0 %v435
  %v519 = vpop.f32.mrb[0].mxu0
  %v520 = vadd.f32 0.0, %v519
  %v521 = vpop.f32.mrb[0].mxu0
  %522 = vmatprep.mubr.f32.mxu0 0.0
  %523 = vmatmul.mubr.f32.gmra.mrb[0].mxu0 %v438
  %v524 = vpop.f32.mrb[0].mxu0
  %v525 = vadd.f32 0.0, %v524
  %v526 = vpop.f32.mrb[0].mxu0
  %527 = vmatprep.mubr.f32.mxu0 0.0
  %528 = vmatmul.mubr.f32.gmra.mrb[0].mxu0 %v441
  %v529 = vpop.f32.mrb[0].mxu0
  %v530 = vadd.f32 0.0, %v529
  %v531 = vpop.f32.mrb[0].mxu0
  %532 = vdwg.mxu0
  %v534 = vsel %vm427, %v254, 0
  %v537 = vsel %vm427, %v255, 0
  %v540 = vsel %vm427, %v256, 0
  %v543 = vsel %vm427, %v257, 0
  %v546 = vsel %vm427, %v258, 0
  %548 = vmatprep.subr.mxu0 0.0
  %549 = vmatpush1.msra.mxu0 %v252
  %550 = vmatprep.subr.mxu0 0.0
  %551 = vmatpush1.msra.mxu0 %v253
  %552 = vmatprep.subr.mxu0 0.0
  %553 = vmatpush1.msra.mxu0 0.0
  %554 = vmatprep.subr.mxu0 0.0
  %555 = vmatpush1.msra.mxu0 0.0
  %556 = vmatprep.subr.mxu0 0.0
  %557 = vmatpush1.msra.mxu0 0.0
  %558 = vmatprep.subr.mxu0 0.0
  %559 = vmatpush1.msra.mxu0 0.0
  %560 = vmatprep.subr.mxu0 0.0
  %561 = vmatpush1.msra.mxu0 0.0
  %562 = vmatprep.subr.mxu0 0.0
  %563 = vmatpush1.msra.mxu0 0.0
  %564 = vmatprep.subr.mxu0 0.0
  %565 = vmatpush1.msra.mxu0 0.0
  %566 = vmatprep.subr.mxu0 0.0
  %567 = vmatpush1.msra.mxu0 0.0
  %568 = vmatprep.subr.mxu0 0.0
  %569 = vmatpush1.msra.mxu0 0.0
  %570 = vmatprep.subr.mxu0 0.0
  %571 = vmatpush1.msra.mxu0 0.0
  %572 = vmatprep.subr.mxu0 0.0
  %573 = vmatpush1.msra.mxu0 0.0
  %574 = vmatprep.subr.mxu0 0.0
  %575 = vmatpush1.msra.mxu0 0.0
  %576 = vmatprep.subr.mxu0 0.0
  %577 = vmatpush1.msra.mxu0 0.0
  %578 = vmatprep.subr.mxu0 0.0
  %579 = vmatpush1.msra.mxu0 0.0
  %580 = vmatprep.subr.mxu0 0.0
  %581 = vmatpush1.msra.mxu0 0.0
  %582 = vmatprep.subr.mxu0 0.0
  %583 = vmatpush1.msra.mxu0 0.0
  %584 = vmatprep.subr.mxu0 0.0
  %585 = vmatpush1.msra.mxu0 0.0
  %586 = vmatprep.subr.mxu0 0.0
  %587 = vmatpush1.msra.mxu0 0.0
  %588 = vmatprep.subr.mxu0 0.0
  %589 = vmatpush1.msra.mxu0 0.0
  %590 = vmatprep.subr.mxu0 0.0
  %591 = vmatpush1.msra.mxu0 0.0
  %592 = vmatprep.subr.mxu0 0.0
  %593 = vmatpush1.msra.mxu0 0.0
  %594 = vmatprep.subr.mxu0 0.0
  %595 = vmatpush1.msra.mxu0 0.0
  %596 = vmatprep.subr.mxu0 0.0
  %597 = vmatpush1.msra.mxu0 0.0
  %598 = vmatprep.subr.mxu0 0.0
  %599 = vmatpush1.msra.mxu0 0.0
  %600 = vmatprep.subr.mxu0 0.0
  %601 = vmatpush1.msra.mxu0 0.0
  %602 = vmatprep.subr.mxu0 0.0
  %603 = vmatpush1.msra.mxu0 0.0
  %604 = vmatprep.subr.mxu0 0.0
  %605 = vmatpush1.msra.mxu0 0.0
  %606 = vmatprep.subr.mxu0 0.0
  %607 = vmatpush1.msra.mxu0 0.0
  %608 = vmatprep.subr.mxu0 0.0
  %609 = vmatpush1.msra.mxu0 0.0
  %610 = vmatprep.subr.mxu0 0.0
  %611 = vmatpush1.msra.mxu0 0.0
  %612 = vmatprep.mubr.f32.mxu0 0.0
  %613 = vmatmul.mubr.f32.gmra.mrb[0].mxu0 %v534
  %v614 = vpop.f32.mrb[0].mxu0
  %v615 = vadd.f32 %v510, %v614
  %v616 = vpop.f32.mrb[0].mxu0
  %617 = vmatprep.mubr.f32.mxu0 0.0
  %618 = vmatmul.mubr.f32.gmra.mrb[0].mxu0 %v537
  %v619 = vpop.f32.mrb[0].mxu0
  %v620 = vadd.f32 %v515, %v619
  %v621 = vpop.f32.mrb[0].mxu0
  %622 = vmatprep.mubr.f32.mxu0 0.0
  %623 = vmatmul.mubr.f32.gmra.mrb[0].mxu0 %v540
  %v624 = vpop.f32.mrb[0].mxu0
  %v625 = vadd.f32 %v520, %v624
  %v626 = vpop.f32.mrb[0].mxu0
  %627 = vmatprep.mubr.f32.mxu0 0.0
  %628 = vmatmul.mubr.f32.gmra.mrb[0].mxu0 %v543
  %v629 = vpop.f32.mrb[0].mxu0
  %v630 = vadd.f32 %v525, %v629
  %v631 = vpop.f32.mrb[0].mxu0
  %632 = vmatprep.mubr.f32.mxu0 0.0
  %633 = vmatmul.mubr.f32.gmra.mrb[0].mxu0 %v546
  %v634 = vpop.f32.mrb[0].mxu0
  %v635 = vadd.f32 %v530, %v634
  %v636 = vpop.f32.mrb[0].mxu0
  %637 = vdwg.mxu0
  %v638 = vld [vmem:[%s6] sm:$0xff]
  %v639 = vld [vmem:[%s6 + $0x8] sm:$0xff]
  %v640 = vld [vmem:[%s6 + $0x10] sm:$0xff]
  %v641 = vld [vmem:[%s6 + $0x18] sm:$0xff]
  %v642 = vld [vmem:[%s6 + $0x20] sm:$0xff]
  %v643 = vld [vmem:[%s6 + $0x28] sm:$0xff]
  %v644 = vld [vmem:[%s6 + $0x30] sm:$0xff]
  %v645 = vld [vmem:[%s6 + $0x38] sm:$0xff]
  %v646 = vld [vmem:[%s6 + $0x40] sm:$0xff]
  %v647 = vld [vmem:[%s6 + $0x48] sm:$0xff]
  %v648 = vld [vmem:[%s6 + $0x50] sm:$0xff]
  %v649 = vld [vmem:[%s6 + $0x58] sm:$0xff]
  %v650 = vld [vmem:[%s6 + $0x60] sm:$0xff]
  %v651 = vld [vmem:[%s6 + $0x68] sm:$0xff]
  %v652 = vld [vmem:[%s6 + $0x70] sm:$0xff]
  %v653 = vld [vmem:[%s6 + $0x78] sm:$0xff]
  %s654 = scalar_lea.vmem %s6, 128
  %v655 = vld [vmem:[%s654] sm:$0xff]
  %v656 = vld [vmem:[%s654 + $0x8] sm:$0xff]
  %v657 = vld [vmem:[%s654 + $0x10] sm:$0xff]
  %v658 = vld [vmem:[%s654 + $0x18] sm:$0xff]
  %v659 = vld [vmem:[%s654 + $0x20] sm:$0xff]
  %v660 = vld [vmem:[%s654 + $0x28] sm:$0xff]
  %v661 = vld [vmem:[%s654 + $0x30] sm:$0xff]
  %v662 = vld [vmem:[%s654 + $0x38] sm:$0xff]
  %v663 = vld [vmem:[%s654 + $0x40] sm:$0xff]
  %v664 = vld [vmem:[%s654 + $0x48] sm:$0xff]
  %v665 = vld [vmem:[%s654 + $0x50] sm:$0xff]
  %v666 = vld [vmem:[%s654 + $0x58] sm:$0xff]
  %v667 = vld [vmem:[%s654 + $0x60] sm:$0xff]
  %v668 = vld [vmem:[%s654 + $0x68] sm:$0xff]
  %v669 = vld [vmem:[%s654 + $0x70] sm:$0xff]
  %v670 = vld [vmem:[%s654 + $0x78] sm:$0xff]
  %vm676 = vcmask 1046528
  %v677 = vrot.slane %v615, 1
  %v678 = vrot.slane %v620, 1
  %v679 = vsel %vm676, %v677, %v678
  %v680 = vrot.slane %v625, 1
  %v681 = vsel %vm676, %v678, %v680
  %v682 = vrot.slane %v630, 1
  %v683 = vsel %vm676, %v680, %v682
  %v684 = vrot.slane %v635, 1
  %v685 = vsel %vm676, %v682, %v684
  %691 = vmatprep.subr.mxu0 0.0
  %692 = vmatpush1.msra.mxu0 %v655
  %693 = vmatprep.subr.mxu0 0.0
  %694 = vmatpush1.msra.mxu0 %v656
  %695 = vmatprep.subr.mxu0 0.0
  %696 = vmatpush1.msra.mxu0 %v657
  %697 = vmatprep.subr.mxu0 0.0
  %698 = vmatpush1.msra.mxu0 %v658
  %699 = vmatprep.subr.mxu0 0.0
  %700 = vmatpush1.msra.mxu0 %v659
  %701 = vmatprep.subr.mxu0 0.0
  %702 = vmatpush1.msra.mxu0 %v660
  %703 = vmatprep.subr.mxu0 0.0
  %704 = vmatpush1.msra.mxu0 %v661
  %705 = vmatprep.subr.mxu0 0.0
  %706 = vmatpush1.msra.mxu0 %v662
  %707 = vmatprep.subr.mxu0 0.0
  %708 = vmatpush1.msra.mxu0 %v663
  %709 = vmatprep.subr.mxu0 0.0
  %710 = vmatpush1.msra.mxu0 %v664
  %711 = vmatprep.subr.mxu0 0.0
  %712 = vmatpush1.msra.mxu0 %v665
  %713 = vmatprep.subr.mxu0 0.0
  %714 = vmatpush1.msra.mxu0 %v666
  %715 = vmatprep.subr.mxu0 0.0
  %716 = vmatpush1.msra.mxu0 %v667
  %717 = vmatprep.subr.mxu0 0.0
  %718 = vmatpush1.msra.mxu0 %v668
  %719 = vmatprep.subr.mxu0 0.0
  %720 = vmatpush1.msra.mxu0 %v669
  %721 = vmatprep.subr.mxu0 0.0
  %722 = vmatpush1.msra.mxu0 %v670
  %723 = vmatprep.subr.mxu0 0.0
  %724 = vmatpush1.msra.mxu0 0.0
  %725 = vmatprep.subr.mxu0 0.0
  %726 = vmatpush1.msra.mxu0 0.0
  %727 = vmatprep.subr.mxu0 0.0
  %728 = vmatpush1.msra.mxu0 0.0
  %729 = vmatprep.subr.mxu0 0.0
  %730 = vmatpush1.msra.mxu0 0.0
  %731 = vmatprep.subr.mxu0 0.0
  %732 = vmatpush1.msra.mxu0 0.0
  %733 = vmatprep.subr.mxu0 0.0
  %734 = vmatpush1.msra.mxu0 0.0
  %735 = vmatprep.subr.mxu0 0.0
  %736 = vmatpush1.msra.mxu0 0.0
  %737 = vmatprep.subr.mxu0 0.0
  %738 = vmatpush1.msra.mxu0 0.0
  %739 = vmatprep.subr.mxu0 0.0
  %740 = vmatpush1.msra.mxu0 0.0
  %741 = vmatprep.subr.mxu0 0.0
  %742 = vmatpush1.msra.mxu0 0.0
  %743 = vmatprep.subr.mxu0 0.0
  %744 = vmatpush1.msra.mxu0 0.0
  %745 = vmatprep.subr.mxu0 0.0
  %746 = vmatpush1.msra.mxu0 0.0
  %747 = vmatprep.subr.mxu0 0.0
  %748 = vmatpush1.msra.mxu0 0.0
  %749 = vmatprep.subr.mxu0 0.0
  %750 = vmatpush1.msra.mxu0 0.0
  %751 = vmatprep.subr.mxu0 0.0
  %752 = vmatpush1.msra.mxu0 0.0
  %753 = vmatprep.subr.mxu0 0.0
  %754 = vmatpush1.msra.mxu0 0.0
  %755 = vmatprep.mubr.f32.mxu0 0.0
  %756 = vmatmul.mubr.f32.gmra.mrb[0].mxu0 %v679
  %v757 = vpop.f32.mrb[0].mxu0
  %v758 = vadd.f32 0.0, %v757
  %v759 = vpop.f32.mrb[0].mxu0
  %760 = vmatprep.mubr.f32.mxu0 0.0
  %761 = vmatmul.mubr.f32.gmra.mrb[0].mxu0 %v681
  %v762 = vpop.f32.mrb[0].mxu0
  %v763 = vadd.f32 0.0, %v762
  %v764 = vpop.f32.mrb[0].mxu0
  %765 = vmatprep.mubr.f32.mxu0 0.0
  %766 = vmatmul.mubr.f32.gmra.mrb[0].mxu0 %v683
  %v767 = vpop.f32.mrb[0].mxu0
  %v768 = vadd.f32 0.0, %v767
  %v769 = vpop.f32.mrb[0].mxu0
  %770 = vmatprep.mubr.f32.mxu0 0.0
  %771 = vmatmul.mubr.f32.gmra.mrb[0].mxu0 %v685
  %v772 = vpop.f32.mrb[0].mxu0
  %v773 = vadd.f32 0.0, %v772
  %v774 = vpop.f32.mrb[0].mxu0
  %775 = vmatprep.mubr.f32.mxu0 0.0
  %776 = vmatmul.mubr.f32.gmra.mrb[0].mxu0 %v684
  %v777 = vpop.f32.mrb[0].mxu0
  %v778 = vadd.f32 0.0, %v777
  %v779 = vpop.f32.mrb[0].mxu0
  %780 = vdwg.mxu0
  %781 = vmatprep.subr.mxu0 0.0
  %782 = vmatpush1.msra.mxu0 %v638
  %783 = vmatprep.subr.mxu0 0.0
  %784 = vmatpush1.msra.mxu0 %v639
  %785 = vmatprep.subr.mxu0 0.0
  %786 = vmatpush1.msra.mxu0 %v640
  %787 = vmatprep.subr.mxu0 0.0
  %788 = vmatpush1.msra.mxu0 %v641
  %789 = vmatprep.subr.mxu0 0.0
  %790 = vmatpush1.msra.mxu0 %v642
  %791 = vmatprep.subr.mxu0 0.0
  %792 = vmatpush1.msra.mxu0 %v643
  %793 = vmatprep.subr.mxu0 0.0
  %794 = vmatpush1.msra.mxu0 %v644
  %795 = vmatprep.subr.mxu0 0.0
  %796 = vmatpush1.msra.mxu0 %v645
  %797 = vmatprep.subr.mxu0 0.0
  %798 = vmatpush1.msra.mxu0 %v646
  %799 = vmatprep.subr.mxu0 0.0
  %800 = vmatpush1.msra.mxu0 %v647
  %801 = vmatprep.subr.mxu0 0.0
  %802 = vmatpush1.msra.mxu0 %v648
  %803 = vmatprep.subr.mxu0 0.0
  %804 = vmatpush1.msra.mxu0 %v649
  %805 = vmatprep.subr.mxu0 0.0
  %806 = vmatpush1.msra.mxu0 %v650
  %807 = vmatprep.subr.mxu0 0.0
  %808 = vmatpush1.msra.mxu0 %v651
  %809 = vmatprep.subr.mxu0 0.0
  %810 = vmatpush1.msra.mxu0 %v652
  %811 = vmatprep.subr.mxu0 0.0
  %812 = vmatpush1.msra.mxu0 %v653
  %813 = vmatprep.subr.mxu0 0.0
  %814 = vmatpush1.msra.mxu0 0.0
  %815 = vmatprep.subr.mxu0 0.0
  %816 = vmatpush1.msra.mxu0 0.0
  %817 = vmatprep.subr.mxu0 0.0
  %818 = vmatpush1.msra.mxu0 0.0
  %819 = vmatprep.subr.mxu0 0.0
  %820 = vmatpush1.msra.mxu0 0.0
  %821 = vmatprep.subr.mxu0 0.0
  %822 = vmatpush1.msra.mxu0 0.0
  %823 = vmatprep.subr.mxu0 0.0
  %824 = vmatpush1.msra.mxu0 0.0
  %825 = vmatprep.subr.mxu0 0.0
  %826 = vmatpush1.msra.mxu0 0.0
  %827 = vmatprep.subr.mxu0 0.0
  %828 = vmatpush1.msra.mxu0 0.0
  %829 = vmatprep.subr.mxu0 0.0
  %830 = vmatpush1.msra.mxu0 0.0
  %831 = vmatprep.subr.mxu0 0.0
  %832 = vmatpush1.msra.mxu0 0.0
  %833 = vmatprep.subr.mxu0 0.0
  %834 = vmatpush1.msra.mxu0 0.0
  %835 = vmatprep.subr.mxu0 0.0
  %836 = vmatpush1.msra.mxu0 0.0
  %837 = vmatprep.subr.mxu0 0.0
  %838 = vmatpush1.msra.mxu0 0.0
  %839 = vmatprep.subr.mxu0 0.0
  %840 = vmatpush1.msra.mxu0 0.0
  %841 = vmatprep.subr.mxu0 0.0
  %842 = vmatpush1.msra.mxu0 0.0
  %843 = vmatprep.subr.mxu0 0.0
  %844 = vmatpush1.msra.mxu0 0.0
  %845 = vmatprep.mubr.f32.mxu0 0.0
  %846 = vmatmul.mubr.f32.gmra.mrb[0].mxu0 %v615
  %v847 = vpop.f32.mrb[0].mxu0
  %v848 = vadd.f32 %v758, %v847
  %v849 = vpop.f32.mrb[0].mxu0
  %850 = vmatprep.mubr.f32.mxu0 0.0
  %851 = vmatmul.mubr.f32.gmra.mrb[0].mxu0 %v620
  %v852 = vpop.f32.mrb[0].mxu0
  %v853 = vadd.f32 %v763, %v852
  %v854 = vpop.f32.mrb[0].mxu0
  %855 = vmatprep.mubr.f32.mxu0 0.0
  %856 = vmatmul.mubr.f32.gmra.mrb[0].mxu0 %v625
  %v857 = vpop.f32.mrb[0].mxu0
  %v858 = vadd.f32 %v768, %v857
  %v859 = vpop.f32.mrb[0].mxu0
  %860 = vmatprep.mubr.f32.mxu0 0.0
  %861 = vmatmul.mubr.f32.gmra.mrb[0].mxu0 %v630
  %v862 = vpop.f32.mrb[0].mxu0
  %v863 = vadd.f32 %v773, %v862
  %v864 = vpop.f32.mrb[0].mxu0
  %865 = vmatprep.mubr.f32.mxu0 0.0
  %866 = vmatmul.mubr.f32.gmra.mrb[0].mxu0 %v635
  %v867 = vpop.f32.mrb[0].mxu0
  %v868 = vadd.f32 %v778, %v867
  %v869 = vpop.f32.mrb[0].mxu0
  %870 = vdwg.mxu0
  %s871 = scalar_lea.vmem %s6, 256
  %v872 = vld [vmem:[%s871] sm:$0xff]
  %v873 = vld [vmem:[%s871 + $0x8] sm:$0xff]
  %v874 = vld [vmem:[%s871 + $0x10] sm:$0xff]
  %v875 = vld [vmem:[%s871 + $0x18] sm:$0xff]
  %v876 = vld [vmem:[%s871 + $0x20] sm:$0xff]
  %v877 = vld [vmem:[%s871 + $0x28] sm:$0xff]
  %v878 = vld [vmem:[%s871 + $0x30] sm:$0xff]
  %v879 = vld [vmem:[%s871 + $0x38] sm:$0xff]
  %v880 = vld [vmem:[%s871 + $0x40] sm:$0xff]
  %v881 = vld [vmem:[%s871 + $0x48] sm:$0xff]
  %v882 = vld [vmem:[%s871 + $0x50] sm:$0xff]
  %v883 = vld [vmem:[%s871 + $0x58] sm:$0xff]
  %v884 = vld [vmem:[%s871 + $0x60] sm:$0xff]
  %v885 = vld [vmem:[%s871 + $0x68] sm:$0xff]
  %v886 = vld [vmem:[%s871 + $0x70] sm:$0xff]
  %v887 = vld [vmem:[%s871 + $0x78] sm:$0xff]
  %vm888 = vcmask 1045504
  %v889 = vrot.slane %v615, 2
  %v890 = vrot.slane %v620, 2
  %v891 = vsel %vm888, %v889, %v890
  %v892 = vrot.slane %v625, 2
  %v893 = vsel %vm888, %v890, %v892
  %v894 = vrot.slane %v630, 2
  %v895 = vsel %vm888, %v892, %v894
  %v896 = vrot.slane %v635, 2
  %v897 = vsel %vm888, %v894, %v896
  %903 = vmatprep.subr.mxu0 0.0
  %904 = vmatpush1.msra.mxu0 %v872
  %905 = vmatprep.subr.mxu0 0.0
  %906 = vmatpush1.msra.mxu0 %v873
  %907 = vmatprep.subr.mxu0 0.0
  %908 = vmatpush1.msra.mxu0 %v874
  %909 = vmatprep.subr.mxu0 0.0
  %910 = vmatpush1.msra.mxu0 %v875
  %911 = vmatprep.subr.mxu0 0.0
  %912 = vmatpush1.msra.mxu0 %v876
  %913 = vmatprep.subr.mxu0 0.0
  %914 = vmatpush1.msra.mxu0 %v877
  %915 = vmatprep.subr.mxu0 0.0
  %916 = vmatpush1.msra.mxu0 %v878
  %917 = vmatprep.subr.mxu0 0.0
  %918 = vmatpush1.msra.mxu0 %v879
  %919 = vmatprep.subr.mxu0 0.0
  %920 = vmatpush1.msra.mxu0 %v880
  %921 = vmatprep.subr.mxu0 0.0
  %922 = vmatpush1.msra.mxu0 %v881
  %923 = vmatprep.subr.mxu0 0.0
  %924 = vmatpush1.msra.mxu0 %v882
  %925 = vmatprep.subr.mxu0 0.0
  %926 = vmatpush1.msra.mxu0 %v883
  %927 = vmatprep.subr.mxu0 0.0
  %928 = vmatpush1.msra.mxu0 %v884
  %929 = vmatprep.subr.mxu0 0.0
  %930 = vmatpush1.msra.mxu0 %v885
  %931 = vmatprep.subr.mxu0 0.0
  %932 = vmatpush1.msra.mxu0 %v886
  %933 = vmatprep.subr.mxu0 0.0
  %934 = vmatpush1.msra.mxu0 %v887
  %935 = vmatprep.subr.mxu0 0.0
  %936 = vmatpush1.msra.mxu0 0.0
  %937 = vmatprep.subr.mxu0 0.0
  %938 = vmatpush1.msra.mxu0 0.0
  %939 = vmatprep.subr.mxu0 0.0
  %940 = vmatpush1.msra.mxu0 0.0
  %941 = vmatprep.subr.mxu0 0.0
  %942 = vmatpush1.msra.mxu0 0.0
  %943 = vmatprep.subr.mxu0 0.0
  %944 = vmatpush1.msra.mxu0 0.0
  %945 = vmatprep.subr.mxu0 0.0
  %946 = vmatpush1.msra.mxu0 0.0
  %947 = vmatprep.subr.mxu0 0.0
  %948 = vmatpush1.msra.mxu0 0.0
  %949 = vmatprep.subr.mxu0 0.0
  %950 = vmatpush1.msra.mxu0 0.0
  %951 = vmatprep.subr.mxu0 0.0
  %952 = vmatpush1.msra.mxu0 0.0
  %953 = vmatprep.subr.mxu0 0.0
  %954 = vmatpush1.msra.mxu0 0.0
  %955 = vmatprep.subr.mxu0 0.0
  %956 = vmatpush1.msra.mxu0 0.0
  %957 = vmatprep.subr.mxu0 0.0
  %958 = vmatpush1.msra.mxu0 0.0
  %959 = vmatprep.subr.mxu0 0.0
  %960 = vmatpush1.msra.mxu0 0.0
  %961 = vmatprep.subr.mxu0 0.0
  %962 = vmatpush1.msra.mxu0 0.0
  %963 = vmatprep.subr.mxu0 0.0
  %964 = vmatpush1.msra.mxu0 0.0
  %965 = vmatprep.subr.mxu0 0.0
  %966 = vmatpush1.msra.mxu0 0.0
  %967 = vmatprep.mubr.f32.mxu0 0.0
  %968 = vmatmul.mubr.f32.gmra.mrb[0].mxu0 %v891
  %v969 = vpop.f32.mrb[0].mxu0
  %v970 = vadd.f32 0.0, %v969
  %v971 = vpop.f32.mrb[0].mxu0
  %972 = vmatprep.mubr.f32.mxu0 0.0
  %973 = vmatmul.mubr.f32.gmra.mrb[0].mxu0 %v893
  %v974 = vpop.f32.mrb[0].mxu0
  %v975 = vadd.f32 0.0, %v974
  %v976 = vpop.f32.mrb[0].mxu0
  %977 = vmatprep.mubr.f32.mxu0 0.0
  %978 = vmatmul.mubr.f32.gmra.mrb[0].mxu0 %v895
  %v979 = vpop.f32.mrb[0].mxu0
  %v980 = vadd.f32 0.0, %v979
  %v981 = vpop.f32.mrb[0].mxu0
  %982 = vmatprep.mubr.f32.mxu0 0.0
  %983 = vmatmul.mubr.f32.gmra.mrb[0].mxu0 %v897
  %v984 = vpop.f32.mrb[0].mxu0
  %v985 = vadd.f32 0.0, %v984
  %v986 = vpop.f32.mrb[0].mxu0
  %987 = vmatprep.mubr.f32.mxu0 0.0
  %988 = vmatmul.mubr.f32.gmra.mrb[0].mxu0 %v896
  %v989 = vpop.f32.mrb[0].mxu0
  %v990 = vadd.f32 0.0, %v989
  %v991 = vpop.f32.mrb[0].mxu0
  %992 = vdwg.mxu0
  %v993 = vadd.f32 %v848, %v970
  %v994 = vadd.f32 %v853, %v975
  %v995 = vadd.f32 %v858, %v980
  %v996 = vadd.f32 %v863, %v985
  %v997 = vadd.f32 %v868, %v990
  %v998 = vld [vmem:[%s7] sm:$0x1]
  %v999 = vlaneseq
  %v1000 = vshrl.u32 %v999, 7
  %v1001 = vsub.s32 0, %v1000
  %v1002 = vrot.slane %v998, %v1001
  %v1003 = vadd.f32 %v993, %v1002
  %v1004 = vadd.f32 %v994, %v1002
  %v1005 = vadd.f32 %v995, %v1002
  %v1006 = vadd.f32 %v996, %v1002
  %v1007 = vadd.f32 %v997, %v1002
  %vm1008 = vcmask 277504
  %v1010 = vsel %vm1008, %v68, 0
  %vm1012 = vcmask 1041408
  %v1014 = vsel %vm1012, %v1007, 0
  %1016 = vmatprep.subr.mxu0 0.0
  %1017 = vmatpush1.msra.mxu0 %v1003
  %1018 = vmatprep.subr.mxu0 0.0
  %1019 = vmatpush1.msra.mxu0 %v1004
  %1020 = vmatprep.subr.mxu0 0.0
  %1021 = vmatpush1.msra.mxu0 %v1005
  %1022 = vmatprep.subr.mxu0 0.0
  %1023 = vmatpush1.msra.mxu0 %v1006
  %1024 = vmatprep.subr.mxu0 0.0
  %1025 = vmatpush1.msra.mxu0 %v1014
  %1026 = vmatprep.subr.mxu0 0.0
  %1027 = vmatpush1.msra.mxu0 0.0
  %1028 = vmatprep.subr.mxu0 0.0
  %1029 = vmatpush1.msra.mxu0 0.0
  %1030 = vmatprep.subr.mxu0 0.0
  %1031 = vmatpush1.msra.mxu0 0.0
  %1032 = vmatprep.subr.mxu0 0.0
  %1033 = vmatpush1.msra.mxu0 0.0
  %1034 = vmatprep.subr.mxu0 0.0
  %1035 = vmatpush1.msra.mxu0 0.0
  %1036 = vmatprep.subr.mxu0 0.0
  %1037 = vmatpush1.msra.mxu0 0.0
  %1038 = vmatprep.subr.mxu0 0.0
  %1039 = vmatpush1.msra.mxu0 0.0
  %1040 = vmatprep.subr.mxu0 0.0
  %1041 = vmatpush1.msra.mxu0 0.0
  %1042 = vmatprep.subr.mxu0 0.0
  %1043 = vmatpush1.msra.mxu0 0.0
  %1044 = vmatprep.subr.mxu0 0.0
  %1045 = vmatpush1.msra.mxu0 0.0
  %1046 = vmatprep.subr.mxu0 0.0
  %1047 = vmatpush1.msra.mxu0 0.0
  %1048 = vmatprep.subr.mxu0 0.0
  %1049 = vmatpush1.msra.mxu0 0.0
  %1050 = vmatprep.subr.mxu0 0.0
  %1051 = vmatpush1.msra.mxu0 0.0
  %1052 = vmatprep.subr.mxu0 0.0
  %1053 = vmatpush1.msra.mxu0 0.0
  %1054 = vmatprep.subr.mxu0 0.0
  %1055 = vmatpush1.msra.mxu0 0.0
  %1056 = vmatprep.subr.mxu0 0.0
  %1057 = vmatpush1.msra.mxu0 0.0
  %1058 = vmatprep.subr.mxu0 0.0
  %1059 = vmatpush1.msra.mxu0 0.0
  %1060 = vmatprep.subr.mxu0 0.0
  %1061 = vmatpush1.msra.mxu0 0.0
  %1062 = vmatprep.subr.mxu0 0.0
  %1063 = vmatpush1.msra.mxu0 0.0
  %1064 = vmatprep.subr.mxu0 0.0
  %1065 = vmatpush1.msra.mxu0 0.0
  %1066 = vmatprep.subr.mxu0 0.0
  %1067 = vmatpush1.msra.mxu0 0.0
  %1068 = vmatprep.subr.mxu0 0.0
  %1069 = vmatpush1.msra.mxu0 0.0
  %1070 = vmatprep.subr.mxu0 0.0
  %1071 = vmatpush1.msra.mxu0 0.0
  %1072 = vmatprep.subr.mxu0 0.0
  %1073 = vmatpush1.msra.mxu0 0.0
  %1074 = vmatprep.subr.mxu0 0.0
  %1075 = vmatpush1.msra.mxu0 0.0
  %1076 = vmatprep.subr.mxu0 0.0
  %1077 = vmatpush1.msra.mxu0 0.0
  %1078 = vmatprep.subr.mxu0 0.0
  %1079 = vmatpush1.msra.mxu0 0.0
  %1080 = vmatprep.mubr.f32.mxu0 0.0
  %1081 = vmatmul.mubr.f32.gmra.mrb[0].mxu0 %v1010
  %v1082 = vpop.f32.mrb[0].mxu0
  %v1083 = vadd.f32 0.0, %v1082
  %v1084 = vpop.f32.mrb[0].mxu0
  %1085 = vdwg.mxu0
  %1086 = vmatprep.subr.mxu0 0.0
  %1087 = vmatpush1.msra.mxu0 %v51
  %1088 = vmatprep.subr.mxu0 0.0
  %1089 = vmatpush1.msra.mxu0 %v52
  %1090 = vmatprep.subr.mxu0 0.0
  %1091 = vmatpush1.msra.mxu0 %v53
  %1092 = vmatprep.subr.mxu0 0.0
  %1093 = vmatpush1.msra.mxu0 %v54
  %1094 = vmatprep.subr.mxu0 0.0
  %1095 = vmatpush1.msra.mxu0 %v55
  %1096 = vmatprep.subr.mxu0 0.0
  %1097 = vmatpush1.msra.mxu0 %v56
  %1098 = vmatprep.subr.mxu0 0.0
  %1099 = vmatpush1.msra.mxu0 %v57
  %1100 = vmatprep.subr.mxu0 0.0
  %1101 = vmatpush1.msra.mxu0 %v58
  %1102 = vmatprep.subr.mxu0 0.0
  %1103 = vmatpush1.msra.mxu0 %v59
  %1104 = vmatprep.subr.mxu0 0.0
  %1105 = vmatpush1.msra.mxu0 %v60
  %1106 = vmatprep.subr.mxu0 0.0
  %1107 = vmatpush1.msra.mxu0 %v61
  %1108 = vmatprep.subr.mxu0 0.0
  %1109 = vmatpush1.msra.mxu0 %v62
  %1110 = vmatprep.subr.mxu0 0.0
  %1111 = vmatpush1.msra.mxu0 %v63
  %1112 = vmatprep.subr.mxu0 0.0
  %1113 = vmatpush1.msra.mxu0 %v64
  %1114 = vmatprep.subr.mxu0 0.0
  %1115 = vmatpush1.msra.mxu0 %v65
  %1116 = vmatprep.subr.mxu0 0.0
  %1117 = vmatpush1.msra.mxu0 %v66
  %1118 = vmatprep.subr.mxu0 0.0
  %1119 = vmatpush1.msra.mxu0 0.0
  %1120 = vmatprep.subr.mxu0 0.0
  %1121 = vmatpush1.msra.mxu0 0.0
  %1122 = vmatprep.subr.mxu0 0.0
  %1123 = vmatpush1.msra.mxu0 0.0
  %1124 = vmatprep.subr.mxu0 0.0
  %1125 = vmatpush1.msra.mxu0 0.0
  %1126 = vmatprep.subr.mxu0 0.0
  %1127 = vmatpush1.msra.mxu0 0.0
  %1128 = vmatprep.subr.mxu0 0.0
  %1129 = vmatpush1.msra.mxu0 0.0
  %1130 = vmatprep.subr.mxu0 0.0
  %1131 = vmatpush1.msra.mxu0 0.0
  %1132 = vmatprep.subr.mxu0 0.0
  %1133 = vmatpush1.msra.mxu0 0.0
  %1134 = vmatprep.subr.mxu0 0.0
  %1135 = vmatpush1.msra.mxu0 0.0
  %1136 = vmatprep.subr.mxu0 0.0
  %1137 = vmatpush1.msra.mxu0 0.0
  %1138 = vmatprep.subr.mxu0 0.0
  %1139 = vmatpush1.msra.mxu0 0.0
  %1140 = vmatprep.subr.mxu0 0.0
  %1141 = vmatpush1.msra.mxu0 0.0
  %1142 = vmatprep.subr.mxu0 0.0
  %1143 = vmatpush1.msra.mxu0 0.0
  %1144 = vmatprep.subr.mxu0 0.0
  %1145 = vmatpush1.msra.mxu0 0.0
  %1146 = vmatprep.subr.mxu0 0.0
  %1147 = vmatpush1.msra.mxu0 0.0
  %1148 = vmatprep.subr.mxu0 0.0
  %1149 = vmatpush1.msra.mxu0 0.0
  %1150 = vmatprep.mubr.f32.mxu0 0.0
  %1151 = vmatmul.mubr.f32.gmra.mrb[0].mxu0 %v1083
  %v1152 = vpop.f32.mrb[0].mxu0
  %v1153 = vadd.f32 0.0, %v1152
  %v1154 = vpop.f32.mrb[0].mxu0
  %1155 = vdwg.mxu0
  %v1156 = vmul.f32 %v1153, 0.001953125
  %vm1157 = vcmask 31744
  %v1159 = vsel %vm1157, %v1156, 0
  %vm1161 = vcmask 1043456
  %v1163 = vsel %vm1161, %v67, 0
  %1165 = vmatprep.subr.mxu0 0.0
  %1166 = vmatpush1.msra.mxu0 %v1163
  %1167 = vmatprep.subr.mxu0 0.0
  %1168 = vmatpush1.msra.mxu0 0.0
  %1169 = vmatprep.subr.mxu0 0.0
  %1170 = vmatpush1.msra.mxu0 0.0
  %1171 = vmatprep.subr.mxu0 0.0
  %1172 = vmatpush1.msra.mxu0 0.0
  %1173 = vmatprep.subr.mxu0 0.0
  %1174 = vmatpush1.msra.mxu0 0.0
  %1175 = vmatprep.subr.mxu0 0.0
  %1176 = vmatpush1.msra.mxu0 0.0
  %1177 = vmatprep.subr.mxu0 0.0
  %1178 = vmatpush1.msra.mxu0 0.0
  %1179 = vmatprep.subr.mxu0 0.0
  %1180 = vmatpush1.msra.mxu0 0.0
  %1181 = vmatprep.subr.mxu0 0.0
  %1182 = vmatpush1.msra.mxu0 0.0
  %1183 = vmatprep.subr.mxu0 0.0
  %1184 = vmatpush1.msra.mxu0 0.0
  %1185 = vmatprep.subr.mxu0 0.0
  %1186 = vmatpush1.msra.mxu0 0.0
  %1187 = vmatprep.subr.mxu0 0.0
  %1188 = vmatpush1.msra.mxu0 0.0
  %1189 = vmatprep.subr.mxu0 0.0
  %1190 = vmatpush1.msra.mxu0 0.0
  %1191 = vmatprep.subr.mxu0 0.0
  %1192 = vmatpush1.msra.mxu0 0.0
  %1193 = vmatprep.subr.mxu0 0.0
  %1194 = vmatpush1.msra.mxu0 0.0
  %1195 = vmatprep.subr.mxu0 0.0
  %1196 = vmatpush1.msra.mxu0 0.0
  %1197 = vmatprep.subr.mxu0 0.0
  %1198 = vmatpush1.msra.mxu0 0.0
  %1199 = vmatprep.subr.mxu0 0.0
  %1200 = vmatpush1.msra.mxu0 0.0
  %1201 = vmatprep.subr.mxu0 0.0
  %1202 = vmatpush1.msra.mxu0 0.0
  %1203 = vmatprep.subr.mxu0 0.0
  %1204 = vmatpush1.msra.mxu0 0.0
  %1205 = vmatprep.subr.mxu0 0.0
  %1206 = vmatpush1.msra.mxu0 0.0
  %1207 = vmatprep.subr.mxu0 0.0
  %1208 = vmatpush1.msra.mxu0 0.0
  %1209 = vmatprep.subr.mxu0 0.0
  %1210 = vmatpush1.msra.mxu0 0.0
  %1211 = vmatprep.subr.mxu0 0.0
  %1212 = vmatpush1.msra.mxu0 0.0
  %1213 = vmatprep.subr.mxu0 0.0
  %1214 = vmatpush1.msra.mxu0 0.0
  %1215 = vmatprep.subr.mxu0 0.0
  %1216 = vmatpush1.msra.mxu0 0.0
  %1217 = vmatprep.subr.mxu0 0.0
  %1218 = vmatpush1.msra.mxu0 0.0
  %1219 = vmatprep.subr.mxu0 0.0
  %1220 = vmatpush1.msra.mxu0 0.0
  %1221 = vmatprep.subr.mxu0 0.0
  %1222 = vmatpush1.msra.mxu0 0.0
  %1223 = vmatprep.subr.mxu0 0.0
  %1224 = vmatpush1.msra.mxu0 0.0
  %1225 = vmatprep.subr.mxu0 0.0
  %1226 = vmatpush1.msra.mxu0 0.0
  %1227 = vmatprep.subr.mxu0 0.0
  %1228 = vmatpush1.msra.mxu0 0.0
  %1229 = vmatprep.mubr.f32.mxu0 0.0
  %1230 = vmatmul.mubr.f32.gmra.mrb[0].mxu0 %v1159
  %v1231 = vpop.f32.mrb[0].mxu0
  %v1232 = vadd.f32 0.0, %v1231
  %v1233 = vpop.f32.mrb[0].mxu0
  %1234 = vdwg.mxu0
  %v1235 = vlaneseq
  %v1236 = vshrl.u32 %v1235, 7
  %v1237 = vsub.s32 0, %v1236
  %v1238 = vrot.slane %v1232, %v1237
  %v1239 = vsub.f32 %v1003, %v1238
  %v1240 = vsub.f32 %v1004, %v1238
  %v1241 = vsub.f32 %v1005, %v1238
  %v1242 = vsub.f32 %v1006, %v1238
  %v1243 = vsub.f32 %v1007, %v1238
  %v1244 = vmul.f32 %v1239, %v1239
  %v1245 = vmul.f32 %v1240, %v1240
  %v1246 = vmul.f32 %v1241, %v1241
  %v1247 = vmul.f32 %v1242, %v1242
  %v1248 = vmul.f32 %v1243, %v1243
  %v1250 = vsel %vm1012, %v1248, 0
  %1252 = vmatprep.subr.mxu0 0.0
  %1253 = vmatpush1.msra.mxu0 %v1244
  %1254 = vmatprep.subr.mxu0 0.0
  %1255 = vmatpush1.msra.mxu0 %v1245
  %1256 = vmatprep.subr.mxu0 0.0
  %1257 = vmatpush1.msra.mxu0 %v1246
  %1258 = vmatprep.subr.mxu0 0.0
  %1259 = vmatpush1.msra.mxu0 %v1247
  %1260 = vmatprep.subr.mxu0 0.0
  %1261 = vmatpush1.msra.mxu0 %v1250
  %1262 = vmatprep.subr.mxu0 0.0
  %1263 = vmatpush1.msra.mxu0 0.0
  %1264 = vmatprep.subr.mxu0 0.0
  %1265 = vmatpush1.msra.mxu0 0.0
  %1266 = vmatprep.subr.mxu0 0.0
  %1267 = vmatpush1.msra.mxu0 0.0
  %1268 = vmatprep.subr.mxu0 0.0
  %1269 = vmatpush1.msra.mxu0 0.0
  %1270 = vmatprep.subr.mxu0 0.0
  %1271 = vmatpush1.msra.mxu0 0.0
  %1272 = vmatprep.subr.mxu0 0.0
  %1273 = vmatpush1.msra.mxu0 0.0
  %1274 = vmatprep.subr.mxu0 0.0
  %1275 = vmatpush1.msra.mxu0 0.0
  %1276 = vmatprep.subr.mxu0 0.0
  %1277 = vmatpush1.msra.mxu0 0.0
  %1278 = vmatprep.subr.mxu0 0.0
  %1279 = vmatpush1.msra.mxu0 0.0
  %1280 = vmatprep.subr.mxu0 0.0
  %1281 = vmatpush1.msra.mxu0 0.0
  %1282 = vmatprep.subr.mxu0 0.0
  %1283 = vmatpush1.msra.mxu0 0.0
  %1284 = vmatprep.subr.mxu0 0.0
  %1285 = vmatpush1.msra.mxu0 0.0
  %1286 = vmatprep.subr.mxu0 0.0
  %1287 = vmatpush1.msra.mxu0 0.0
  %1288 = vmatprep.subr.mxu0 0.0
  %1289 = vmatpush1.msra.mxu0 0.0
  %1290 = vmatprep.subr.mxu0 0.0
  %1291 = vmatpush1.msra.mxu0 0.0
  %1292 = vmatprep.subr.mxu0 0.0
  %1293 = vmatpush1.msra.mxu0 0.0
  %1294 = vmatprep.subr.mxu0 0.0
  %1295 = vmatpush1.msra.mxu0 0.0
  %1296 = vmatprep.subr.mxu0 0.0
  %1297 = vmatpush1.msra.mxu0 0.0
  %1298 = vmatprep.subr.mxu0 0.0
  %1299 = vmatpush1.msra.mxu0 0.0
  %1300 = vmatprep.subr.mxu0 0.0
  %1301 = vmatpush1.msra.mxu0 0.0
  %1302 = vmatprep.subr.mxu0 0.0
  %1303 = vmatpush1.msra.mxu0 0.0
  %1304 = vmatprep.subr.mxu0 0.0
  %1305 = vmatpush1.msra.mxu0 0.0
  %1306 = vmatprep.subr.mxu0 0.0
  %1307 = vmatpush1.msra.mxu0 0.0
  %1308 = vmatprep.subr.mxu0 0.0
  %1309 = vmatpush1.msra.mxu0 0.0
  %1310 = vmatprep.subr.mxu0 0.0
  %1311 = vmatpush1.msra.mxu0 0.0
  %1312 = vmatprep.subr.mxu0 0.0
  %1313 = vmatpush1.msra.mxu0 0.0
  %1314 = vmatprep.subr.mxu0 0.0
  %1315 = vmatpush1.msra.mxu0 0.0
  %1316 = vmatprep.mubr.f32.mxu0 0.0
  %1317 = vmatmul.mubr.f32.gmra.mrb[0].mxu0 %v1010
  %v1318 = vpop.f32.mrb[0].mxu0
  %v1319 = vadd.f32 0.0, %v1318
  %v1320 = vpop.f32.mrb[0].mxu0
  %1321 = vdwg.mxu0
  %1322 = vmatprep.subr.mxu0 0.0
  %1323 = vmatpush1.msra.mxu0 %v51
  %1324 = vmatprep.subr.mxu0 0.0
  %1325 = vmatpush1.msra.mxu0 %v52
  %1326 = vmatprep.subr.mxu0 0.0
  %1327 = vmatpush1.msra.mxu0 %v53
  %1328 = vmatprep.subr.mxu0 0.0
  %1329 = vmatpush1.msra.mxu0 %v54
  %1330 = vmatprep.subr.mxu0 0.0
  %1331 = vmatpush1.msra.mxu0 %v55
  %1332 = vmatprep.subr.mxu0 0.0
  %1333 = vmatpush1.msra.mxu0 %v56
  %1334 = vmatprep.subr.mxu0 0.0
  %1335 = vmatpush1.msra.mxu0 %v57
  %1336 = vmatprep.subr.mxu0 0.0
  %1337 = vmatpush1.msra.mxu0 %v58
  %1338 = vmatprep.subr.mxu0 0.0
  %1339 = vmatpush1.msra.mxu0 %v59
  %1340 = vmatprep.subr.mxu0 0.0
  %1341 = vmatpush1.msra.mxu0 %v60
  %1342 = vmatprep.subr.mxu0 0.0
  %1343 = vmatpush1.msra.mxu0 %v61
  %1344 = vmatprep.subr.mxu0 0.0
  %1345 = vmatpush1.msra.mxu0 %v62
  %1346 = vmatprep.subr.mxu0 0.0
  %1347 = vmatpush1.msra.mxu0 %v63
  %1348 = vmatprep.subr.mxu0 0.0
  %1349 = vmatpush1.msra.mxu0 %v64
  %1350 = vmatprep.subr.mxu0 0.0
  %1351 = vmatpush1.msra.mxu0 %v65
  %1352 = vmatprep.subr.mxu0 0.0
  %1353 = vmatpush1.msra.mxu0 %v66
  %1354 = vmatprep.subr.mxu0 0.0
  %1355 = vmatpush1.msra.mxu0 0.0
  %1356 = vmatprep.subr.mxu0 0.0
  %1357 = vmatpush1.msra.mxu0 0.0
  %1358 = vmatprep.subr.mxu0 0.0
  %1359 = vmatpush1.msra.mxu0 0.0
  %1360 = vmatprep.subr.mxu0 0.0
  %1361 = vmatpush1.msra.mxu0 0.0
  %1362 = vmatprep.subr.mxu0 0.0
  %1363 = vmatpush1.msra.mxu0 0.0
  %1364 = vmatprep.subr.mxu0 0.0
  %1365 = vmatpush1.msra.mxu0 0.0
  %1366 = vmatprep.subr.mxu0 0.0
  %1367 = vmatpush1.msra.mxu0 0.0
  %1368 = vmatprep.subr.mxu0 0.0
  %1369 = vmatpush1.msra.mxu0 0.0
  %1370 = vmatprep.subr.mxu0 0.0
  %1371 = vmatpush1.msra.mxu0 0.0
  %1372 = vmatprep.subr.mxu0 0.0
  %1373 = vmatpush1.msra.mxu0 0.0
  %1374 = vmatprep.subr.mxu0 0.0
  %1375 = vmatpush1.msra.mxu0 0.0
  %1376 = vmatprep.subr.mxu0 0.0
  %1377 = vmatpush1.msra.mxu0 0.0
  %1378 = vmatprep.subr.mxu0 0.0
  %1379 = vmatpush1.msra.mxu0 0.0
  %1380 = vmatprep.subr.mxu0 0.0
  %1381 = vmatpush1.msra.mxu0 0.0
  %1382 = vmatprep.subr.mxu0 0.0
  %1383 = vmatpush1.msra.mxu0 0.0
  %1384 = vmatprep.subr.mxu0 0.0
  %1385 = vmatpush1.msra.mxu0 0.0
  %1386 = vmatprep.mubr.f32.mxu0 0.0
  %1387 = vmatmul.mubr.f32.gmra.mrb[0].mxu0 %v1319
  %v1388 = vpop.f32.mrb[0].mxu0
  %v1389 = vadd.f32 0.0, %v1388
  %v1390 = vpop.f32.mrb[0].mxu0
  %1391 = vdwg.mxu0
  %v1392 = vmul.f32 %v1389, 0.001953125
  %v1393 = vld [vmem:[%s8] sm:$0x1]
  %v1394 = vadd.f32 %v1392, 1e-05
  %v1395 = vrsqrt.pop %v1394
  %v1396 = vmul.f32 %v1393, %v1395
  %v1397 = vld [vmem:[%s9] sm:$0x1]
  %v1398 = vmul.f32 %v1156, %v1396
  %v1399 = vsub.f32 %v1397, %v1398
  %v1401 = vsel %vm1157, %v1396, 0
  %1403 = vmatprep.subr.mxu0 0.0
  %1404 = vmatpush1.msra.mxu0 %v1163
  %1405 = vmatprep.subr.mxu0 0.0
  %1406 = vmatpush1.msra.mxu0 0.0
  %1407 = vmatprep.subr.mxu0 0.0
  %1408 = vmatpush1.msra.mxu0 0.0
  %1409 = vmatprep.subr.mxu0 0.0
  %1410 = vmatpush1.msra.mxu0 0.0
  %1411 = vmatprep.subr.mxu0 0.0
  %1412 = vmatpush1.msra.mxu0 0.0
  %1413 = vmatprep.subr.mxu0 0.0
  %1414 = vmatpush1.msra.mxu0 0.0
  %1415 = vmatprep.subr.mxu0 0.0
  %1416 = vmatpush1.msra.mxu0 0.0
  %1417 = vmatprep.subr.mxu0 0.0
  %1418 = vmatpush1.msra.mxu0 0.0
  %1419 = vmatprep.subr.mxu0 0.0
  %1420 = vmatpush1.msra.mxu0 0.0
  %1421 = vmatprep.subr.mxu0 0.0
  %1422 = vmatpush1.msra.mxu0 0.0
  %1423 = vmatprep.subr.mxu0 0.0
  %1424 = vmatpush1.msra.mxu0 0.0
  %1425 = vmatprep.subr.mxu0 0.0
  %1426 = vmatpush1.msra.mxu0 0.0
  %1427 = vmatprep.subr.mxu0 0.0
  %1428 = vmatpush1.msra.mxu0 0.0
  %1429 = vmatprep.subr.mxu0 0.0
  %1430 = vmatpush1.msra.mxu0 0.0
  %1431 = vmatprep.subr.mxu0 0.0
  %1432 = vmatpush1.msra.mxu0 0.0
  %1433 = vmatprep.subr.mxu0 0.0
  %1434 = vmatpush1.msra.mxu0 0.0
  %1435 = vmatprep.subr.mxu0 0.0
  %1436 = vmatpush1.msra.mxu0 0.0
  %1437 = vmatprep.subr.mxu0 0.0
  %1438 = vmatpush1.msra.mxu0 0.0
  %1439 = vmatprep.subr.mxu0 0.0
  %1440 = vmatpush1.msra.mxu0 0.0
  %1441 = vmatprep.subr.mxu0 0.0
  %1442 = vmatpush1.msra.mxu0 0.0
  %1443 = vmatprep.subr.mxu0 0.0
  %1444 = vmatpush1.msra.mxu0 0.0
  %1445 = vmatprep.subr.mxu0 0.0
  %1446 = vmatpush1.msra.mxu0 0.0
  %1447 = vmatprep.subr.mxu0 0.0
  %1448 = vmatpush1.msra.mxu0 0.0
  %1449 = vmatprep.subr.mxu0 0.0
  %1450 = vmatpush1.msra.mxu0 0.0
  %1451 = vmatprep.subr.mxu0 0.0
  %1452 = vmatpush1.msra.mxu0 0.0
  %1453 = vmatprep.subr.mxu0 0.0
  %1454 = vmatpush1.msra.mxu0 0.0
  %1455 = vmatprep.subr.mxu0 0.0
  %1456 = vmatpush1.msra.mxu0 0.0
  %1457 = vmatprep.subr.mxu0 0.0
  %1458 = vmatpush1.msra.mxu0 0.0
  %1459 = vmatprep.subr.mxu0 0.0
  %1460 = vmatpush1.msra.mxu0 0.0
  %1461 = vmatprep.subr.mxu0 0.0
  %1462 = vmatpush1.msra.mxu0 0.0
  %1463 = vmatprep.subr.mxu0 0.0
  %1464 = vmatpush1.msra.mxu0 0.0
  %1465 = vmatprep.subr.mxu0 0.0
  %1466 = vmatpush1.msra.mxu0 0.0
  %1467 = vmatprep.mubr.f32.mxu0 0.0
  %1468 = vmatmul.mubr.f32.gmra.mrb[0].mxu0 %v1401
  %v1469 = vpop.f32.mrb[0].mxu0
  %v1470 = vadd.f32 0.0, %v1469
  %v1471 = vpop.f32.mrb[0].mxu0
  %1472 = vdwg.mxu0
  %v1473 = vlaneseq
  %v1474 = vshrl.u32 %v1473, 7
  %v1475 = vsub.s32 0, %v1474
  %v1476 = vrot.slane %v1470, %v1475
  %v1477 = vmul.f32 %v1003, %v1476
  %v1478 = vmul.f32 %v1004, %v1476
  %v1479 = vmul.f32 %v1005, %v1476
  %v1480 = vmul.f32 %v1006, %v1476
  %v1481 = vmul.f32 %v1007, %v1476
  %v1483 = vsel %vm1157, %v1399, 0
  %1485 = vmatprep.subr.mxu0 0.0
  %1486 = vmatpush1.msra.mxu0 %v1163
  %1487 = vmatprep.subr.mxu0 0.0
  %1488 = vmatpush1.msra.mxu0 0.0
  %1489 = vmatprep.subr.mxu0 0.0
  %1490 = vmatpush1.msra.mxu0 0.0
  %1491 = vmatprep.subr.mxu0 0.0
  %1492 = vmatpush1.msra.mxu0 0.0
  %1493 = vmatprep.subr.mxu0 0.0
  %1494 = vmatpush1.msra.mxu0 0.0
  %1495 = vmatprep.subr.mxu0 0.0
  %1496 = vmatpush1.msra.mxu0 0.0
  %1497 = vmatprep.subr.mxu0 0.0
  %1498 = vmatpush1.msra.mxu0 0.0
  %1499 = vmatprep.subr.mxu0 0.0
  %1500 = vmatpush1.msra.mxu0 0.0
  %1501 = vmatprep.subr.mxu0 0.0
  %1502 = vmatpush1.msra.mxu0 0.0
  %1503 = vmatprep.subr.mxu0 0.0
  %1504 = vmatpush1.msra.mxu0 0.0
  %1505 = vmatprep.subr.mxu0 0.0
  %1506 = vmatpush1.msra.mxu0 0.0
  %1507 = vmatprep.subr.mxu0 0.0
  %1508 = vmatpush1.msra.mxu0 0.0
  %1509 = vmatprep.subr.mxu0 0.0
  %1510 = vmatpush1.msra.mxu0 0.0
  %1511 = vmatprep.subr.mxu0 0.0
  %1512 = vmatpush1.msra.mxu0 0.0
  %1513 = vmatprep.subr.mxu0 0.0
  %1514 = vmatpush1.msra.mxu0 0.0
  %1515 = vmatprep.subr.mxu0 0.0
  %1516 = vmatpush1.msra.mxu0 0.0
  %1517 = vmatprep.subr.mxu0 0.0
  %1518 = vmatpush1.msra.mxu0 0.0
  %1519 = vmatprep.subr.mxu0 0.0
  %1520 = vmatpush1.msra.mxu0 0.0
  %1521 = vmatprep.subr.mxu0 0.0
  %1522 = vmatpush1.msra.mxu0 0.0
  %1523 = vmatprep.subr.mxu0 0.0
  %1524 = vmatpush1.msra.mxu0 0.0
  %1525 = vmatprep.subr.mxu0 0.0
  %1526 = vmatpush1.msra.mxu0 0.0
  %1527 = vmatprep.subr.mxu0 0.0
  %1528 = vmatpush1.msra.mxu0 0.0
  %1529 = vmatprep.subr.mxu0 0.0
  %1530 = vmatpush1.msra.mxu0 0.0
  %1531 = vmatprep.subr.mxu0 0.0
  %1532 = vmatpush1.msra.mxu0 0.0
  %1533 = vmatprep.subr.mxu0 0.0
  %1534 = vmatpush1.msra.mxu0 0.0
  %1535 = vmatprep.subr.mxu0 0.0
  %1536 = vmatpush1.msra.mxu0 0.0
  %1537 = vmatprep.subr.mxu0 0.0
  %1538 = vmatpush1.msra.mxu0 0.0
  %1539 = vmatprep.subr.mxu0 0.0
  %1540 = vmatpush1.msra.mxu0 0.0
  %1541 = vmatprep.subr.mxu0 0.0
  %1542 = vmatpush1.msra.mxu0 0.0
  %1543 = vmatprep.subr.mxu0 0.0
  %1544 = vmatpush1.msra.mxu0 0.0
  %1545 = vmatprep.subr.mxu0 0.0
  %1546 = vmatpush1.msra.mxu0 0.0
  %1547 = vmatprep.subr.mxu0 0.0
  %1548 = vmatpush1.msra.mxu0 0.0
  %1549 = vmatprep.mubr.f32.mxu0 0.0
  %1550 = vmatmul.mubr.f32.gmra.mrb[0].mxu0 %v1483
  %v1551 = vpop.f32.mrb[0].mxu0
  %v1552 = vadd.f32 0.0, %v1551
  %v1553 = vpop.f32.mrb[0].mxu0
  %1554 = vdwg.mxu0
  %v1555 = vlaneseq
  %v1556 = vshrl.u32 %v1555, 7
  %v1557 = vsub.s32 0, %v1556
  %v1558 = vrot.slane %v1552, %v1557
  %v1559 = vadd.f32 %v1477, %v1558
  %v1560 = vadd.f32 %v1478, %v1558
  %v1561 = vadd.f32 %v1479, %v1558
  %v1562 = vadd.f32 %v1480, %v1558
  %v1563 = vadd.f32 %v1481, %v1558
  %v1564 = vmul.f32 %v1559, 0.5
  %v1565 = vmul.f32 %v1560, 0.5
  %v1566 = vmul.f32 %v1561, 0.5
  %v1567 = vmul.f32 %v1562, 0.5
  %v1568 = vmul.f32 %v1563, 0.5
  %v1569 = vmul.f32 %v1559, 0.70710677
  %v1570 = vmul.f32 %v1560, 0.70710677
  %v1571 = vmul.f32 %v1561, 0.70710677
  %v1572 = vmul.f32 %v1562, 0.70710677
  %v1573 = vmul.f32 %v1563, 0.70710677
  %v1574 = vand.u32 2147483647, %v1569
  %v1575 = vand.u32 2147483647, %v1570
  %v1576 = vand.u32 2147483647, %v1571
  %v1577 = vand.u32 2147483647, %v1572
  %v1578 = vand.u32 2147483647, %v1573
  %v1579 = vmul.f32 %v1574, 0.3275911
  %v1580 = vmul.f32 %v1575, 0.3275911
  %v1581 = vmul.f32 %v1576, 0.3275911
  %v1582 = vmul.f32 %v1577, 0.3275911
  %v1583 = vmul.f32 %v1578, 0.3275911
  %v1584 = vadd.f32 %v1579, 1.0
  %v1585 = vadd.f32 %v1580, 1.0
  %v1586 = vadd.f32 %v1581, 1.0
  %v1587 = vadd.f32 %v1582, 1.0
  %v1588 = vadd.f32 %v1583, 1.0
  %v1589 = vrcp.pop %v1584
  %v1590 = vmul.f32 1.0, %v1589
  %v1591 = vrcp.pop %v1585
  %v1592 = vmul.f32 1.0, %v1591
  %v1593 = vrcp.pop %v1586
  %v1594 = vmul.f32 1.0, %v1593
  %v1595 = vrcp.pop %v1587
  %v1596 = vmul.f32 1.0, %v1595
  %v1597 = vrcp.pop %v1588
  %v1598 = vmul.f32 1.0, %v1597
  %v1599 = vmul.f32 %v1590, 1.0614054
  %v1600 = vmul.f32 %v1592, 1.0614054
  %v1601 = vmul.f32 %v1594, 1.0614054
  %v1602 = vmul.f32 %v1596, 1.0614054
  %v1603 = vmul.f32 %v1598, 1.0614054
  %v1604 = vadd.f32 %v1599, -1.4531521
  %v1605 = vadd.f32 %v1600, -1.4531521
  %v1606 = vadd.f32 %v1601, -1.4531521
  %v1607 = vadd.f32 %v1602, -1.4531521
  %v1608 = vadd.f32 %v1603, -1.4531521
  %v1609 = vmul.f32 %v1604, %v1590
  %v1610 = vmul.f32 %v1605, %v1592
  %v1611 = vmul.f32 %v1606, %v1594
  %v1612 = vmul.f32 %v1607, %v1596
  %v1613 = vmul.f32 %v1608, %v1598
  %v1614 = vadd.f32 %v1609, 1.4214138
  %v1615 = vadd.f32 %v1610, 1.4214138
  %v1616 = vadd.f32 %v1611, 1.4214138
  %v1617 = vadd.f32 %v1612, 1.4214138
  %v1618 = vadd.f32 %v1613, 1.4214138
  %v1619 = vmul.f32 %v1614, %v1590
  %v1620 = vmul.f32 %v1615, %v1592
  %v1621 = vmul.f32 %v1616, %v1594
  %v1622 = vmul.f32 %v1617, %v1596
  %v1623 = vmul.f32 %v1618, %v1598
  %v1624 = vadd.f32 %v1619, -0.28449672
  %v1625 = vadd.f32 %v1620, -0.28449672
  %v1626 = vadd.f32 %v1621, -0.28449672
  %v1627 = vadd.f32 %v1622, -0.28449672
  %v1628 = vadd.f32 %v1623, -0.28449672
  %v1629 = vmul.f32 %v1624, %v1590
  %v1630 = vmul.f32 %v1625, %v1592
  %v1631 = vmul.f32 %v1626, %v1594
  %v1632 = vmul.f32 %v1627, %v1596
  %v1633 = vmul.f32 %v1628, %v1598
  %v1634 = vadd.f32 %v1629, 0.2548296
  %v1635 = vadd.f32 %v1630, 0.2548296
  %v1636 = vadd.f32 %v1631, 0.2548296
  %v1637 = vadd.f32 %v1632, 0.2548296
  %v1638 = vadd.f32 %v1633, 0.2548296
  %v1639 = vmul.f32 %v1634, %v1590
  %v1640 = vmul.f32 %v1635, %v1592
  %v1641 = vmul.f32 %v1636, %v1594
  %v1642 = vmul.f32 %v1637, %v1596
  %v1643 = vmul.f32 %v1638, %v1598
  %v1644 = vsub.f32 0.0, %v1574
  %v1645 = vsub.f32 0.0, %v1575
  %v1646 = vsub.f32 0.0, %v1576
  %v1647 = vsub.f32 0.0, %v1577
  %v1648 = vsub.f32 0.0, %v1578
  %v1649 = vmul.f32 %v1644, %v1574
  %v1650 = vmul.f32 %v1645, %v1575
  %v1651 = vmul.f32 %v1646, %v1576
  %v1652 = vmul.f32 %v1647, %v1577
  %v1653 = vmul.f32 %v1648, %v1578
  %v1654 = vmul.f32 %v1649, 1.442695
  %v1655 = vpow.pop %v1654
  %v1656 = vmul.f32 %v1650, 1.442695
  %v1657 = vpow.pop %v1656
  %v1658 = vmul.f32 %v1651, 1.442695
  %v1659 = vpow.pop %v1658
  %v1660 = vmul.f32 %v1652, 1.442695
  %v1661 = vpow.pop %v1660
  %v1662 = vmul.f32 %v1653, 1.442695
  %v1663 = vpow.pop %v1662
  %v1664 = vmul.f32 %v1639, %v1655
  %v1665 = vmul.f32 %v1640, %v1657
  %v1666 = vmul.f32 %v1641, %v1659
  %v1667 = vmul.f32 %v1642, %v1661
  %v1668 = vmul.f32 %v1643, %v1663
  %v1669 = vsub.f32 1.0, %v1664
  %v1670 = vsub.f32 1.0, %v1665
  %v1671 = vsub.f32 1.0, %v1666
  %v1672 = vsub.f32 1.0, %v1667
  %v1673 = vsub.f32 1.0, %v1668
  %vm1674 = vcmp.lt.f32.partialorder %v1569, 0.0
  %vm1675 = vcmp.lt.f32.partialorder %v1570, 0.0
  %vm1676 = vcmp.lt.f32.partialorder %v1571, 0.0
  %vm1677 = vcmp.lt.f32.partialorder %v1572, 0.0
  %vm1678 = vcmp.lt.f32.partialorder %v1573, 0.0
  %v1679 = vsub.f32 0.0, %v1669
  %v1680 = vsub.f32 0.0, %v1670
  %v1681 = vsub.f32 0.0, %v1671
  %v1682 = vsub.f32 0.0, %v1672
  %v1683 = vsub.f32 0.0, %v1673
  %v1684 = vsel %vm1674, %v1679, %v1669
  %v1685 = vsel %vm1675, %v1680, %v1670
  %v1686 = vsel %vm1676, %v1681, %v1671
  %v1687 = vsel %vm1677, %v1682, %v1672
  %v1688 = vsel %vm1678, %v1683, %v1673
  %v1689 = vadd.f32 %v1684, 1.0
  %v1690 = vadd.f32 %v1685, 1.0
  %v1691 = vadd.f32 %v1686, 1.0
  %v1692 = vadd.f32 %v1687, 1.0
  %v1693 = vadd.f32 %v1688, 1.0
  %v1694 = vmul.f32 %v1564, %v1689
  %v1695 = vmul.f32 %v1565, %v1690
  %v1696 = vmul.f32 %v1566, %v1691
  %v1697 = vmul.f32 %v1567, %v1692
  %v1698 = vmul.f32 %v1568, %v1693
  %v1700 = vsel %vm1008, %v69, 0
  %v1703 = vsel %vm1008, %v70, 0
  %v1706 = vsel %vm1008, %v71, 0
  %v1709 = vsel %vm1008, %v72, 0
  %v1712 = vsel %vm1008, %v73, 0
  %v1715 = vsel %vm1012, %v1698, 0
  %1717 = vmatprep.subr.mxu0 0.0
  %1718 = vmatpush1.msra.mxu0 %v1694
  %1719 = vmatprep.subr.mxu0 0.0
  %1720 = vmatpush1.msra.mxu0 %v1695
  %1721 = vmatprep.subr.mxu0 0.0
  %1722 = vmatpush1.msra.mxu0 %v1696
  %1723 = vmatprep.subr.mxu0 0.0
  %1724 = vmatpush1.msra.mxu0 %v1697
  %1725 = vmatprep.subr.mxu0 0.0
  %1726 = vmatpush1.msra.mxu0 %v1715
  %1727 = vmatprep.subr.mxu0 0.0
  %1728 = vmatpush1.msra.mxu0 0.0
  %1729 = vmatprep.subr.mxu0 0.0
  %1730 = vmatpush1.msra.mxu0 0.0
  %1731 = vmatprep.subr.mxu0 0.0
  %1732 = vmatpush1.msra.mxu0 0.0
  %1733 = vmatprep.subr.mxu0 0.0
  %1734 = vmatpush1.msra.mxu0 0.0
  %1735 = vmatprep.subr.mxu0 0.0
  %1736 = vmatpush1.msra.mxu0 0.0
  %1737 = vmatprep.subr.mxu0 0.0
  %1738 = vmatpush1.msra.mxu0 0.0
  %1739 = vmatprep.subr.mxu0 0.0
  %1740 = vmatpush1.msra.mxu0 0.0
  %1741 = vmatprep.subr.mxu0 0.0
  %1742 = vmatpush1.msra.mxu0 0.0
  %1743 = vmatprep.subr.mxu0 0.0
  %1744 = vmatpush1.msra.mxu0 0.0
  %1745 = vmatprep.subr.mxu0 0.0
  %1746 = vmatpush1.msra.mxu0 0.0
  %1747 = vmatprep.subr.mxu0 0.0
  %1748 = vmatpush1.msra.mxu0 0.0
  %1749 = vmatprep.subr.mxu0 0.0
  %1750 = vmatpush1.msra.mxu0 0.0
  %1751 = vmatprep.subr.mxu0 0.0
  %1752 = vmatpush1.msra.mxu0 0.0
  %1753 = vmatprep.subr.mxu0 0.0
  %1754 = vmatpush1.msra.mxu0 0.0
  %1755 = vmatprep.subr.mxu0 0.0
  %1756 = vmatpush1.msra.mxu0 0.0
  %1757 = vmatprep.subr.mxu0 0.0
  %1758 = vmatpush1.msra.mxu0 0.0
  %1759 = vmatprep.subr.mxu0 0.0
  %1760 = vmatpush1.msra.mxu0 0.0
  %1761 = vmatprep.subr.mxu0 0.0
  %1762 = vmatpush1.msra.mxu0 0.0
  %1763 = vmatprep.subr.mxu0 0.0
  %1764 = vmatpush1.msra.mxu0 0.0
  %1765 = vmatprep.subr.mxu0 0.0
  %1766 = vmatpush1.msra.mxu0 0.0
  %1767 = vmatprep.subr.mxu0 0.0
  %1768 = vmatpush1.msra.mxu0 0.0
  %1769 = vmatprep.subr.mxu0 0.0
  %1770 = vmatpush1.msra.mxu0 0.0
  %1771 = vmatprep.subr.mxu0 0.0
  %1772 = vmatpush1.msra.mxu0 0.0
  %1773 = vmatprep.subr.mxu0 0.0
  %1774 = vmatpush1.msra.mxu0 0.0
  %1775 = vmatprep.subr.mxu0 0.0
  %1776 = vmatpush1.msra.mxu0 0.0
  %1777 = vmatprep.subr.mxu0 0.0
  %1778 = vmatpush1.msra.mxu0 0.0
  %1779 = vmatprep.subr.mxu0 0.0
  %1780 = vmatpush1.msra.mxu0 0.0
  %1781 = vmatprep.mubr.f32.mxu0 0.0
  %1782 = vmatmul.mubr.f32.gmra.mrb[0].mxu0 %v1700
  %v1783 = vpop.f32.mrb[0].mxu0
  %v1784 = vadd.f32 0.0, %v1783
  %v1785 = vpop.f32.mrb[0].mxu0
  %1786 = vmatprep.mubr.f32.mxu0 0.0
  %1787 = vmatmul.mubr.f32.gmra.mrb[0].mxu0 %v1703
  %v1788 = vpop.f32.mrb[0].mxu0
  %v1789 = vadd.f32 0.0, %v1788
  %v1790 = vpop.f32.mrb[0].mxu0
  %1791 = vmatprep.mubr.f32.mxu0 0.0
  %1792 = vmatmul.mubr.f32.gmra.mrb[0].mxu0 %v1706
  %v1793 = vpop.f32.mrb[0].mxu0
  %v1794 = vadd.f32 0.0, %v1793
  %v1795 = vpop.f32.mrb[0].mxu0
  %1796 = vmatprep.mubr.f32.mxu0 0.0
  %1797 = vmatmul.mubr.f32.gmra.mrb[0].mxu0 %v1709
  %v1798 = vpop.f32.mrb[0].mxu0
  %v1799 = vadd.f32 0.0, %v1798
  %v1800 = vpop.f32.mrb[0].mxu0
  %1801 = vmatprep.mubr.f32.mxu0 0.0
  %1802 = vmatmul.mubr.f32.gmra.mrb[0].mxu0 %v1712
  %v1803 = vpop.f32.mrb[0].mxu0
  %v1804 = vadd.f32 0.0, %v1803
  %v1805 = vpop.f32.mrb[0].mxu0
  %1806 = vdwg.mxu0
  %s1807 = scalar_lea.vmem %s6, 384
  %v1808 = vld [vmem:[%s1807] sm:$0xff]
  %v1809 = vld [vmem:[%s1807 + $0x8] sm:$0xff]
  %v1810 = vld [vmem:[%s1807 + $0x10] sm:$0xff]
  %v1811 = vld [vmem:[%s1807 + $0x18] sm:$0xff]
  %v1812 = vld [vmem:[%s1807 + $0x20] sm:$0xff]
  %v1813 = vld [vmem:[%s1807 + $0x28] sm:$0xff]
  %v1814 = vld [vmem:[%s1807 + $0x30] sm:$0xff]
  %v1815 = vld [vmem:[%s1807 + $0x38] sm:$0xff]
  %v1816 = vld [vmem:[%s1807 + $0x40] sm:$0xff]
  %v1817 = vld [vmem:[%s1807 + $0x48] sm:$0xff]
  %v1818 = vld [vmem:[%s1807 + $0x50] sm:$0xff]
  %v1819 = vld [vmem:[%s1807 + $0x58] sm:$0xff]
  %v1820 = vld [vmem:[%s1807 + $0x60] sm:$0xff]
  %v1821 = vld [vmem:[%s1807 + $0x68] sm:$0xff]
  %v1822 = vld [vmem:[%s1807 + $0x70] sm:$0xff]
  %v1823 = vld [vmem:[%s1807 + $0x78] sm:$0xff]
  %s1824 = scalar_lea.vmem %s6, 512
  %v1825 = vld [vmem:[%s1824] sm:$0xff]
  %v1826 = vld [vmem:[%s1824 + $0x8] sm:$0xff]
  %v1827 = vld [vmem:[%s1824 + $0x10] sm:$0xff]
  %v1828 = vld [vmem:[%s1824 + $0x18] sm:$0xff]
  %v1829 = vld [vmem:[%s1824 + $0x20] sm:$0xff]
  %v1830 = vld [vmem:[%s1824 + $0x28] sm:$0xff]
  %v1831 = vld [vmem:[%s1824 + $0x30] sm:$0xff]
  %v1832 = vld [vmem:[%s1824 + $0x38] sm:$0xff]
  %v1833 = vld [vmem:[%s1824 + $0x40] sm:$0xff]
  %v1834 = vld [vmem:[%s1824 + $0x48] sm:$0xff]
  %v1835 = vld [vmem:[%s1824 + $0x50] sm:$0xff]
  %v1836 = vld [vmem:[%s1824 + $0x58] sm:$0xff]
  %v1837 = vld [vmem:[%s1824 + $0x60] sm:$0xff]
  %v1838 = vld [vmem:[%s1824 + $0x68] sm:$0xff]
  %v1839 = vld [vmem:[%s1824 + $0x70] sm:$0xff]
  %v1840 = vld [vmem:[%s1824 + $0x78] sm:$0xff]
  %v1846 = vrot.slane %v1784, 1
  %v1847 = vrot.slane %v1789, 1
  %v1848 = vsel %vm676, %v1846, %v1847
  %v1849 = vrot.slane %v1794, 1
  %v1850 = vsel %vm676, %v1847, %v1849
  %v1851 = vrot.slane %v1799, 1
  %v1852 = vsel %vm676, %v1849, %v1851
  %v1853 = vrot.slane %v1804, 1
  %v1854 = vsel %vm676, %v1851, %v1853
  %1860 = vmatprep.subr.mxu0 0.0
  %1861 = vmatpush1.msra.mxu0 %v1825
  %1862 = vmatprep.subr.mxu0 0.0
  %1863 = vmatpush1.msra.mxu0 %v1826
  %1864 = vmatprep.subr.mxu0 0.0
  %1865 = vmatpush1.msra.mxu0 %v1827
  %1866 = vmatprep.subr.mxu0 0.0
  %1867 = vmatpush1.msra.mxu0 %v1828
  %1868 = vmatprep.subr.mxu0 0.0
  %1869 = vmatpush1.msra.mxu0 %v1829
  %1870 = vmatprep.subr.mxu0 0.0
  %1871 = vmatpush1.msra.mxu0 %v1830
  %1872 = vmatprep.subr.mxu0 0.0
  %1873 = vmatpush1.msra.mxu0 %v1831
  %1874 = vmatprep.subr.mxu0 0.0
  %1875 = vmatpush1.msra.mxu0 %v1832
  %1876 = vmatprep.subr.mxu0 0.0
  %1877 = vmatpush1.msra.mxu0 %v1833
  %1878 = vmatprep.subr.mxu0 0.0
  %1879 = vmatpush1.msra.mxu0 %v1834
  %1880 = vmatprep.subr.mxu0 0.0
  %1881 = vmatpush1.msra.mxu0 %v1835
  %1882 = vmatprep.subr.mxu0 0.0
  %1883 = vmatpush1.msra.mxu0 %v1836
  %1884 = vmatprep.subr.mxu0 0.0
  %1885 = vmatpush1.msra.mxu0 %v1837
  %1886 = vmatprep.subr.mxu0 0.0
  %1887 = vmatpush1.msra.mxu0 %v1838
  %1888 = vmatprep.subr.mxu0 0.0
  %1889 = vmatpush1.msra.mxu0 %v1839
  %1890 = vmatprep.subr.mxu0 0.0
  %1891 = vmatpush1.msra.mxu0 %v1840
  %1892 = vmatprep.subr.mxu0 0.0
  %1893 = vmatpush1.msra.mxu0 0.0
  %1894 = vmatprep.subr.mxu0 0.0
  %1895 = vmatpush1.msra.mxu0 0.0
  %1896 = vmatprep.subr.mxu0 0.0
  %1897 = vmatpush1.msra.mxu0 0.0
  %1898 = vmatprep.subr.mxu0 0.0
  %1899 = vmatpush1.msra.mxu0 0.0
  %1900 = vmatprep.subr.mxu0 0.0
  %1901 = vmatpush1.msra.mxu0 0.0
  %1902 = vmatprep.subr.mxu0 0.0
  %1903 = vmatpush1.msra.mxu0 0.0
  %1904 = vmatprep.subr.mxu0 0.0
  %1905 = vmatpush1.msra.mxu0 0.0
  %1906 = vmatprep.subr.mxu0 0.0
  %1907 = vmatpush1.msra.mxu0 0.0
  %1908 = vmatprep.subr.mxu0 0.0
  %1909 = vmatpush1.msra.mxu0 0.0
  %1910 = vmatprep.subr.mxu0 0.0
  %1911 = vmatpush1.msra.mxu0 0.0
  %1912 = vmatprep.subr.mxu0 0.0
  %1913 = vmatpush1.msra.mxu0 0.0
  %1914 = vmatprep.subr.mxu0 0.0
  %1915 = vmatpush1.msra.mxu0 0.0
  %1916 = vmatprep.subr.mxu0 0.0
  %1917 = vmatpush1.msra.mxu0 0.0
  %1918 = vmatprep.subr.mxu0 0.0
  %1919 = vmatpush1.msra.mxu0 0.0
  %1920 = vmatprep.subr.mxu0 0.0
  %1921 = vmatpush1.msra.mxu0 0.0
  %1922 = vmatprep.subr.mxu0 0.0
  %1923 = vmatpush1.msra.mxu0 0.0
  %1924 = vmatprep.mubr.f32.mxu0 0.0
  %1925 = vmatmul.mubr.f32.gmra.mrb[0].mxu0 %v1848
  %v1926 = vpop.f32.mrb[0].mxu0
  %v1927 = vadd.f32 0.0, %v1926
  %v1928 = vpop.f32.mrb[0].mxu0
  %1929 = vmatprep.mubr.f32.mxu0 0.0
  %1930 = vmatmul.mubr.f32.gmra.mrb[0].mxu0 %v1850
  %v1931 = vpop.f32.mrb[0].mxu0
  %v1932 = vadd.f32 0.0, %v1931
  %v1933 = vpop.f32.mrb[0].mxu0
  %1934 = vmatprep.mubr.f32.mxu0 0.0
  %1935 = vmatmul.mubr.f32.gmra.mrb[0].mxu0 %v1852
  %v1936 = vpop.f32.mrb[0].mxu0
  %v1937 = vadd.f32 0.0, %v1936
  %v1938 = vpop.f32.mrb[0].mxu0
  %1939 = vmatprep.mubr.f32.mxu0 0.0
  %1940 = vmatmul.mubr.f32.gmra.mrb[0].mxu0 %v1854
  %v1941 = vpop.f32.mrb[0].mxu0
  %v1942 = vadd.f32 0.0, %v1941
  %v1943 = vpop.f32.mrb[0].mxu0
  %1944 = vmatprep.mubr.f32.mxu0 0.0
  %1945 = vmatmul.mubr.f32.gmra.mrb[0].mxu0 %v1853
  %v1946 = vpop.f32.mrb[0].mxu0
  %v1947 = vadd.f32 0.0, %v1946
  %v1948 = vpop.f32.mrb[0].mxu0
  %1949 = vdwg.mxu0
  %1950 = vmatprep.subr.mxu0 0.0
  %1951 = vmatpush1.msra.mxu0 %v1808
  %1952 = vmatprep.subr.mxu0 0.0
  %1953 = vmatpush1.msra.mxu0 %v1809
  %1954 = vmatprep.subr.mxu0 0.0
  %1955 = vmatpush1.msra.mxu0 %v1810
  %1956 = vmatprep.subr.mxu0 0.0
  %1957 = vmatpush1.msra.mxu0 %v1811
  %1958 = vmatprep.subr.mxu0 0.0
  %1959 = vmatpush1.msra.mxu0 %v1812
  %1960 = vmatprep.subr.mxu0 0.0
  %1961 = vmatpush1.msra.mxu0 %v1813
  %1962 = vmatprep.subr.mxu0 0.0
  %1963 = vmatpush1.msra.mxu0 %v1814
  %1964 = vmatprep.subr.mxu0 0.0
  %1965 = vmatpush1.msra.mxu0 %v1815
  %1966 = vmatprep.subr.mxu0 0.0
  %1967 = vmatpush1.msra.mxu0 %v1816
  %1968 = vmatprep.subr.mxu0 0.0
  %1969 = vmatpush1.msra.mxu0 %v1817
  %1970 = vmatprep.subr.mxu0 0.0
  %1971 = vmatpush1.msra.mxu0 %v1818
  %1972 = vmatprep.subr.mxu0 0.0
  %1973 = vmatpush1.msra.mxu0 %v1819
  %1974 = vmatprep.subr.mxu0 0.0
  %1975 = vmatpush1.msra.mxu0 %v1820
  %1976 = vmatprep.subr.mxu0 0.0
  %1977 = vmatpush1.msra.mxu0 %v1821
  %1978 = vmatprep.subr.mxu0 0.0
  %1979 = vmatpush1.msra.mxu0 %v1822
  %1980 = vmatprep.subr.mxu0 0.0
  %1981 = vmatpush1.msra.mxu0 %v1823
  %1982 = vmatprep.subr.mxu0 0.0
  %1983 = vmatpush1.msra.mxu0 0.0
  %1984 = vmatprep.subr.mxu0 0.0
  %1985 = vmatpush1.msra.mxu0 0.0
  %1986 = vmatprep.subr.mxu0 0.0
  %1987 = vmatpush1.msra.mxu0 0.0
  %1988 = vmatprep.subr.mxu0 0.0
  %1989 = vmatpush1.msra.mxu0 0.0
  %1990 = vmatprep.subr.mxu0 0.0
  %1991 = vmatpush1.msra.mxu0 0.0
  %1992 = vmatprep.subr.mxu0 0.0
  %1993 = vmatpush1.msra.mxu0 0.0
  %1994 = vmatprep.subr.mxu0 0.0
  %1995 = vmatpush1.msra.mxu0 0.0
  %1996 = vmatprep.subr.mxu0 0.0
  %1997 = vmatpush1.msra.mxu0 0.0
  %1998 = vmatprep.subr.mxu0 0.0
  %1999 = vmatpush1.msra.mxu0 0.0
  %2000 = vmatprep.subr.mxu0 0.0
  %2001 = vmatpush1.msra.mxu0 0.0
  %2002 = vmatprep.subr.mxu0 0.0
  %2003 = vmatpush1.msra.mxu0 0.0
  %2004 = vmatprep.subr.mxu0 0.0
  %2005 = vmatpush1.msra.mxu0 0.0
  %2006 = vmatprep.subr.mxu0 0.0
  %2007 = vmatpush1.msra.mxu0 0.0
  %2008 = vmatprep.subr.mxu0 0.0
  %2009 = vmatpush1.msra.mxu0 0.0
  %2010 = vmatprep.subr.mxu0 0.0
  %2011 = vmatpush1.msra.mxu0 0.0
  %2012 = vmatprep.subr.mxu0 0.0
  %2013 = vmatpush1.msra.mxu0 0.0
  %2014 = vmatprep.mubr.f32.mxu0 0.0
  %2015 = vmatmul.mubr.f32.gmra.mrb[0].mxu0 %v1784
  %v2016 = vpop.f32.mrb[0].mxu0
  %v2017 = vadd.f32 %v1927, %v2016
  %v2018 = vpop.f32.mrb[0].mxu0
  %2019 = vmatprep.mubr.f32.mxu0 0.0
  %2020 = vmatmul.mubr.f32.gmra.mrb[0].mxu0 %v1789
  %v2021 = vpop.f32.mrb[0].mxu0
  %v2022 = vadd.f32 %v1932, %v2021
  %v2023 = vpop.f32.mrb[0].mxu0
  %2024 = vmatprep.mubr.f32.mxu0 0.0
  %2025 = vmatmul.mubr.f32.gmra.mrb[0].mxu0 %v1794
  %v2026 = vpop.f32.mrb[0].mxu0
  %v2027 = vadd.f32 %v1937, %v2026
  %v2028 = vpop.f32.mrb[0].mxu0
  %2029 = vmatprep.mubr.f32.mxu0 0.0
  %2030 = vmatmul.mubr.f32.gmra.mrb[0].mxu0 %v1799
  %v2031 = vpop.f32.mrb[0].mxu0
  %v2032 = vadd.f32 %v1942, %v2031
  %v2033 = vpop.f32.mrb[0].mxu0
  %2034 = vmatprep.mubr.f32.mxu0 0.0
  %2035 = vmatmul.mubr.f32.gmra.mrb[0].mxu0 %v1804
  %v2036 = vpop.f32.mrb[0].mxu0
  %v2037 = vadd.f32 %v1947, %v2036
  %v2038 = vpop.f32.mrb[0].mxu0
  %2039 = vdwg.mxu0
  %s2040 = scalar_lea.vmem %s6, 640
  %v2041 = vld [vmem:[%s2040] sm:$0xff]
  %v2042 = vld [vmem:[%s2040 + $0x8] sm:$0xff]
  %v2043 = vld [vmem:[%s2040 + $0x10] sm:$0xff]
  %v2044 = vld [vmem:[%s2040 + $0x18] sm:$0xff]
  %v2045 = vld [vmem:[%s2040 + $0x20] sm:$0xff]
  %v2046 = vld [vmem:[%s2040 + $0x28] sm:$0xff]
  %v2047 = vld [vmem:[%s2040 + $0x30] sm:$0xff]
  %v2048 = vld [vmem:[%s2040 + $0x38] sm:$0xff]
  %v2049 = vld [vmem:[%s2040 + $0x40] sm:$0xff]
  %v2050 = vld [vmem:[%s2040 + $0x48] sm:$0xff]
  %v2051 = vld [vmem:[%s2040 + $0x50] sm:$0xff]
  %v2052 = vld [vmem:[%s2040 + $0x58] sm:$0xff]
  %v2053 = vld [vmem:[%s2040 + $0x60] sm:$0xff]
  %v2054 = vld [vmem:[%s2040 + $0x68] sm:$0xff]
  %v2055 = vld [vmem:[%s2040 + $0x70] sm:$0xff]
  %v2056 = vld [vmem:[%s2040 + $0x78] sm:$0xff]
  %v2057 = vrot.slane %v1784, 2
  %v2058 = vrot.slane %v1789, 2
  %v2059 = vsel %vm888, %v2057, %v2058
  %v2060 = vrot.slane %v1794, 2
  %v2061 = vsel %vm888, %v2058, %v2060
  %v2062 = vrot.slane %v1799, 2
  %v2063 = vsel %vm888, %v2060, %v2062
  %v2064 = vrot.slane %v1804, 2
  %v2065 = vsel %vm888, %v2062, %v2064
  %2071 = vmatprep.subr.mxu0 0.0
  %2072 = vmatpush1.msra.mxu0 %v2041
  %2073 = vmatprep.subr.mxu0 0.0
  %2074 = vmatpush1.msra.mxu0 %v2042
  %2075 = vmatprep.subr.mxu0 0.0
  %2076 = vmatpush1.msra.mxu0 %v2043
  %2077 = vmatprep.subr.mxu0 0.0
  %2078 = vmatpush1.msra.mxu0 %v2044
  %2079 = vmatprep.subr.mxu0 0.0
  %2080 = vmatpush1.msra.mxu0 %v2045
  %2081 = vmatprep.subr.mxu0 0.0
  %2082 = vmatpush1.msra.mxu0 %v2046
  %2083 = vmatprep.subr.mxu0 0.0
  %2084 = vmatpush1.msra.mxu0 %v2047
  %2085 = vmatprep.subr.mxu0 0.0
  %2086 = vmatpush1.msra.mxu0 %v2048
  %2087 = vmatprep.subr.mxu0 0.0
  %2088 = vmatpush1.msra.mxu0 %v2049
  %2089 = vmatprep.subr.mxu0 0.0
  %2090 = vmatpush1.msra.mxu0 %v2050
  %2091 = vmatprep.subr.mxu0 0.0
  %2092 = vmatpush1.msra.mxu0 %v2051
  %2093 = vmatprep.subr.mxu0 0.0
  %2094 = vmatpush1.msra.mxu0 %v2052
  %2095 = vmatprep.subr.mxu0 0.0
  %2096 = vmatpush1.msra.mxu0 %v2053
  %2097 = vmatprep.subr.mxu0 0.0
  %2098 = vmatpush1.msra.mxu0 %v2054
  %2099 = vmatprep.subr.mxu0 0.0
  %2100 = vmatpush1.msra.mxu0 %v2055
  %2101 = vmatprep.subr.mxu0 0.0
  %2102 = vmatpush1.msra.mxu0 %v2056
  %2103 = vmatprep.subr.mxu0 0.0
  %2104 = vmatpush1.msra.mxu0 0.0
  %2105 = vmatprep.subr.mxu0 0.0
  %2106 = vmatpush1.msra.mxu0 0.0
  %2107 = vmatprep.subr.mxu0 0.0
  %2108 = vmatpush1.msra.mxu0 0.0
  %2109 = vmatprep.subr.mxu0 0.0
  %2110 = vmatpush1.msra.mxu0 0.0
  %2111 = vmatprep.subr.mxu0 0.0
  %2112 = vmatpush1.msra.mxu0 0.0
  %2113 = vmatprep.subr.mxu0 0.0
  %2114 = vmatpush1.msra.mxu0 0.0
  %2115 = vmatprep.subr.mxu0 0.0
  %2116 = vmatpush1.msra.mxu0 0.0
  %2117 = vmatprep.subr.mxu0 0.0
  %2118 = vmatpush1.msra.mxu0 0.0
  %2119 = vmatprep.subr.mxu0 0.0
  %2120 = vmatpush1.msra.mxu0 0.0
  %2121 = vmatprep.subr.mxu0 0.0
  %2122 = vmatpush1.msra.mxu0 0.0
  %2123 = vmatprep.subr.mxu0 0.0
  %2124 = vmatpush1.msra.mxu0 0.0
  %2125 = vmatprep.subr.mxu0 0.0
  %2126 = vmatpush1.msra.mxu0 0.0
  %2127 = vmatprep.subr.mxu0 0.0
  %2128 = vmatpush1.msra.mxu0 0.0
  %2129 = vmatprep.subr.mxu0 0.0
  %2130 = vmatpush1.msra.mxu0 0.0
  %2131 = vmatprep.subr.mxu0 0.0
  %2132 = vmatpush1.msra.mxu0 0.0
  %2133 = vmatprep.subr.mxu0 0.0
  %2134 = vmatpush1.msra.mxu0 0.0
  %2135 = vmatprep.mubr.f32.mxu0 0.0
  %2136 = vmatmul.mubr.f32.gmra.mrb[0].mxu0 %v2059
  %v2137 = vpop.f32.mrb[0].mxu0
  %v2138 = vadd.f32 0.0, %v2137
  %v2139 = vpop.f32.mrb[0].mxu0
  %2140 = vmatprep.mubr.f32.mxu0 0.0
  %2141 = vmatmul.mubr.f32.gmra.mrb[0].mxu0 %v2061
  %v2142 = vpop.f32.mrb[0].mxu0
  %v2143 = vadd.f32 0.0, %v2142
  %v2144 = vpop.f32.mrb[0].mxu0
  %2145 = vmatprep.mubr.f32.mxu0 0.0
  %2146 = vmatmul.mubr.f32.gmra.mrb[0].mxu0 %v2063
  %v2147 = vpop.f32.mrb[0].mxu0
  %v2148 = vadd.f32 0.0, %v2147
  %v2149 = vpop.f32.mrb[0].mxu0
  %2150 = vmatprep.mubr.f32.mxu0 0.0
  %2151 = vmatmul.mubr.f32.gmra.mrb[0].mxu0 %v2065
  %v2152 = vpop.f32.mrb[0].mxu0
  %v2153 = vadd.f32 0.0, %v2152
  %v2154 = vpop.f32.mrb[0].mxu0
  %2155 = vmatprep.mubr.f32.mxu0 0.0
  %2156 = vmatmul.mubr.f32.gmra.mrb[0].mxu0 %v2064
  %v2157 = vpop.f32.mrb[0].mxu0
  %v2158 = vadd.f32 0.0, %v2157
  %v2159 = vpop.f32.mrb[0].mxu0
  %2160 = vdwg.mxu0
  %v2161 = vadd.f32 %v2017, %v2138
  %v2162 = vadd.f32 %v2022, %v2143
  %v2163 = vadd.f32 %v2027, %v2148
  %v2164 = vadd.f32 %v2032, %v2153
  %v2165 = vadd.f32 %v2037, %v2158
  %v2166 = vld [vmem:[%s7 + $0x1] sm:$0x1]
  %v2167 = vlaneseq
  %v2168 = vshrl.u32 %v2167, 7
  %v2169 = vsub.s32 0, %v2168
  %v2170 = vrot.slane %v2166, %v2169
  %v2171 = vadd.f32 %v2161, %v2170
  %v2172 = vadd.f32 %v2162, %v2170
  %v2173 = vadd.f32 %v2163, %v2170
  %v2174 = vadd.f32 %v2164, %v2170
  %v2175 = vadd.f32 %v2165, %v2170
  %v2177 = vsel %vm1012, %v2175, 0
  %2179 = vmatprep.subr.mxu0 0.0
  %2180 = vmatpush1.msra.mxu0 %v2171
  %2181 = vmatprep.subr.mxu0 0.0
  %2182 = vmatpush1.msra.mxu0 %v2172
  %2183 = vmatprep.subr.mxu0 0.0
  %2184 = vmatpush1.msra.mxu0 %v2173
  %2185 = vmatprep.subr.mxu0 0.0
  %2186 = vmatpush1.msra.mxu0 %v2174
  %2187 = vmatprep.subr.mxu0 0.0
  %2188 = vmatpush1.msra.mxu0 %v2177
  %2189 = vmatprep.subr.mxu0 0.0
  %2190 = vmatpush1.msra.mxu0 0.0
  %2191 = vmatprep.subr.mxu0 0.0
  %2192 = vmatpush1.msra.mxu0 0.0
  %2193 = vmatprep.subr.mxu0 0.0
  %2194 = vmatpush1.msra.mxu0 0.0
  %2195 = vmatprep.subr.mxu0 0.0
  %2196 = vmatpush1.msra.mxu0 0.0
  %2197 = vmatprep.subr.mxu0 0.0
  %2198 = vmatpush1.msra.mxu0 0.0
  %2199 = vmatprep.subr.mxu0 0.0
  %2200 = vmatpush1.msra.mxu0 0.0
  %2201 = vmatprep.subr.mxu0 0.0
  %2202 = vmatpush1.msra.mxu0 0.0
  %2203 = vmatprep.subr.mxu0 0.0
  %2204 = vmatpush1.msra.mxu0 0.0
  %2205 = vmatprep.subr.mxu0 0.0
  %2206 = vmatpush1.msra.mxu0 0.0
  %2207 = vmatprep.subr.mxu0 0.0
  %2208 = vmatpush1.msra.mxu0 0.0
  %2209 = vmatprep.subr.mxu0 0.0
  %2210 = vmatpush1.msra.mxu0 0.0
  %2211 = vmatprep.subr.mxu0 0.0
  %2212 = vmatpush1.msra.mxu0 0.0
  %2213 = vmatprep.subr.mxu0 0.0
  %2214 = vmatpush1.msra.mxu0 0.0
  %2215 = vmatprep.subr.mxu0 0.0
  %2216 = vmatpush1.msra.mxu0 0.0
  %2217 = vmatprep.subr.mxu0 0.0
  %2218 = vmatpush1.msra.mxu0 0.0
  %2219 = vmatprep.subr.mxu0 0.0
  %2220 = vmatpush1.msra.mxu0 0.0
  %2221 = vmatprep.subr.mxu0 0.0
  %2222 = vmatpush1.msra.mxu0 0.0
  %2223 = vmatprep.subr.mxu0 0.0
  %2224 = vmatpush1.msra.mxu0 0.0
  %2225 = vmatprep.subr.mxu0 0.0
  %2226 = vmatpush1.msra.mxu0 0.0
  %2227 = vmatprep.subr.mxu0 0.0
  %2228 = vmatpush1.msra.mxu0 0.0
  %2229 = vmatprep.subr.mxu0 0.0
  %2230 = vmatpush1.msra.mxu0 0.0
  %2231 = vmatprep.subr.mxu0 0.0
  %2232 = vmatpush1.msra.mxu0 0.0
  %2233 = vmatprep.subr.mxu0 0.0
  %2234 = vmatpush1.msra.mxu0 0.0
  %2235 = vmatprep.subr.mxu0 0.0
  %2236 = vmatpush1.msra.mxu0 0.0
  %2237 = vmatprep.subr.mxu0 0.0
  %2238 = vmatpush1.msra.mxu0 0.0
  %2239 = vmatprep.subr.mxu0 0.0
  %2240 = vmatpush1.msra.mxu0 0.0
  %2241 = vmatprep.subr.mxu0 0.0
  %2242 = vmatpush1.msra.mxu0 0.0
  %2243 = vmatprep.mubr.f32.mxu0 0.0
  %2244 = vmatmul.mubr.f32.gmra.mrb[0].mxu0 %v1010
  %v2245 = vpop.f32.mrb[0].mxu0
  %v2246 = vadd.f32 0.0, %v2245
  %v2247 = vpop.f32.mrb[0].mxu0
  %2248 = vdwg.mxu0
  %2249 = vmatprep.subr.mxu0 0.0
  %2250 = vmatpush1.msra.mxu0 %v51
  %2251 = vmatprep.subr.mxu0 0.0
  %2252 = vmatpush1.msra.mxu0 %v52
  %2253 = vmatprep.subr.mxu0 0.0
  %2254 = vmatpush1.msra.mxu0 %v53
  %2255 = vmatprep.subr.mxu0 0.0
  %2256 = vmatpush1.msra.mxu0 %v54
  %2257 = vmatprep.subr.mxu0 0.0
  %2258 = vmatpush1.msra.mxu0 %v55
  %2259 = vmatprep.subr.mxu0 0.0
  %2260 = vmatpush1.msra.mxu0 %v56
  %2261 = vmatprep.subr.mxu0 0.0
  %2262 = vmatpush1.msra.mxu0 %v57
  %2263 = vmatprep.subr.mxu0 0.0
  %2264 = vmatpush1.msra.mxu0 %v58
  %2265 = vmatprep.subr.mxu0 0.0
  %2266 = vmatpush1.msra.mxu0 %v59
  %2267 = vmatprep.subr.mxu0 0.0
  %2268 = vmatpush1.msra.mxu0 %v60
  %2269 = vmatprep.subr.mxu0 0.0
  %2270 = vmatpush1.msra.mxu0 %v61
  %2271 = vmatprep.subr.mxu0 0.0
  %2272 = vmatpush1.msra.mxu0 %v62
  %2273 = vmatprep.subr.mxu0 0.0
  %2274 = vmatpush1.msra.mxu0 %v63
  %2275 = vmatprep.subr.mxu0 0.0
  %2276 = vmatpush1.msra.mxu0 %v64
  %2277 = vmatprep.subr.mxu0 0.0
  %2278 = vmatpush1.msra.mxu0 %v65
  %2279 = vmatprep.subr.mxu0 0.0
  %2280 = vmatpush1.msra.mxu0 %v66
  %2281 = vmatprep.subr.mxu0 0.0
  %2282 = vmatpush1.msra.mxu0 0.0
  %2283 = vmatprep.subr.mxu0 0.0
  %2284 = vmatpush1.msra.mxu0 0.0
  %2285 = vmatprep.subr.mxu0 0.0
  %2286 = vmatpush1.msra.mxu0 0.0
  %2287 = vmatprep.subr.mxu0 0.0
  %2288 = vmatpush1.msra.mxu0 0.0
  %2289 = vmatprep.subr.mxu0 0.0
  %2290 = vmatpush1.msra.mxu0 0.0
  %2291 = vmatprep.subr.mxu0 0.0
  %2292 = vmatpush1.msra.mxu0 0.0
  %2293 = vmatprep.subr.mxu0 0.0
  %2294 = vmatpush1.msra.mxu0 0.0
  %2295 = vmatprep.subr.mxu0 0.0
  %2296 = vmatpush1.msra.mxu0 0.0
  %2297 = vmatprep.subr.mxu0 0.0
  %2298 = vmatpush1.msra.mxu0 0.0
  %2299 = vmatprep.subr.mxu0 0.0
  %2300 = vmatpush1.msra.mxu0 0.0
  %2301 = vmatprep.subr.mxu0 0.0
  %2302 = vmatpush1.msra.mxu0 0.0
  %2303 = vmatprep.subr.mxu0 0.0
  %2304 = vmatpush1.msra.mxu0 0.0
  %2305 = vmatprep.subr.mxu0 0.0
  %2306 = vmatpush1.msra.mxu0 0.0
  %2307 = vmatprep.subr.mxu0 0.0
  %2308 = vmatpush1.msra.mxu0 0.0
  %2309 = vmatprep.subr.mxu0 0.0
  %2310 = vmatpush1.msra.mxu0 0.0
  %2311 = vmatprep.subr.mxu0 0.0
  %2312 = vmatpush1.msra.mxu0 0.0
  %2313 = vmatprep.mubr.f32.mxu0 0.0
  %2314 = vmatmul.mubr.f32.gmra.mrb[0].mxu0 %v2246
  %v2315 = vpop.f32.mrb[0].mxu0
  %v2316 = vadd.f32 0.0, %v2315
  %v2317 = vpop.f32.mrb[0].mxu0
  %2318 = vdwg.mxu0
  %v2319 = vmul.f32 %v2316, 0.001953125
  %v2321 = vsel %vm1157, %v2319, 0
  %2323 = vmatprep.subr.mxu0 0.0
  %2324 = vmatpush1.msra.mxu0 %v1163
  %2325 = vmatprep.subr.mxu0 0.0
  %2326 = vmatpush1.msra.mxu0 0.0
  %2327 = vmatprep.subr.mxu0 0.0
  %2328 = vmatpush1.msra.mxu0 0.0
  %2329 = vmatprep.subr.mxu0 0.0
  %2330 = vmatpush1.msra.mxu0 0.0
  %2331 = vmatprep.subr.mxu0 0.0
  %2332 = vmatpush1.msra.mxu0 0.0
  %2333 = vmatprep.subr.mxu0 0.0
  %2334 = vmatpush1.msra.mxu0 0.0
  %2335 = vmatprep.subr.mxu0 0.0
  %2336 = vmatpush1.msra.mxu0 0.0
  %2337 = vmatprep.subr.mxu0 0.0
  %2338 = vmatpush1.msra.mxu0 0.0
  %2339 = vmatprep.subr.mxu0 0.0
  %2340 = vmatpush1.msra.mxu0 0.0
  %2341 = vmatprep.subr.mxu0 0.0
  %2342 = vmatpush1.msra.mxu0 0.0
  %2343 = vmatprep.subr.mxu0 0.0
  %2344 = vmatpush1.msra.mxu0 0.0
  %2345 = vmatprep.subr.mxu0 0.0
  %2346 = vmatpush1.msra.mxu0 0.0
  %2347 = vmatprep.subr.mxu0 0.0
  %2348 = vmatpush1.msra.mxu0 0.0
  %2349 = vmatprep.subr.mxu0 0.0
  %2350 = vmatpush1.msra.mxu0 0.0
  %2351 = vmatprep.subr.mxu0 0.0
  %2352 = vmatpush1.msra.mxu0 0.0
  %2353 = vmatprep.subr.mxu0 0.0
  %2354 = vmatpush1.msra.mxu0 0.0
  %2355 = vmatprep.subr.mxu0 0.0
  %2356 = vmatpush1.msra.mxu0 0.0
  %2357 = vmatprep.subr.mxu0 0.0
  %2358 = vmatpush1.msra.mxu0 0.0
  %2359 = vmatprep.subr.mxu0 0.0
  %2360 = vmatpush1.msra.mxu0 0.0
  %2361 = vmatprep.subr.mxu0 0.0
  %2362 = vmatpush1.msra.mxu0 0.0
  %2363 = vmatprep.subr.mxu0 0.0
  %2364 = vmatpush1.msra.mxu0 0.0
  %2365 = vmatprep.subr.mxu0 0.0
  %2366 = vmatpush1.msra.mxu0 0.0
  %2367 = vmatprep.subr.mxu0 0.0
  %2368 = vmatpush1.msra.mxu0 0.0
  %2369 = vmatprep.subr.mxu0 0.0
  %2370 = vmatpush1.msra.mxu0 0.0
  %2371 = vmatprep.subr.mxu0 0.0
  %2372 = vmatpush1.msra.mxu0 0.0
  %2373 = vmatprep.subr.mxu0 0.0
  %2374 = vmatpush1.msra.mxu0 0.0
  %2375 = vmatprep.subr.mxu0 0.0
  %2376 = vmatpush1.msra.mxu0 0.0
  %2377 = vmatprep.subr.mxu0 0.0
  %2378 = vmatpush1.msra.mxu0 0.0
  %2379 = vmatprep.subr.mxu0 0.0
  %2380 = vmatpush1.msra.mxu0 0.0
  %2381 = vmatprep.subr.mxu0 0.0
  %2382 = vmatpush1.msra.mxu0 0.0
  %2383 = vmatprep.subr.mxu0 0.0
  %2384 = vmatpush1.msra.mxu0 0.0
  %2385 = vmatprep.subr.mxu0 0.0
  %2386 = vmatpush1.msra.mxu0 0.0
  %2387 = vmatprep.mubr.f32.mxu0 0.0
  %2388 = vmatmul.mubr.f32.gmra.mrb[0].mxu0 %v2321
  %v2389 = vpop.f32.mrb[0].mxu0
  %v2390 = vadd.f32 0.0, %v2389
  %v2391 = vpop.f32.mrb[0].mxu0
  %2392 = vdwg.mxu0
  %v2393 = vlaneseq
  %v2394 = vshrl.u32 %v2393, 7
  %v2395 = vsub.s32 0, %v2394
  %v2396 = vrot.slane %v2390, %v2395
  %v2397 = vsub.f32 %v2171, %v2396
  %v2398 = vsub.f32 %v2172, %v2396
  %v2399 = vsub.f32 %v2173, %v2396
  %v2400 = vsub.f32 %v2174, %v2396
  %v2401 = vsub.f32 %v2175, %v2396
  %v2402 = vmul.f32 %v2397, %v2397
  %v2403 = vmul.f32 %v2398, %v2398
  %v2404 = vmul.f32 %v2399, %v2399
  %v2405 = vmul.f32 %v2400, %v2400
  %v2406 = vmul.f32 %v2401, %v2401
  %v2408 = vsel %vm1012, %v2406, 0
  %2410 = vmatprep.subr.mxu0 0.0
  %2411 = vmatpush1.msra.mxu0 %v2402
  %2412 = vmatprep.subr.mxu0 0.0
  %2413 = vmatpush1.msra.mxu0 %v2403
  %2414 = vmatprep.subr.mxu0 0.0
  %2415 = vmatpush1.msra.mxu0 %v2404
  %2416 = vmatprep.subr.mxu0 0.0
  %2417 = vmatpush1.msra.mxu0 %v2405
  %2418 = vmatprep.subr.mxu0 0.0
  %2419 = vmatpush1.msra.mxu0 %v2408
  %2420 = vmatprep.subr.mxu0 0.0
  %2421 = vmatpush1.msra.mxu0 0.0
  %2422 = vmatprep.subr.mxu0 0.0
  %2423 = vmatpush1.msra.mxu0 0.0
  %2424 = vmatprep.subr.mxu0 0.0
  %2425 = vmatpush1.msra.mxu0 0.0
  %2426 = vmatprep.subr.mxu0 0.0
  %2427 = vmatpush1.msra.mxu0 0.0
  %2428 = vmatprep.subr.mxu0 0.0
  %2429 = vmatpush1.msra.mxu0 0.0
  %2430 = vmatprep.subr.mxu0 0.0
  %2431 = vmatpush1.msra.mxu0 0.0
  %2432 = vmatprep.subr.mxu0 0.0
  %2433 = vmatpush1.msra.mxu0 0.0
  %2434 = vmatprep.subr.mxu0 0.0
  %2435 = vmatpush1.msra.mxu0 0.0
  %2436 = vmatprep.subr.mxu0 0.0
  %2437 = vmatpush1.msra.mxu0 0.0
  %2438 = vmatprep.subr.mxu0 0.0
  %2439 = vmatpush1.msra.mxu0 0.0
  %2440 = vmatprep.subr.mxu0 0.0
  %2441 = vmatpush1.msra.mxu0 0.0
  %2442 = vmatprep.subr.mxu0 0.0
  %2443 = vmatpush1.msra.mxu0 0.0
  %2444 = vmatprep.subr.mxu0 0.0
  %2445 = vmatpush1.msra.mxu0 0.0
  %2446 = vmatprep.subr.mxu0 0.0
  %2447 = vmatpush1.msra.mxu0 0.0
  %2448 = vmatprep.subr.mxu0 0.0
  %2449 = vmatpush1.msra.mxu0 0.0
  %2450 = vmatprep.subr.mxu0 0.0
  %2451 = vmatpush1.msra.mxu0 0.0
  %2452 = vmatprep.subr.mxu0 0.0
  %2453 = vmatpush1.msra.mxu0 0.0
  %2454 = vmatprep.subr.mxu0 0.0
  %2455 = vmatpush1.msra.mxu0 0.0
  %2456 = vmatprep.subr.mxu0 0.0
  %2457 = vmatpush1.msra.mxu0 0.0
  %2458 = vmatprep.subr.mxu0 0.0
  %2459 = vmatpush1.msra.mxu0 0.0
  %2460 = vmatprep.subr.mxu0 0.0
  %2461 = vmatpush1.msra.mxu0 0.0
  %2462 = vmatprep.subr.mxu0 0.0
  %2463 = vmatpush1.msra.mxu0 0.0
  %2464 = vmatprep.subr.mxu0 0.0
  %2465 = vmatpush1.msra.mxu0 0.0
  %2466 = vmatprep.subr.mxu0 0.0
  %2467 = vmatpush1.msra.mxu0 0.0
  %2468 = vmatprep.subr.mxu0 0.0
  %2469 = vmatpush1.msra.mxu0 0.0
  %2470 = vmatprep.subr.mxu0 0.0
  %2471 = vmatpush1.msra.mxu0 0.0
  %2472 = vmatprep.subr.mxu0 0.0
  %2473 = vmatpush1.msra.mxu0 0.0
  %2474 = vmatprep.mubr.f32.mxu0 0.0
  %2475 = vmatmul.mubr.f32.gmra.mrb[0].mxu0 %v1010
  %v2476 = vpop.f32.mrb[0].mxu0
  %v2477 = vadd.f32 0.0, %v2476
  %v2478 = vpop.f32.mrb[0].mxu0
  %2479 = vdwg.mxu0
  %2480 = vmatprep.subr.mxu0 0.0
  %2481 = vmatpush1.msra.mxu0 %v51
  %2482 = vmatprep.subr.mxu0 0.0
  %2483 = vmatpush1.msra.mxu0 %v52
  %2484 = vmatprep.subr.mxu0 0.0
  %2485 = vmatpush1.msra.mxu0 %v53
  %2486 = vmatprep.subr.mxu0 0.0
  %2487 = vmatpush1.msra.mxu0 %v54
  %2488 = vmatprep.subr.mxu0 0.0
  %2489 = vmatpush1.msra.mxu0 %v55
  %2490 = vmatprep.subr.mxu0 0.0
  %2491 = vmatpush1.msra.mxu0 %v56
  %2492 = vmatprep.subr.mxu0 0.0
  %2493 = vmatpush1.msra.mxu0 %v57
  %2494 = vmatprep.subr.mxu0 0.0
  %2495 = vmatpush1.msra.mxu0 %v58
  %2496 = vmatprep.subr.mxu0 0.0
  %2497 = vmatpush1.msra.mxu0 %v59
  %2498 = vmatprep.subr.mxu0 0.0
  %2499 = vmatpush1.msra.mxu0 %v60
  %2500 = vmatprep.subr.mxu0 0.0
  %2501 = vmatpush1.msra.mxu0 %v61
  %2502 = vmatprep.subr.mxu0 0.0
  %2503 = vmatpush1.msra.mxu0 %v62
  %2504 = vmatprep.subr.mxu0 0.0
  %2505 = vmatpush1.msra.mxu0 %v63
  %2506 = vmatprep.subr.mxu0 0.0
  %2507 = vmatpush1.msra.mxu0 %v64
  %2508 = vmatprep.subr.mxu0 0.0
  %2509 = vmatpush1.msra.mxu0 %v65
  %2510 = vmatprep.subr.mxu0 0.0
  %2511 = vmatpush1.msra.mxu0 %v66
  %2512 = vmatprep.subr.mxu0 0.0
  %2513 = vmatpush1.msra.mxu0 0.0
  %2514 = vmatprep.subr.mxu0 0.0
  %2515 = vmatpush1.msra.mxu0 0.0
  %2516 = vmatprep.subr.mxu0 0.0
  %2517 = vmatpush1.msra.mxu0 0.0
  %2518 = vmatprep.subr.mxu0 0.0
  %2519 = vmatpush1.msra.mxu0 0.0
  %2520 = vmatprep.subr.mxu0 0.0
  %2521 = vmatpush1.msra.mxu0 0.0
  %2522 = vmatprep.subr.mxu0 0.0
  %2523 = vmatpush1.msra.mxu0 0.0
  %2524 = vmatprep.subr.mxu0 0.0
  %2525 = vmatpush1.msra.mxu0 0.0
  %2526 = vmatprep.subr.mxu0 0.0
  %2527 = vmatpush1.msra.mxu0 0.0
  %2528 = vmatprep.subr.mxu0 0.0
  %2529 = vmatpush1.msra.mxu0 0.0
  %2530 = vmatprep.subr.mxu0 0.0
  %2531 = vmatpush1.msra.mxu0 0.0
  %2532 = vmatprep.subr.mxu0 0.0
  %2533 = vmatpush1.msra.mxu0 0.0
  %2534 = vmatprep.subr.mxu0 0.0
  %2535 = vmatpush1.msra.mxu0 0.0
  %2536 = vmatprep.subr.mxu0 0.0
  %2537 = vmatpush1.msra.mxu0 0.0
  %2538 = vmatprep.subr.mxu0 0.0
  %2539 = vmatpush1.msra.mxu0 0.0
  %2540 = vmatprep.subr.mxu0 0.0
  %2541 = vmatpush1.msra.mxu0 0.0
  %2542 = vmatprep.subr.mxu0 0.0
  %2543 = vmatpush1.msra.mxu0 0.0
  %2544 = vmatprep.mubr.f32.mxu0 0.0
  %2545 = vmatmul.mubr.f32.gmra.mrb[0].mxu0 %v2477
  %v2546 = vpop.f32.mrb[0].mxu0
  %v2547 = vadd.f32 0.0, %v2546
  %v2548 = vpop.f32.mrb[0].mxu0
  %2549 = vdwg.mxu0
  %v2550 = vmul.f32 %v2547, 0.001953125
  %v2551 = vld [vmem:[%s8 + $0x1] sm:$0x1]
  %v2552 = vadd.f32 %v2550, 1e-05
  %v2553 = vrsqrt.pop %v2552
  %v2554 = vmul.f32 %v2551, %v2553
  %v2555 = vld [vmem:[%s9 + $0x1] sm:$0x1]
  %v2556 = vmul.f32 %v2319, %v2554
  %v2557 = vsub.f32 %v2555, %v2556
  %v2559 = vsel %vm1157, %v2554, 0
  %2561 = vmatprep.subr.mxu0 0.0
  %2562 = vmatpush1.msra.mxu0 %v1163
  %2563 = vmatprep.subr.mxu0 0.0
  %2564 = vmatpush1.msra.mxu0 0.0
  %2565 = vmatprep.subr.mxu0 0.0
  %2566 = vmatpush1.msra.mxu0 0.0
  %2567 = vmatprep.subr.mxu0 0.0
  %2568 = vmatpush1.msra.mxu0 0.0
  %2569 = vmatprep.subr.mxu0 0.0
  %2570 = vmatpush1.msra.mxu0 0.0
  %2571 = vmatprep.subr.mxu0 0.0
  %2572 = vmatpush1.msra.mxu0 0.0
  %2573 = vmatprep.subr.mxu0 0.0
  %2574 = vmatpush1.msra.mxu0 0.0
  %2575 = vmatprep.subr.mxu0 0.0
  %2576 = vmatpush1.msra.mxu0 0.0
  %2577 = vmatprep.subr.mxu0 0.0
  %2578 = vmatpush1.msra.mxu0 0.0
  %2579 = vmatprep.subr.mxu0 0.0
  %2580 = vmatpush1.msra.mxu0 0.0
  %2581 = vmatprep.subr.mxu0 0.0
  %2582 = vmatpush1.msra.mxu0 0.0
  %2583 = vmatprep.subr.mxu0 0.0
  %2584 = vmatpush1.msra.mxu0 0.0
  %2585 = vmatprep.subr.mxu0 0.0
  %2586 = vmatpush1.msra.mxu0 0.0
  %2587 = vmatprep.subr.mxu0 0.0
  %2588 = vmatpush1.msra.mxu0 0.0
  %2589 = vmatprep.subr.mxu0 0.0
  %2590 = vmatpush1.msra.mxu0 0.0
  %2591 = vmatprep.subr.mxu0 0.0
  %2592 = vmatpush1.msra.mxu0 0.0
  %2593 = vmatprep.subr.mxu0 0.0
  %2594 = vmatpush1.msra.mxu0 0.0
  %2595 = vmatprep.subr.mxu0 0.0
  %2596 = vmatpush1.msra.mxu0 0.0
  %2597 = vmatprep.subr.mxu0 0.0
  %2598 = vmatpush1.msra.mxu0 0.0
  %2599 = vmatprep.subr.mxu0 0.0
  %2600 = vmatpush1.msra.mxu0 0.0
  %2601 = vmatprep.subr.mxu0 0.0
  %2602 = vmatpush1.msra.mxu0 0.0
  %2603 = vmatprep.subr.mxu0 0.0
  %2604 = vmatpush1.msra.mxu0 0.0
  %2605 = vmatprep.subr.mxu0 0.0
  %2606 = vmatpush1.msra.mxu0 0.0
  %2607 = vmatprep.subr.mxu0 0.0
  %2608 = vmatpush1.msra.mxu0 0.0
  %2609 = vmatprep.subr.mxu0 0.0
  %2610 = vmatpush1.msra.mxu0 0.0
  %2611 = vmatprep.subr.mxu0 0.0
  %2612 = vmatpush1.msra.mxu0 0.0
  %2613 = vmatprep.subr.mxu0 0.0
  %2614 = vmatpush1.msra.mxu0 0.0
  %2615 = vmatprep.subr.mxu0 0.0
  %2616 = vmatpush1.msra.mxu0 0.0
  %2617 = vmatprep.subr.mxu0 0.0
  %2618 = vmatpush1.msra.mxu0 0.0
  %2619 = vmatprep.subr.mxu0 0.0
  %2620 = vmatpush1.msra.mxu0 0.0
  %2621 = vmatprep.subr.mxu0 0.0
  %2622 = vmatpush1.msra.mxu0 0.0
  %2623 = vmatprep.subr.mxu0 0.0
  %2624 = vmatpush1.msra.mxu0 0.0
  %2625 = vmatprep.mubr.f32.mxu0 0.0
  %2626 = vmatmul.mubr.f32.gmra.mrb[0].mxu0 %v2559
  %v2627 = vpop.f32.mrb[0].mxu0
  %v2628 = vadd.f32 0.0, %v2627
  %v2629 = vpop.f32.mrb[0].mxu0
  %2630 = vdwg.mxu0
  %v2631 = vlaneseq
  %v2632 = vshrl.u32 %v2631, 7
  %v2633 = vsub.s32 0, %v2632
  %v2634 = vrot.slane %v2628, %v2633
  %v2635 = vmul.f32 %v2171, %v2634
  %v2636 = vmul.f32 %v2172, %v2634
  %v2637 = vmul.f32 %v2173, %v2634
  %v2638 = vmul.f32 %v2174, %v2634
  %v2639 = vmul.f32 %v2175, %v2634
  %v2641 = vsel %vm1157, %v2557, 0
  %2643 = vmatprep.subr.mxu0 0.0
  %2644 = vmatpush1.msra.mxu0 %v1163
  %2645 = vmatprep.subr.mxu0 0.0
  %2646 = vmatpush1.msra.mxu0 0.0
  %2647 = vmatprep.subr.mxu0 0.0
  %2648 = vmatpush1.msra.mxu0 0.0
  %2649 = vmatprep.subr.mxu0 0.0
  %2650 = vmatpush1.msra.mxu0 0.0
  %2651 = vmatprep.subr.mxu0 0.0
  %2652 = vmatpush1.msra.mxu0 0.0
  %2653 = vmatprep.subr.mxu0 0.0
  %2654 = vmatpush1.msra.mxu0 0.0
  %2655 = vmatprep.subr.mxu0 0.0
  %2656 = vmatpush1.msra.mxu0 0.0
  %2657 = vmatprep.subr.mxu0 0.0
  %2658 = vmatpush1.msra.mxu0 0.0
  %2659 = vmatprep.subr.mxu0 0.0
  %2660 = vmatpush1.msra.mxu0 0.0
  %2661 = vmatprep.subr.mxu0 0.0
  %2662 = vmatpush1.msra.mxu0 0.0
  %2663 = vmatprep.subr.mxu0 0.0
  %2664 = vmatpush1.msra.mxu0 0.0
  %2665 = vmatprep.subr.mxu0 0.0
  %2666 = vmatpush1.msra.mxu0 0.0
  %2667 = vmatprep.subr.mxu0 0.0
  %2668 = vmatpush1.msra.mxu0 0.0
  %2669 = vmatprep.subr.mxu0 0.0
  %2670 = vmatpush1.msra.mxu0 0.0
  %2671 = vmatprep.subr.mxu0 0.0
  %2672 = vmatpush1.msra.mxu0 0.0
  %2673 = vmatprep.subr.mxu0 0.0
  %2674 = vmatpush1.msra.mxu0 0.0
  %2675 = vmatprep.subr.mxu0 0.0
  %2676 = vmatpush1.msra.mxu0 0.0
  %2677 = vmatprep.subr.mxu0 0.0
  %2678 = vmatpush1.msra.mxu0 0.0
  %2679 = vmatprep.subr.mxu0 0.0
  %2680 = vmatpush1.msra.mxu0 0.0
  %2681 = vmatprep.subr.mxu0 0.0
  %2682 = vmatpush1.msra.mxu0 0.0
  %2683 = vmatprep.subr.mxu0 0.0
  %2684 = vmatpush1.msra.mxu0 0.0
  %2685 = vmatprep.subr.mxu0 0.0
  %2686 = vmatpush1.msra.mxu0 0.0
  %2687 = vmatprep.subr.mxu0 0.0
  %2688 = vmatpush1.msra.mxu0 0.0
  %2689 = vmatprep.subr.mxu0 0.0
  %2690 = vmatpush1.msra.mxu0 0.0
  %2691 = vmatprep.subr.mxu0 0.0
  %2692 = vmatpush1.msra.mxu0 0.0
  %2693 = vmatprep.subr.mxu0 0.0
  %2694 = vmatpush1.msra.mxu0 0.0
  %2695 = vmatprep.subr.mxu0 0.0
  %2696 = vmatpush1.msra.mxu0 0.0
  %2697 = vmatprep.subr.mxu0 0.0
  %2698 = vmatpush1.msra.mxu0 0.0
  %2699 = vmatprep.subr.mxu0 0.0
  %2700 = vmatpush1.msra.mxu0 0.0
  %2701 = vmatprep.subr.mxu0 0.0
  %2702 = vmatpush1.msra.mxu0 0.0
  %2703 = vmatprep.subr.mxu0 0.0
  %2704 = vmatpush1.msra.mxu0 0.0
  %2705 = vmatprep.subr.mxu0 0.0
  %2706 = vmatpush1.msra.mxu0 0.0
  %2707 = vmatprep.mubr.f32.mxu0 0.0
  %2708 = vmatmul.mubr.f32.gmra.mrb[0].mxu0 %v2641
  %v2709 = vpop.f32.mrb[0].mxu0
  %v2710 = vadd.f32 0.0, %v2709
  %v2711 = vpop.f32.mrb[0].mxu0
  %2712 = vdwg.mxu0
  %v2713 = vlaneseq
  %v2714 = vshrl.u32 %v2713, 7
  %v2715 = vsub.s32 0, %v2714
  %v2716 = vrot.slane %v2710, %v2715
  %v2717 = vadd.f32 %v2635, %v2716
  %v2718 = vadd.f32 %v2636, %v2716
  %v2719 = vadd.f32 %v2637, %v2716
  %v2720 = vadd.f32 %v2638, %v2716
  %v2721 = vadd.f32 %v2639, %v2716
  %v2722 = vmul.f32 %v2717, 0.5
  %v2723 = vmul.f32 %v2718, 0.5
  %v2724 = vmul.f32 %v2719, 0.5
  %v2725 = vmul.f32 %v2720, 0.5
  %v2726 = vmul.f32 %v2721, 0.5
  %v2727 = vmul.f32 %v2717, 0.70710677
  %v2728 = vmul.f32 %v2718, 0.70710677
  %v2729 = vmul.f32 %v2719, 0.70710677
  %v2730 = vmul.f32 %v2720, 0.70710677
  %v2731 = vmul.f32 %v2721, 0.70710677
  %v2732 = vand.u32 2147483647, %v2727
  %v2733 = vand.u32 2147483647, %v2728
  %v2734 = vand.u32 2147483647, %v2729
  %v2735 = vand.u32 2147483647, %v2730
  %v2736 = vand.u32 2147483647, %v2731
  %v2737 = vmul.f32 %v2732, 0.3275911
  %v2738 = vmul.f32 %v2733, 0.3275911
  %v2739 = vmul.f32 %v2734, 0.3275911
  %v2740 = vmul.f32 %v2735, 0.3275911
  %v2741 = vmul.f32 %v2736, 0.3275911
  %v2742 = vadd.f32 %v2737, 1.0
  %v2743 = vadd.f32 %v2738, 1.0
  %v2744 = vadd.f32 %v2739, 1.0
  %v2745 = vadd.f32 %v2740, 1.0
  %v2746 = vadd.f32 %v2741, 1.0
  %v2747 = vrcp.pop %v2742
  %v2748 = vmul.f32 1.0, %v2747
  %v2749 = vrcp.pop %v2743
  %v2750 = vmul.f32 1.0, %v2749
  %v2751 = vrcp.pop %v2744
  %v2752 = vmul.f32 1.0, %v2751
  %v2753 = vrcp.pop %v2745
  %v2754 = vmul.f32 1.0, %v2753
  %v2755 = vrcp.pop %v2746
  %v2756 = vmul.f32 1.0, %v2755
  %v2757 = vmul.f32 %v2748, 1.0614054
  %v2758 = vmul.f32 %v2750, 1.0614054
  %v2759 = vmul.f32 %v2752, 1.0614054
  %v2760 = vmul.f32 %v2754, 1.0614054
  %v2761 = vmul.f32 %v2756, 1.0614054
  %v2762 = vadd.f32 %v2757, -1.4531521
  %v2763 = vadd.f32 %v2758, -1.4531521
  %v2764 = vadd.f32 %v2759, -1.4531521
  %v2765 = vadd.f32 %v2760, -1.4531521
  %v2766 = vadd.f32 %v2761, -1.4531521
  %v2767 = vmul.f32 %v2762, %v2748
  %v2768 = vmul.f32 %v2763, %v2750
  %v2769 = vmul.f32 %v2764, %v2752
  %v2770 = vmul.f32 %v2765, %v2754
  %v2771 = vmul.f32 %v2766, %v2756
  %v2772 = vadd.f32 %v2767, 1.4214138
  %v2773 = vadd.f32 %v2768, 1.4214138
  %v2774 = vadd.f32 %v2769, 1.4214138
  %v2775 = vadd.f32 %v2770, 1.4214138
  %v2776 = vadd.f32 %v2771, 1.4214138
  %v2777 = vmul.f32 %v2772, %v2748
  %v2778 = vmul.f32 %v2773, %v2750
  %v2779 = vmul.f32 %v2774, %v2752
  %v2780 = vmul.f32 %v2775, %v2754
  %v2781 = vmul.f32 %v2776, %v2756
  %v2782 = vadd.f32 %v2777, -0.28449672
  %v2783 = vadd.f32 %v2778, -0.28449672
  %v2784 = vadd.f32 %v2779, -0.28449672
  %v2785 = vadd.f32 %v2780, -0.28449672
  %v2786 = vadd.f32 %v2781, -0.28449672
  %v2787 = vmul.f32 %v2782, %v2748
  %v2788 = vmul.f32 %v2783, %v2750
  %v2789 = vmul.f32 %v2784, %v2752
  %v2790 = vmul.f32 %v2785, %v2754
  %v2791 = vmul.f32 %v2786, %v2756
  %v2792 = vadd.f32 %v2787, 0.2548296
  %v2793 = vadd.f32 %v2788, 0.2548296
  %v2794 = vadd.f32 %v2789, 0.2548296
  %v2795 = vadd.f32 %v2790, 0.2548296
  %v2796 = vadd.f32 %v2791, 0.2548296
  %v2797 = vmul.f32 %v2792, %v2748
  %v2798 = vmul.f32 %v2793, %v2750
  %v2799 = vmul.f32 %v2794, %v2752
  %v2800 = vmul.f32 %v2795, %v2754
  %v2801 = vmul.f32 %v2796, %v2756
  %v2802 = vsub.f32 0.0, %v2732
  %v2803 = vsub.f32 0.0, %v2733
  %v2804 = vsub.f32 0.0, %v2734
  %v2805 = vsub.f32 0.0, %v2735
  %v2806 = vsub.f32 0.0, %v2736
  %v2807 = vmul.f32 %v2802, %v2732
  %v2808 = vmul.f32 %v2803, %v2733
  %v2809 = vmul.f32 %v2804, %v2734
  %v2810 = vmul.f32 %v2805, %v2735
  %v2811 = vmul.f32 %v2806, %v2736
  %v2812 = vmul.f32 %v2807, 1.442695
  %v2813 = vpow.pop %v2812
  %v2814 = vmul.f32 %v2808, 1.442695
  %v2815 = vpow.pop %v2814
  %v2816 = vmul.f32 %v2809, 1.442695
  %v2817 = vpow.pop %v2816
  %v2818 = vmul.f32 %v2810, 1.442695
  %v2819 = vpow.pop %v2818
  %v2820 = vmul.f32 %v2811, 1.442695
  %v2821 = vpow.pop %v2820
  %v2822 = vmul.f32 %v2797, %v2813
  %v2823 = vmul.f32 %v2798, %v2815
  %v2824 = vmul.f32 %v2799, %v2817
  %v2825 = vmul.f32 %v2800, %v2819
  %v2826 = vmul.f32 %v2801, %v2821
  %v2827 = vsub.f32 1.0, %v2822
  %v2828 = vsub.f32 1.0, %v2823
  %v2829 = vsub.f32 1.0, %v2824
  %v2830 = vsub.f32 1.0, %v2825
  %v2831 = vsub.f32 1.0, %v2826
  %vm2832 = vcmp.lt.f32.partialorder %v2727, 0.0
  %vm2833 = vcmp.lt.f32.partialorder %v2728, 0.0
  %vm2834 = vcmp.lt.f32.partialorder %v2729, 0.0
  %vm2835 = vcmp.lt.f32.partialorder %v2730, 0.0
  %vm2836 = vcmp.lt.f32.partialorder %v2731, 0.0
  %v2837 = vsub.f32 0.0, %v2827
  %v2838 = vsub.f32 0.0, %v2828
  %v2839 = vsub.f32 0.0, %v2829
  %v2840 = vsub.f32 0.0, %v2830
  %v2841 = vsub.f32 0.0, %v2831
  %v2842 = vsel %vm2832, %v2837, %v2827
  %v2843 = vsel %vm2833, %v2838, %v2828
  %v2844 = vsel %vm2834, %v2839, %v2829
  %v2845 = vsel %vm2835, %v2840, %v2830
  %v2846 = vsel %vm2836, %v2841, %v2831
  %v2847 = vadd.f32 %v2842, 1.0
  %v2848 = vadd.f32 %v2843, 1.0
  %v2849 = vadd.f32 %v2844, 1.0
  %v2850 = vadd.f32 %v2845, 1.0
  %v2851 = vadd.f32 %v2846, 1.0
  %v2852 = vmul.f32 %v2722, %v2847
  %v2853 = vmul.f32 %v2723, %v2848
  %v2854 = vmul.f32 %v2724, %v2849
  %v2855 = vmul.f32 %v2725, %v2850
  %v2856 = vmul.f32 %v2726, %v2851
  %v2858 = vsel %vm1012, %v2856, 0
  %2860 = vmatprep.subr.mxu0 0.0
  %2861 = vmatpush1.msra.mxu0 %v2852
  %2862 = vmatprep.subr.mxu0 0.0
  %2863 = vmatpush1.msra.mxu0 %v2853
  %2864 = vmatprep.subr.mxu0 0.0
  %2865 = vmatpush1.msra.mxu0 %v2854
  %2866 = vmatprep.subr.mxu0 0.0
  %2867 = vmatpush1.msra.mxu0 %v2855
  %2868 = vmatprep.subr.mxu0 0.0
  %2869 = vmatpush1.msra.mxu0 %v2858
  %2870 = vmatprep.subr.mxu0 0.0
  %2871 = vmatpush1.msra.mxu0 0.0
  %2872 = vmatprep.subr.mxu0 0.0
  %2873 = vmatpush1.msra.mxu0 0.0
  %2874 = vmatprep.subr.mxu0 0.0
  %2875 = vmatpush1.msra.mxu0 0.0
  %2876 = vmatprep.subr.mxu0 0.0
  %2877 = vmatpush1.msra.mxu0 0.0
  %2878 = vmatprep.subr.mxu0 0.0
  %2879 = vmatpush1.msra.mxu0 0.0
  %2880 = vmatprep.subr.mxu0 0.0
  %2881 = vmatpush1.msra.mxu0 0.0
  %2882 = vmatprep.subr.mxu0 0.0
  %2883 = vmatpush1.msra.mxu0 0.0
  %2884 = vmatprep.subr.mxu0 0.0
  %2885 = vmatpush1.msra.mxu0 0.0
  %2886 = vmatprep.subr.mxu0 0.0
  %2887 = vmatpush1.msra.mxu0 0.0
  %2888 = vmatprep.subr.mxu0 0.0
  %2889 = vmatpush1.msra.mxu0 0.0
  %2890 = vmatprep.subr.mxu0 0.0
  %2891 = vmatpush1.msra.mxu0 0.0
  %2892 = vmatprep.subr.mxu0 0.0
  %2893 = vmatpush1.msra.mxu0 0.0
  %2894 = vmatprep.subr.mxu0 0.0
  %2895 = vmatpush1.msra.mxu0 0.0
  %2896 = vmatprep.subr.mxu0 0.0
  %2897 = vmatpush1.msra.mxu0 0.0
  %2898 = vmatprep.subr.mxu0 0.0
  %2899 = vmatpush1.msra.mxu0 0.0
  %2900 = vmatprep.subr.mxu0 0.0
  %2901 = vmatpush1.msra.mxu0 0.0
  %2902 = vmatprep.subr.mxu0 0.0
  %2903 = vmatpush1.msra.mxu0 0.0
  %2904 = vmatprep.subr.mxu0 0.0
  %2905 = vmatpush1.msra.mxu0 0.0
  %2906 = vmatprep.subr.mxu0 0.0
  %2907 = vmatpush1.msra.mxu0 0.0
  %2908 = vmatprep.subr.mxu0 0.0
  %2909 = vmatpush1.msra.mxu0 0.0
  %2910 = vmatprep.subr.mxu0 0.0
  %2911 = vmatpush1.msra.mxu0 0.0
  %2912 = vmatprep.subr.mxu0 0.0
  %2913 = vmatpush1.msra.mxu0 0.0
  %2914 = vmatprep.subr.mxu0 0.0
  %2915 = vmatpush1.msra.mxu0 0.0
  %2916 = vmatprep.subr.mxu0 0.0
  %2917 = vmatpush1.msra.mxu0 0.0
  %2918 = vmatprep.subr.mxu0 0.0
  %2919 = vmatpush1.msra.mxu0 0.0
  %2920 = vmatprep.subr.mxu0 0.0
  %2921 = vmatpush1.msra.mxu0 0.0
  %2922 = vmatprep.subr.mxu0 0.0
  %2923 = vmatpush1.msra.mxu0 0.0
  %2924 = vmatprep.mubr.f32.mxu0 0.0
  %2925 = vmatmul.mubr.f32.gmra.mrb[0].mxu0 %v1700
  %v2926 = vpop.f32.mrb[0].mxu0
  %v2927 = vadd.f32 0.0, %v2926
  %v2928 = vpop.f32.mrb[0].mxu0
  %2929 = vmatprep.mubr.f32.mxu0 0.0
  %2930 = vmatmul.mubr.f32.gmra.mrb[0].mxu0 %v1703
  %v2931 = vpop.f32.mrb[0].mxu0
  %v2932 = vadd.f32 0.0, %v2931
  %v2933 = vpop.f32.mrb[0].mxu0
  %2934 = vmatprep.mubr.f32.mxu0 0.0
  %2935 = vmatmul.mubr.f32.gmra.mrb[0].mxu0 %v1706
  %v2936 = vpop.f32.mrb[0].mxu0
  %v2937 = vadd.f32 0.0, %v2936
  %v2938 = vpop.f32.mrb[0].mxu0
  %2939 = vmatprep.mubr.f32.mxu0 0.0
  %2940 = vmatmul.mubr.f32.gmra.mrb[0].mxu0 %v1709
  %v2941 = vpop.f32.mrb[0].mxu0
  %v2942 = vadd.f32 0.0, %v2941
  %v2943 = vpop.f32.mrb[0].mxu0
  %2944 = vmatprep.mubr.f32.mxu0 0.0
  %2945 = vmatmul.mubr.f32.gmra.mrb[0].mxu0 %v1712
  %v2946 = vpop.f32.mrb[0].mxu0
  %v2947 = vadd.f32 0.0, %v2946
  %v2948 = vpop.f32.mrb[0].mxu0
  %2949 = vdwg.mxu0
  %s2950 = scalar_lea.vmem %s6, 768
  %v2951 = vld [vmem:[%s2950] sm:$0xff]
  %v2952 = vld [vmem:[%s2950 + $0x8] sm:$0xff]
  %v2953 = vld [vmem:[%s2950 + $0x10] sm:$0xff]
  %v2954 = vld [vmem:[%s2950 + $0x18] sm:$0xff]
  %v2955 = vld [vmem:[%s2950 + $0x20] sm:$0xff]
  %v2956 = vld [vmem:[%s2950 + $0x28] sm:$0xff]
  %v2957 = vld [vmem:[%s2950 + $0x30] sm:$0xff]
  %v2958 = vld [vmem:[%s2950 + $0x38] sm:$0xff]
  %v2959 = vld [vmem:[%s2950 + $0x40] sm:$0xff]
  %v2960 = vld [vmem:[%s2950 + $0x48] sm:$0xff]
  %v2961 = vld [vmem:[%s2950 + $0x50] sm:$0xff]
  %v2962 = vld [vmem:[%s2950 + $0x58] sm:$0xff]
  %v2963 = vld [vmem:[%s2950 + $0x60] sm:$0xff]
  %v2964 = vld [vmem:[%s2950 + $0x68] sm:$0xff]
  %v2965 = vld [vmem:[%s2950 + $0x70] sm:$0xff]
  %v2966 = vld [vmem:[%s2950 + $0x78] sm:$0xff]
  %s2967 = scalar_lea.vmem %s6, 896
  %v2968 = vld [vmem:[%s2967] sm:$0xff]
  %v2969 = vld [vmem:[%s2967 + $0x8] sm:$0xff]
  %v2970 = vld [vmem:[%s2967 + $0x10] sm:$0xff]
  %v2971 = vld [vmem:[%s2967 + $0x18] sm:$0xff]
  %v2972 = vld [vmem:[%s2967 + $0x20] sm:$0xff]
  %v2973 = vld [vmem:[%s2967 + $0x28] sm:$0xff]
  %v2974 = vld [vmem:[%s2967 + $0x30] sm:$0xff]
  %v2975 = vld [vmem:[%s2967 + $0x38] sm:$0xff]
  %v2976 = vld [vmem:[%s2967 + $0x40] sm:$0xff]
  %v2977 = vld [vmem:[%s2967 + $0x48] sm:$0xff]
  %v2978 = vld [vmem:[%s2967 + $0x50] sm:$0xff]
  %v2979 = vld [vmem:[%s2967 + $0x58] sm:$0xff]
  %v2980 = vld [vmem:[%s2967 + $0x60] sm:$0xff]
  %v2981 = vld [vmem:[%s2967 + $0x68] sm:$0xff]
  %v2982 = vld [vmem:[%s2967 + $0x70] sm:$0xff]
  %v2983 = vld [vmem:[%s2967 + $0x78] sm:$0xff]
  %v2989 = vrot.slane %v2927, 1
  %v2990 = vrot.slane %v2932, 1
  %v2991 = vsel %vm676, %v2989, %v2990
  %v2992 = vrot.slane %v2937, 1
  %v2993 = vsel %vm676, %v2990, %v2992
  %v2994 = vrot.slane %v2942, 1
  %v2995 = vsel %vm676, %v2992, %v2994
  %v2996 = vrot.slane %v2947, 1
  %v2997 = vsel %vm676, %v2994, %v2996
  %3003 = vmatprep.subr.mxu0 0.0
  %3004 = vmatpush1.msra.mxu0 %v2968
  %3005 = vmatprep.subr.mxu0 0.0
  %3006 = vmatpush1.msra.mxu0 %v2969
  %3007 = vmatprep.subr.mxu0 0.0
  %3008 = vmatpush1.msra.mxu0 %v2970
  %3009 = vmatprep.subr.mxu0 0.0
  %3010 = vmatpush1.msra.mxu0 %v2971
  %3011 = vmatprep.subr.mxu0 0.0
  %3012 = vmatpush1.msra.mxu0 %v2972
  %3013 = vmatprep.subr.mxu0 0.0
  %3014 = vmatpush1.msra.mxu0 %v2973
  %3015 = vmatprep.subr.mxu0 0.0
  %3016 = vmatpush1.msra.mxu0 %v2974
  %3017 = vmatprep.subr.mxu0 0.0
  %3018 = vmatpush1.msra.mxu0 %v2975
  %3019 = vmatprep.subr.mxu0 0.0
  %3020 = vmatpush1.msra.mxu0 %v2976
  %3021 = vmatprep.subr.mxu0 0.0
  %3022 = vmatpush1.msra.mxu0 %v2977
  %3023 = vmatprep.subr.mxu0 0.0
  %3024 = vmatpush1.msra.mxu0 %v2978
  %3025 = vmatprep.subr.mxu0 0.0
  %3026 = vmatpush1.msra.mxu0 %v2979
  %3027 = vmatprep.subr.mxu0 0.0
  %3028 = vmatpush1.msra.mxu0 %v2980
  %3029 = vmatprep.subr.mxu0 0.0
  %3030 = vmatpush1.msra.mxu0 %v2981
  %3031 = vmatprep.subr.mxu0 0.0
  %3032 = vmatpush1.msra.mxu0 %v2982
  %3033 = vmatprep.subr.mxu0 0.0
  %3034 = vmatpush1.msra.mxu0 %v2983
  %3035 = vmatprep.subr.mxu0 0.0
  %3036 = vmatpush1.msra.mxu0 0.0
  %3037 = vmatprep.subr.mxu0 0.0
  %3038 = vmatpush1.msra.mxu0 0.0
  %3039 = vmatprep.subr.mxu0 0.0
  %3040 = vmatpush1.msra.mxu0 0.0
  %3041 = vmatprep.subr.mxu0 0.0
  %3042 = vmatpush1.msra.mxu0 0.0
  %3043 = vmatprep.subr.mxu0 0.0
  %3044 = vmatpush1.msra.mxu0 0.0
  %3045 = vmatprep.subr.mxu0 0.0
  %3046 = vmatpush1.msra.mxu0 0.0
  %3047 = vmatprep.subr.mxu0 0.0
  %3048 = vmatpush1.msra.mxu0 0.0
  %3049 = vmatprep.subr.mxu0 0.0
  %3050 = vmatpush1.msra.mxu0 0.0
  %3051 = vmatprep.subr.mxu0 0.0
  %3052 = vmatpush1.msra.mxu0 0.0
  %3053 = vmatprep.subr.mxu0 0.0
  %3054 = vmatpush1.msra.mxu0 0.0
  %3055 = vmatprep.subr.mxu0 0.0
  %3056 = vmatpush1.msra.mxu0 0.0
  %3057 = vmatprep.subr.mxu0 0.0
  %3058 = vmatpush1.msra.mxu0 0.0
  %3059 = vmatprep.subr.mxu0 0.0
  %3060 = vmatpush1.msra.mxu0 0.0
  %3061 = vmatprep.subr.mxu0 0.0
  %3062 = vmatpush1.msra.mxu0 0.0
  %3063 = vmatprep.subr.mxu0 0.0
  %3064 = vmatpush1.msra.mxu0 0.0
  %3065 = vmatprep.subr.mxu0 0.0
  %3066 = vmatpush1.msra.mxu0 0.0
  %3067 = vmatprep.mubr.f32.mxu0 0.0
  %3068 = vmatmul.mubr.f32.gmra.mrb[0].mxu0 %v2991
  %v3069 = vpop.f32.mrb[0].mxu0
  %v3070 = vadd.f32 0.0, %v3069
  %v3071 = vpop.f32.mrb[0].mxu0
  %3072 = vmatprep.mubr.f32.mxu0 0.0
  %3073 = vmatmul.mubr.f32.gmra.mrb[0].mxu0 %v2993
  %v3074 = vpop.f32.mrb[0].mxu0
  %v3075 = vadd.f32 0.0, %v3074
  %v3076 = vpop.f32.mrb[0].mxu0
  %3077 = vmatprep.mubr.f32.mxu0 0.0
  %3078 = vmatmul.mubr.f32.gmra.mrb[0].mxu0 %v2995
  %v3079 = vpop.f32.mrb[0].mxu0
  %v3080 = vadd.f32 0.0, %v3079
  %v3081 = vpop.f32.mrb[0].mxu0
  %3082 = vmatprep.mubr.f32.mxu0 0.0
  %3083 = vmatmul.mubr.f32.gmra.mrb[0].mxu0 %v2997
  %v3084 = vpop.f32.mrb[0].mxu0
  %v3085 = vadd.f32 0.0, %v3084
  %v3086 = vpop.f32.mrb[0].mxu0
  %3087 = vmatprep.mubr.f32.mxu0 0.0
  %3088 = vmatmul.mubr.f32.gmra.mrb[0].mxu0 %v2996
  %v3089 = vpop.f32.mrb[0].mxu0
  %v3090 = vadd.f32 0.0, %v3089
  %v3091 = vpop.f32.mrb[0].mxu0
  %3092 = vdwg.mxu0
  %3093 = vmatprep.subr.mxu0 0.0
  %3094 = vmatpush1.msra.mxu0 %v2951
  %3095 = vmatprep.subr.mxu0 0.0
  %3096 = vmatpush1.msra.mxu0 %v2952
  %3097 = vmatprep.subr.mxu0 0.0
  %3098 = vmatpush1.msra.mxu0 %v2953
  %3099 = vmatprep.subr.mxu0 0.0
  %3100 = vmatpush1.msra.mxu0 %v2954
  %3101 = vmatprep.subr.mxu0 0.0
  %3102 = vmatpush1.msra.mxu0 %v2955
  %3103 = vmatprep.subr.mxu0 0.0
  %3104 = vmatpush1.msra.mxu0 %v2956
  %3105 = vmatprep.subr.mxu0 0.0
  %3106 = vmatpush1.msra.mxu0 %v2957
  %3107 = vmatprep.subr.mxu0 0.0
  %3108 = vmatpush1.msra.mxu0 %v2958
  %3109 = vmatprep.subr.mxu0 0.0
  %3110 = vmatpush1.msra.mxu0 %v2959
  %3111 = vmatprep.subr.mxu0 0.0
  %3112 = vmatpush1.msra.mxu0 %v2960
  %3113 = vmatprep.subr.mxu0 0.0
  %3114 = vmatpush1.msra.mxu0 %v2961
  %3115 = vmatprep.subr.mxu0 0.0
  %3116 = vmatpush1.msra.mxu0 %v2962
  %3117 = vmatprep.subr.mxu0 0.0
  %3118 = vmatpush1.msra.mxu0 %v2963
  %3119 = vmatprep.subr.mxu0 0.0
  %3120 = vmatpush1.msra.mxu0 %v2964
  %3121 = vmatprep.subr.mxu0 0.0
  %3122 = vmatpush1.msra.mxu0 %v2965
  %3123 = vmatprep.subr.mxu0 0.0
  %3124 = vmatpush1.msra.mxu0 %v2966
  %3125 = vmatprep.subr.mxu0 0.0
  %3126 = vmatpush1.msra.mxu0 0.0
  %3127 = vmatprep.subr.mxu0 0.0
  %3128 = vmatpush1.msra.mxu0 0.0
  %3129 = vmatprep.subr.mxu0 0.0
  %3130 = vmatpush1.msra.mxu0 0.0
  %3131 = vmatprep.subr.mxu0 0.0
  %3132 = vmatpush1.msra.mxu0 0.0
  %3133 = vmatprep.subr.mxu0 0.0
  %3134 = vmatpush1.msra.mxu0 0.0
  %3135 = vmatprep.subr.mxu0 0.0
  %3136 = vmatpush1.msra.mxu0 0.0
  %3137 = vmatprep.subr.mxu0 0.0
  %3138 = vmatpush1.msra.mxu0 0.0
  %3139 = vmatprep.subr.mxu0 0.0
  %3140 = vmatpush1.msra.mxu0 0.0
  %3141 = vmatprep.subr.mxu0 0.0
  %3142 = vmatpush1.msra.mxu0 0.0
  %3143 = vmatprep.subr.mxu0 0.0
  %3144 = vmatpush1.msra.mxu0 0.0
  %3145 = vmatprep.subr.mxu0 0.0
  %3146 = vmatpush1.msra.mxu0 0.0
  %3147 = vmatprep.subr.mxu0 0.0
  %3148 = vmatpush1.msra.mxu0 0.0
  %3149 = vmatprep.subr.mxu0 0.0
  %3150 = vmatpush1.msra.mxu0 0.0
  %3151 = vmatprep.subr.mxu0 0.0
  %3152 = vmatpush1.msra.mxu0 0.0
  %3153 = vmatprep.subr.mxu0 0.0
  %3154 = vmatpush1.msra.mxu0 0.0
  %3155 = vmatprep.subr.mxu0 0.0
  %3156 = vmatpush1.msra.mxu0 0.0
  %3157 = vmatprep.mubr.f32.mxu0 0.0
  %3158 = vmatmul.mubr.f32.gmra.mrb[0].mxu0 %v2927
  %v3159 = vpop.f32.mrb[0].mxu0
  %v3160 = vadd.f32 %v3070, %v3159
  %v3161 = vpop.f32.mrb[0].mxu0
  %3162 = vmatprep.mubr.f32.mxu0 0.0
  %3163 = vmatmul.mubr.f32.gmra.mrb[0].mxu0 %v2932
  %v3164 = vpop.f32.mrb[0].mxu0
  %v3165 = vadd.f32 %v3075, %v3164
  %v3166 = vpop.f32.mrb[0].mxu0
  %3167 = vmatprep.mubr.f32.mxu0 0.0
  %3168 = vmatmul.mubr.f32.gmra.mrb[0].mxu0 %v2937
  %v3169 = vpop.f32.mrb[0].mxu0
  %v3170 = vadd.f32 %v3080, %v3169
  %v3171 = vpop.f32.mrb[0].mxu0
  %3172 = vmatprep.mubr.f32.mxu0 0.0
  %3173 = vmatmul.mubr.f32.gmra.mrb[0].mxu0 %v2942
  %v3174 = vpop.f32.mrb[0].mxu0
  %v3175 = vadd.f32 %v3085, %v3174
  %v3176 = vpop.f32.mrb[0].mxu0
  %3177 = vmatprep.mubr.f32.mxu0 0.0
  %3178 = vmatmul.mubr.f32.gmra.mrb[0].mxu0 %v2947
  %v3179 = vpop.f32.mrb[0].mxu0
  %v3180 = vadd.f32 %v3090, %v3179
  %v3181 = vpop.f32.mrb[0].mxu0
  %3182 = vdwg.mxu0
  %s3183 = scalar_lea.vmem %s6, 1024
  %v3184 = vld [vmem:[%s3183] sm:$0xff]
  %v3185 = vld [vmem:[%s3183 + $0x8] sm:$0xff]
  %v3186 = vld [vmem:[%s3183 + $0x10] sm:$0xff]
  %v3187 = vld [vmem:[%s3183 + $0x18] sm:$0xff]
  %v3188 = vld [vmem:[%s3183 + $0x20] sm:$0xff]
  %v3189 = vld [vmem:[%s3183 + $0x28] sm:$0xff]
  %v3190 = vld [vmem:[%s3183 + $0x30] sm:$0xff]
  %v3191 = vld [vmem:[%s3183 + $0x38] sm:$0xff]
  %v3192 = vld [vmem:[%s3183 + $0x40] sm:$0xff]
  %v3193 = vld [vmem:[%s3183 + $0x48] sm:$0xff]
  %v3194 = vld [vmem:[%s3183 + $0x50] sm:$0xff]
  %v3195 = vld [vmem:[%s3183 + $0x58] sm:$0xff]
  %v3196 = vld [vmem:[%s3183 + $0x60] sm:$0xff]
  %v3197 = vld [vmem:[%s3183 + $0x68] sm:$0xff]
  %v3198 = vld [vmem:[%s3183 + $0x70] sm:$0xff]
  %v3199 = vld [vmem:[%s3183 + $0x78] sm:$0xff]
  %v3200 = vrot.slane %v2927, 2
  %v3201 = vrot.slane %v2932, 2
  %v3202 = vsel %vm888, %v3200, %v3201
  %v3203 = vrot.slane %v2937, 2
  %v3204 = vsel %vm888, %v3201, %v3203
  %v3205 = vrot.slane %v2942, 2
  %v3206 = vsel %vm888, %v3203, %v3205
  %v3207 = vrot.slane %v2947, 2
  %v3208 = vsel %vm888, %v3205, %v3207
  %3214 = vmatprep.subr.mxu0 0.0
  %3215 = vmatpush1.msra.mxu0 %v3184
  %3216 = vmatprep.subr.mxu0 0.0
  %3217 = vmatpush1.msra.mxu0 %v3185
  %3218 = vmatprep.subr.mxu0 0.0
  %3219 = vmatpush1.msra.mxu0 %v3186
  %3220 = vmatprep.subr.mxu0 0.0
  %3221 = vmatpush1.msra.mxu0 %v3187
  %3222 = vmatprep.subr.mxu0 0.0
  %3223 = vmatpush1.msra.mxu0 %v3188
  %3224 = vmatprep.subr.mxu0 0.0
  %3225 = vmatpush1.msra.mxu0 %v3189
  %3226 = vmatprep.subr.mxu0 0.0
  %3227 = vmatpush1.msra.mxu0 %v3190
  %3228 = vmatprep.subr.mxu0 0.0
  %3229 = vmatpush1.msra.mxu0 %v3191
  %3230 = vmatprep.subr.mxu0 0.0
  %3231 = vmatpush1.msra.mxu0 %v3192
  %3232 = vmatprep.subr.mxu0 0.0
  %3233 = vmatpush1.msra.mxu0 %v3193
  %3234 = vmatprep.subr.mxu0 0.0
  %3235 = vmatpush1.msra.mxu0 %v3194
  %3236 = vmatprep.subr.mxu0 0.0
  %3237 = vmatpush1.msra.mxu0 %v3195
  %3238 = vmatprep.subr.mxu0 0.0
  %3239 = vmatpush1.msra.mxu0 %v3196
  %3240 = vmatprep.subr.mxu0 0.0
  %3241 = vmatpush1.msra.mxu0 %v3197
  %3242 = vmatprep.subr.mxu0 0.0
  %3243 = vmatpush1.msra.mxu0 %v3198
  %3244 = vmatprep.subr.mxu0 0.0
  %3245 = vmatpush1.msra.mxu0 %v3199
  %3246 = vmatprep.subr.mxu0 0.0
  %3247 = vmatpush1.msra.mxu0 0.0
  %3248 = vmatprep.subr.mxu0 0.0
  %3249 = vmatpush1.msra.mxu0 0.0
  %3250 = vmatprep.subr.mxu0 0.0
  %3251 = vmatpush1.msra.mxu0 0.0
  %3252 = vmatprep.subr.mxu0 0.0
  %3253 = vmatpush1.msra.mxu0 0.0
  %3254 = vmatprep.subr.mxu0 0.0
  %3255 = vmatpush1.msra.mxu0 0.0
  %3256 = vmatprep.subr.mxu0 0.0
  %3257 = vmatpush1.msra.mxu0 0.0
  %3258 = vmatprep.subr.mxu0 0.0
  %3259 = vmatpush1.msra.mxu0 0.0
  %3260 = vmatprep.subr.mxu0 0.0
  %3261 = vmatpush1.msra.mxu0 0.0
  %3262 = vmatprep.subr.mxu0 0.0
  %3263 = vmatpush1.msra.mxu0 0.0
  %3264 = vmatprep.subr.mxu0 0.0
  %3265 = vmatpush1.msra.mxu0 0.0
  %3266 = vmatprep.subr.mxu0 0.0
  %3267 = vmatpush1.msra.mxu0 0.0
  %3268 = vmatprep.subr.mxu0 0.0
  %3269 = vmatpush1.msra.mxu0 0.0
  %3270 = vmatprep.subr.mxu0 0.0
  %3271 = vmatpush1.msra.mxu0 0.0
  %3272 = vmatprep.subr.mxu0 0.0
  %3273 = vmatpush1.msra.mxu0 0.0
  %3274 = vmatprep.subr.mxu0 0.0
  %3275 = vmatpush1.msra.mxu0 0.0
  %3276 = vmatprep.subr.mxu0 0.0
  %3277 = vmatpush1.msra.mxu0 0.0
  %3278 = vmatprep.mubr.f32.mxu0 0.0
  %3279 = vmatmul.mubr.f32.gmra.mrb[0].mxu0 %v3202
  %v3280 = vpop.f32.mrb[0].mxu0
  %v3281 = vadd.f32 0.0, %v3280
  %v3282 = vpop.f32.mrb[0].mxu0
  %3283 = vmatprep.mubr.f32.mxu0 0.0
  %3284 = vmatmul.mubr.f32.gmra.mrb[0].mxu0 %v3204
  %v3285 = vpop.f32.mrb[0].mxu0
  %v3286 = vadd.f32 0.0, %v3285
  %v3287 = vpop.f32.mrb[0].mxu0
  %3288 = vmatprep.mubr.f32.mxu0 0.0
  %3289 = vmatmul.mubr.f32.gmra.mrb[0].mxu0 %v3206
  %v3290 = vpop.f32.mrb[0].mxu0
  %v3291 = vadd.f32 0.0, %v3290
  %v3292 = vpop.f32.mrb[0].mxu0
  %3293 = vmatprep.mubr.f32.mxu0 0.0
  %3294 = vmatmul.mubr.f32.gmra.mrb[0].mxu0 %v3208
  %v3295 = vpop.f32.mrb[0].mxu0
  %v3296 = vadd.f32 0.0, %v3295
  %v3297 = vpop.f32.mrb[0].mxu0
  %3298 = vmatprep.mubr.f32.mxu0 0.0
  %3299 = vmatmul.mubr.f32.gmra.mrb[0].mxu0 %v3207
  %v3300 = vpop.f32.mrb[0].mxu0
  %v3301 = vadd.f32 0.0, %v3300
  %v3302 = vpop.f32.mrb[0].mxu0
  %3303 = vdwg.mxu0
  %v3304 = vadd.f32 %v3160, %v3281
  %v3305 = vadd.f32 %v3165, %v3286
  %v3306 = vadd.f32 %v3170, %v3291
  %v3307 = vadd.f32 %v3175, %v3296
  %v3308 = vadd.f32 %v3180, %v3301
  %v3309 = vld [vmem:[%s7 + $0x2] sm:$0x1]
  %v3310 = vlaneseq
  %v3311 = vshrl.u32 %v3310, 7
  %v3312 = vsub.s32 0, %v3311
  %v3313 = vrot.slane %v3309, %v3312
  %v3314 = vadd.f32 %v3304, %v3313
  %v3315 = vadd.f32 %v3305, %v3313
  %v3316 = vadd.f32 %v3306, %v3313
  %v3317 = vadd.f32 %v3307, %v3313
  %v3318 = vadd.f32 %v3308, %v3313
  %v3320 = vsel %vm1012, %v3318, 0
  %3322 = vmatprep.subr.mxu0 0.0
  %3323 = vmatpush1.msra.mxu0 %v3314
  %3324 = vmatprep.subr.mxu0 0.0
  %3325 = vmatpush1.msra.mxu0 %v3315
  %3326 = vmatprep.subr.mxu0 0.0
  %3327 = vmatpush1.msra.mxu0 %v3316
  %3328 = vmatprep.subr.mxu0 0.0
  %3329 = vmatpush1.msra.mxu0 %v3317
  %3330 = vmatprep.subr.mxu0 0.0
  %3331 = vmatpush1.msra.mxu0 %v3320
  %3332 = vmatprep.subr.mxu0 0.0
  %3333 = vmatpush1.msra.mxu0 0.0
  %3334 = vmatprep.subr.mxu0 0.0
  %3335 = vmatpush1.msra.mxu0 0.0
  %3336 = vmatprep.subr.mxu0 0.0
  %3337 = vmatpush1.msra.mxu0 0.0
  %3338 = vmatprep.subr.mxu0 0.0
  %3339 = vmatpush1.msra.mxu0 0.0
  %3340 = vmatprep.subr.mxu0 0.0
  %3341 = vmatpush1.msra.mxu0 0.0
  %3342 = vmatprep.subr.mxu0 0.0
  %3343 = vmatpush1.msra.mxu0 0.0
  %3344 = vmatprep.subr.mxu0 0.0
  %3345 = vmatpush1.msra.mxu0 0.0
  %3346 = vmatprep.subr.mxu0 0.0
  %3347 = vmatpush1.msra.mxu0 0.0
  %3348 = vmatprep.subr.mxu0 0.0
  %3349 = vmatpush1.msra.mxu0 0.0
  %3350 = vmatprep.subr.mxu0 0.0
  %3351 = vmatpush1.msra.mxu0 0.0
  %3352 = vmatprep.subr.mxu0 0.0
  %3353 = vmatpush1.msra.mxu0 0.0
  %3354 = vmatprep.subr.mxu0 0.0
  %3355 = vmatpush1.msra.mxu0 0.0
  %3356 = vmatprep.subr.mxu0 0.0
  %3357 = vmatpush1.msra.mxu0 0.0
  %3358 = vmatprep.subr.mxu0 0.0
  %3359 = vmatpush1.msra.mxu0 0.0
  %3360 = vmatprep.subr.mxu0 0.0
  %3361 = vmatpush1.msra.mxu0 0.0
  %3362 = vmatprep.subr.mxu0 0.0
  %3363 = vmatpush1.msra.mxu0 0.0
  %3364 = vmatprep.subr.mxu0 0.0
  %3365 = vmatpush1.msra.mxu0 0.0
  %3366 = vmatprep.subr.mxu0 0.0
  %3367 = vmatpush1.msra.mxu0 0.0
  %3368 = vmatprep.subr.mxu0 0.0
  %3369 = vmatpush1.msra.mxu0 0.0
  %3370 = vmatprep.subr.mxu0 0.0
  %3371 = vmatpush1.msra.mxu0 0.0
  %3372 = vmatprep.subr.mxu0 0.0
  %3373 = vmatpush1.msra.mxu0 0.0
  %3374 = vmatprep.subr.mxu0 0.0
  %3375 = vmatpush1.msra.mxu0 0.0
  %3376 = vmatprep.subr.mxu0 0.0
  %3377 = vmatpush1.msra.mxu0 0.0
  %3378 = vmatprep.subr.mxu0 0.0
  %3379 = vmatpush1.msra.mxu0 0.0
  %3380 = vmatprep.subr.mxu0 0.0
  %3381 = vmatpush1.msra.mxu0 0.0
  %3382 = vmatprep.subr.mxu0 0.0
  %3383 = vmatpush1.msra.mxu0 0.0
  %3384 = vmatprep.subr.mxu0 0.0
  %3385 = vmatpush1.msra.mxu0 0.0
  %3386 = vmatprep.mubr.f32.mxu0 0.0
  %3387 = vmatmul.mubr.f32.gmra.mrb[0].mxu0 %v1010
  %v3388 = vpop.f32.mrb[0].mxu0
  %v3389 = vadd.f32 0.0, %v3388
  %v3390 = vpop.f32.mrb[0].mxu0
  %3391 = vdwg.mxu0
  %3392 = vmatprep.subr.mxu0 0.0
  %3393 = vmatpush1.msra.mxu0 %v51
  %3394 = vmatprep.subr.mxu0 0.0
  %3395 = vmatpush1.msra.mxu0 %v52
  %3396 = vmatprep.subr.mxu0 0.0
  %3397 = vmatpush1.msra.mxu0 %v53
  %3398 = vmatprep.subr.mxu0 0.0
  %3399 = vmatpush1.msra.mxu0 %v54
  %3400 = vmatprep.subr.mxu0 0.0
  %3401 = vmatpush1.msra.mxu0 %v55
  %3402 = vmatprep.subr.mxu0 0.0
  %3403 = vmatpush1.msra.mxu0 %v56
  %3404 = vmatprep.subr.mxu0 0.0
  %3405 = vmatpush1.msra.mxu0 %v57
  %3406 = vmatprep.subr.mxu0 0.0
  %3407 = vmatpush1.msra.mxu0 %v58
  %3408 = vmatprep.subr.mxu0 0.0
  %3409 = vmatpush1.msra.mxu0 %v59
  %3410 = vmatprep.subr.mxu0 0.0
  %3411 = vmatpush1.msra.mxu0 %v60
  %3412 = vmatprep.subr.mxu0 0.0
  %3413 = vmatpush1.msra.mxu0 %v61
  %3414 = vmatprep.subr.mxu0 0.0
  %3415 = vmatpush1.msra.mxu0 %v62
  %3416 = vmatprep.subr.mxu0 0.0
  %3417 = vmatpush1.msra.mxu0 %v63
  %3418 = vmatprep.subr.mxu0 0.0
  %3419 = vmatpush1.msra.mxu0 %v64
  %3420 = vmatprep.subr.mxu0 0.0
  %3421 = vmatpush1.msra.mxu0 %v65
  %3422 = vmatprep.subr.mxu0 0.0
  %3423 = vmatpush1.msra.mxu0 %v66
  %3424 = vmatprep.subr.mxu0 0.0
  %3425 = vmatpush1.msra.mxu0 0.0
  %3426 = vmatprep.subr.mxu0 0.0
  %3427 = vmatpush1.msra.mxu0 0.0
  %3428 = vmatprep.subr.mxu0 0.0
  %3429 = vmatpush1.msra.mxu0 0.0
  %3430 = vmatprep.subr.mxu0 0.0
  %3431 = vmatpush1.msra.mxu0 0.0
  %3432 = vmatprep.subr.mxu0 0.0
  %3433 = vmatpush1.msra.mxu0 0.0
  %3434 = vmatprep.subr.mxu0 0.0
  %3435 = vmatpush1.msra.mxu0 0.0
  %3436 = vmatprep.subr.mxu0 0.0
  %3437 = vmatpush1.msra.mxu0 0.0
  %3438 = vmatprep.subr.mxu0 0.0
  %3439 = vmatpush1.msra.mxu0 0.0
  %3440 = vmatprep.subr.mxu0 0.0
  %3441 = vmatpush1.msra.mxu0 0.0
  %3442 = vmatprep.subr.mxu0 0.0
  %3443 = vmatpush1.msra.mxu0 0.0
  %3444 = vmatprep.subr.mxu0 0.0
  %3445 = vmatpush1.msra.mxu0 0.0
  %3446 = vmatprep.subr.mxu0 0.0
  %3447 = vmatpush1.msra.mxu0 0.0
  %3448 = vmatprep.subr.mxu0 0.0
  %3449 = vmatpush1.msra.mxu0 0.0
  %3450 = vmatprep.subr.mxu0 0.0
  %3451 = vmatpush1.msra.mxu0 0.0
  %3452 = vmatprep.subr.mxu0 0.0
  %3453 = vmatpush1.msra.mxu0 0.0
  %3454 = vmatprep.subr.mxu0 0.0
  %3455 = vmatpush1.msra.mxu0 0.0
  %3456 = vmatprep.mubr.f32.mxu0 0.0
  %3457 = vmatmul.mubr.f32.gmra.mrb[0].mxu0 %v3389
  %v3458 = vpop.f32.mrb[0].mxu0
  %v3459 = vadd.f32 0.0, %v3458
  %v3460 = vpop.f32.mrb[0].mxu0
  %3461 = vdwg.mxu0
  %v3462 = vmul.f32 %v3459, 0.001953125
  %v3464 = vsel %vm1157, %v3462, 0
  %3466 = vmatprep.subr.mxu0 0.0
  %3467 = vmatpush1.msra.mxu0 %v1163
  %3468 = vmatprep.subr.mxu0 0.0
  %3469 = vmatpush1.msra.mxu0 0.0
  %3470 = vmatprep.subr.mxu0 0.0
  %3471 = vmatpush1.msra.mxu0 0.0
  %3472 = vmatprep.subr.mxu0 0.0
  %3473 = vmatpush1.msra.mxu0 0.0
  %3474 = vmatprep.subr.mxu0 0.0
  %3475 = vmatpush1.msra.mxu0 0.0
  %3476 = vmatprep.subr.mxu0 0.0
  %3477 = vmatpush1.msra.mxu0 0.0
  %3478 = vmatprep.subr.mxu0 0.0
  %3479 = vmatpush1.msra.mxu0 0.0
  %3480 = vmatprep.subr.mxu0 0.0
  %3481 = vmatpush1.msra.mxu0 0.0
  %3482 = vmatprep.subr.mxu0 0.0
  %3483 = vmatpush1.msra.mxu0 0.0
  %3484 = vmatprep.subr.mxu0 0.0
  %3485 = vmatpush1.msra.mxu0 0.0
  %3486 = vmatprep.subr.mxu0 0.0
  %3487 = vmatpush1.msra.mxu0 0.0
  %3488 = vmatprep.subr.mxu0 0.0
  %3489 = vmatpush1.msra.mxu0 0.0
  %3490 = vmatprep.subr.mxu0 0.0
  %3491 = vmatpush1.msra.mxu0 0.0
  %3492 = vmatprep.subr.mxu0 0.0
  %3493 = vmatpush1.msra.mxu0 0.0
  %3494 = vmatprep.subr.mxu0 0.0
  %3495 = vmatpush1.msra.mxu0 0.0
  %3496 = vmatprep.subr.mxu0 0.0
  %3497 = vmatpush1.msra.mxu0 0.0
  %3498 = vmatprep.subr.mxu0 0.0
  %3499 = vmatpush1.msra.mxu0 0.0
  %3500 = vmatprep.subr.mxu0 0.0
  %3501 = vmatpush1.msra.mxu0 0.0
  %3502 = vmatprep.subr.mxu0 0.0
  %3503 = vmatpush1.msra.mxu0 0.0
  %3504 = vmatprep.subr.mxu0 0.0
  %3505 = vmatpush1.msra.mxu0 0.0
  %3506 = vmatprep.subr.mxu0 0.0
  %3507 = vmatpush1.msra.mxu0 0.0
  %3508 = vmatprep.subr.mxu0 0.0
  %3509 = vmatpush1.msra.mxu0 0.0
  %3510 = vmatprep.subr.mxu0 0.0
  %3511 = vmatpush1.msra.mxu0 0.0
  %3512 = vmatprep.subr.mxu0 0.0
  %3513 = vmatpush1.msra.mxu0 0.0
  %3514 = vmatprep.subr.mxu0 0.0
  %3515 = vmatpush1.msra.mxu0 0.0
  %3516 = vmatprep.subr.mxu0 0.0
  %3517 = vmatpush1.msra.mxu0 0.0
  %3518 = vmatprep.subr.mxu0 0.0
  %3519 = vmatpush1.msra.mxu0 0.0
  %3520 = vmatprep.subr.mxu0 0.0
  %3521 = vmatpush1.msra.mxu0 0.0
  %3522 = vmatprep.subr.mxu0 0.0
  %3523 = vmatpush1.msra.mxu0 0.0
  %3524 = vmatprep.subr.mxu0 0.0
  %3525 = vmatpush1.msra.mxu0 0.0
  %3526 = vmatprep.subr.mxu0 0.0
  %3527 = vmatpush1.msra.mxu0 0.0
  %3528 = vmatprep.subr.mxu0 0.0
  %3529 = vmatpush1.msra.mxu0 0.0
  %3530 = vmatprep.mubr.f32.mxu0 0.0
  %3531 = vmatmul.mubr.f32.gmra.mrb[0].mxu0 %v3464
  %v3532 = vpop.f32.mrb[0].mxu0
  %v3533 = vadd.f32 0.0, %v3532
  %v3534 = vpop.f32.mrb[0].mxu0
  %3535 = vdwg.mxu0
  %v3536 = vlaneseq
  %v3537 = vshrl.u32 %v3536, 7
  %v3538 = vsub.s32 0, %v3537
  %v3539 = vrot.slane %v3533, %v3538
  %v3540 = vsub.f32 %v3314, %v3539
  %v3541 = vsub.f32 %v3315, %v3539
  %v3542 = vsub.f32 %v3316, %v3539
  %v3543 = vsub.f32 %v3317, %v3539
  %v3544 = vsub.f32 %v3318, %v3539
  %v3545 = vmul.f32 %v3540, %v3540
  %v3546 = vmul.f32 %v3541, %v3541
  %v3547 = vmul.f32 %v3542, %v3542
  %v3548 = vmul.f32 %v3543, %v3543
  %v3549 = vmul.f32 %v3544, %v3544
  %v3551 = vsel %vm1012, %v3549, 0
  %3553 = vmatprep.subr.mxu0 0.0
  %3554 = vmatpush1.msra.mxu0 %v3545
  %3555 = vmatprep.subr.mxu0 0.0
  %3556 = vmatpush1.msra.mxu0 %v3546
  %3557 = vmatprep.subr.mxu0 0.0
  %3558 = vmatpush1.msra.mxu0 %v3547
  %3559 = vmatprep.subr.mxu0 0.0
  %3560 = vmatpush1.msra.mxu0 %v3548
  %3561 = vmatprep.subr.mxu0 0.0
  %3562 = vmatpush1.msra.mxu0 %v3551
  %3563 = vmatprep.subr.mxu0 0.0
  %3564 = vmatpush1.msra.mxu0 0.0
  %3565 = vmatprep.subr.mxu0 0.0
  %3566 = vmatpush1.msra.mxu0 0.0
  %3567 = vmatprep.subr.mxu0 0.0
  %3568 = vmatpush1.msra.mxu0 0.0
  %3569 = vmatprep.subr.mxu0 0.0
  %3570 = vmatpush1.msra.mxu0 0.0
  %3571 = vmatprep.subr.mxu0 0.0
  %3572 = vmatpush1.msra.mxu0 0.0
  %3573 = vmatprep.subr.mxu0 0.0
  %3574 = vmatpush1.msra.mxu0 0.0
  %3575 = vmatprep.subr.mxu0 0.0
  %3576 = vmatpush1.msra.mxu0 0.0
  %3577 = vmatprep.subr.mxu0 0.0
  %3578 = vmatpush1.msra.mxu0 0.0
  %3579 = vmatprep.subr.mxu0 0.0
  %3580 = vmatpush1.msra.mxu0 0.0
  %3581 = vmatprep.subr.mxu0 0.0
  %3582 = vmatpush1.msra.mxu0 0.0
  %3583 = vmatprep.subr.mxu0 0.0
  %3584 = vmatpush1.msra.mxu0 0.0
  %3585 = vmatprep.subr.mxu0 0.0
  %3586 = vmatpush1.msra.mxu0 0.0
  %3587 = vmatprep.subr.mxu0 0.0
  %3588 = vmatpush1.msra.mxu0 0.0
  %3589 = vmatprep.subr.mxu0 0.0
  %3590 = vmatpush1.msra.mxu0 0.0
  %3591 = vmatprep.subr.mxu0 0.0
  %3592 = vmatpush1.msra.mxu0 0.0
  %3593 = vmatprep.subr.mxu0 0.0
  %3594 = vmatpush1.msra.mxu0 0.0
  %3595 = vmatprep.subr.mxu0 0.0
  %3596 = vmatpush1.msra.mxu0 0.0
  %3597 = vmatprep.subr.mxu0 0.0
  %3598 = vmatpush1.msra.mxu0 0.0
  %3599 = vmatprep.subr.mxu0 0.0
  %3600 = vmatpush1.msra.mxu0 0.0
  %3601 = vmatprep.subr.mxu0 0.0
  %3602 = vmatpush1.msra.mxu0 0.0
  %3603 = vmatprep.subr.mxu0 0.0
  %3604 = vmatpush1.msra.mxu0 0.0
  %3605 = vmatprep.subr.mxu0 0.0
  %3606 = vmatpush1.msra.mxu0 0.0
  %3607 = vmatprep.subr.mxu0 0.0
  %3608 = vmatpush1.msra.mxu0 0.0
  %3609 = vmatprep.subr.mxu0 0.0
  %3610 = vmatpush1.msra.mxu0 0.0
  %3611 = vmatprep.subr.mxu0 0.0
  %3612 = vmatpush1.msra.mxu0 0.0
  %3613 = vmatprep.subr.mxu0 0.0
  %3614 = vmatpush1.msra.mxu0 0.0
  %3615 = vmatprep.subr.mxu0 0.0
  %3616 = vmatpush1.msra.mxu0 0.0
  %3617 = vmatprep.mubr.f32.mxu0 0.0
  %3618 = vmatmul.mubr.f32.gmra.mrb[0].mxu0 %v1010
  %v3619 = vpop.f32.mrb[0].mxu0
  %v3620 = vadd.f32 0.0, %v3619
  %v3621 = vpop.f32.mrb[0].mxu0
  %3622 = vdwg.mxu0
  %3623 = vmatprep.subr.mxu0 0.0
  %3624 = vmatpush1.msra.mxu0 %v51
  %3625 = vmatprep.subr.mxu0 0.0
  %3626 = vmatpush1.msra.mxu0 %v52
  %3627 = vmatprep.subr.mxu0 0.0
  %3628 = vmatpush1.msra.mxu0 %v53
  %3629 = vmatprep.subr.mxu0 0.0
  %3630 = vmatpush1.msra.mxu0 %v54
  %3631 = vmatprep.subr.mxu0 0.0
  %3632 = vmatpush1.msra.mxu0 %v55
  %3633 = vmatprep.subr.mxu0 0.0
  %3634 = vmatpush1.msra.mxu0 %v56
  %3635 = vmatprep.subr.mxu0 0.0
  %3636 = vmatpush1.msra.mxu0 %v57
  %3637 = vmatprep.subr.mxu0 0.0
  %3638 = vmatpush1.msra.mxu0 %v58
  %3639 = vmatprep.subr.mxu0 0.0
  %3640 = vmatpush1.msra.mxu0 %v59
  %3641 = vmatprep.subr.mxu0 0.0
  %3642 = vmatpush1.msra.mxu0 %v60
  %3643 = vmatprep.subr.mxu0 0.0
  %3644 = vmatpush1.msra.mxu0 %v61
  %3645 = vmatprep.subr.mxu0 0.0
  %3646 = vmatpush1.msra.mxu0 %v62
  %3647 = vmatprep.subr.mxu0 0.0
  %3648 = vmatpush1.msra.mxu0 %v63
  %3649 = vmatprep.subr.mxu0 0.0
  %3650 = vmatpush1.msra.mxu0 %v64
  %3651 = vmatprep.subr.mxu0 0.0
  %3652 = vmatpush1.msra.mxu0 %v65
  %3653 = vmatprep.subr.mxu0 0.0
  %3654 = vmatpush1.msra.mxu0 %v66
  %3655 = vmatprep.subr.mxu0 0.0
  %3656 = vmatpush1.msra.mxu0 0.0
  %3657 = vmatprep.subr.mxu0 0.0
  %3658 = vmatpush1.msra.mxu0 0.0
  %3659 = vmatprep.subr.mxu0 0.0
  %3660 = vmatpush1.msra.mxu0 0.0
  %3661 = vmatprep.subr.mxu0 0.0
  %3662 = vmatpush1.msra.mxu0 0.0
  %3663 = vmatprep.subr.mxu0 0.0
  %3664 = vmatpush1.msra.mxu0 0.0
  %3665 = vmatprep.subr.mxu0 0.0
  %3666 = vmatpush1.msra.mxu0 0.0
  %3667 = vmatprep.subr.mxu0 0.0
  %3668 = vmatpush1.msra.mxu0 0.0
  %3669 = vmatprep.subr.mxu0 0.0
  %3670 = vmatpush1.msra.mxu0 0.0
  %3671 = vmatprep.subr.mxu0 0.0
  %3672 = vmatpush1.msra.mxu0 0.0
  %3673 = vmatprep.subr.mxu0 0.0
  %3674 = vmatpush1.msra.mxu0 0.0
  %3675 = vmatprep.subr.mxu0 0.0
  %3676 = vmatpush1.msra.mxu0 0.0
  %3677 = vmatprep.subr.mxu0 0.0
  %3678 = vmatpush1.msra.mxu0 0.0
  %3679 = vmatprep.subr.mxu0 0.0
  %3680 = vmatpush1.msra.mxu0 0.0
  %3681 = vmatprep.subr.mxu0 0.0
  %3682 = vmatpush1.msra.mxu0 0.0
  %3683 = vmatprep.subr.mxu0 0.0
  %3684 = vmatpush1.msra.mxu0 0.0
  %3685 = vmatprep.subr.mxu0 0.0
  %3686 = vmatpush1.msra.mxu0 0.0
  %3687 = vmatprep.mubr.f32.mxu0 0.0
  %3688 = vmatmul.mubr.f32.gmra.mrb[0].mxu0 %v3620
  %v3689 = vpop.f32.mrb[0].mxu0
  %v3690 = vadd.f32 0.0, %v3689
  %v3691 = vpop.f32.mrb[0].mxu0
  %3692 = vdwg.mxu0
  %v3693 = vmul.f32 %v3690, 0.001953125
  %v3694 = vld [vmem:[%s8 + $0x2] sm:$0x1]
  %v3695 = vadd.f32 %v3693, 1e-05
  %v3696 = vrsqrt.pop %v3695
  %v3697 = vmul.f32 %v3694, %v3696
  %v3698 = vld [vmem:[%s9 + $0x2] sm:$0x1]
  %v3699 = vmul.f32 %v3462, %v3697
  %v3700 = vsub.f32 %v3698, %v3699
  %v3702 = vsel %vm1157, %v3697, 0
  %3704 = vmatprep.subr.mxu0 0.0
  %3705 = vmatpush1.msra.mxu0 %v1163
  %3706 = vmatprep.subr.mxu0 0.0
  %3707 = vmatpush1.msra.mxu0 0.0
  %3708 = vmatprep.subr.mxu0 0.0
  %3709 = vmatpush1.msra.mxu0 0.0
  %3710 = vmatprep.subr.mxu0 0.0
  %3711 = vmatpush1.msra.mxu0 0.0
  %3712 = vmatprep.subr.mxu0 0.0
  %3713 = vmatpush1.msra.mxu0 0.0
  %3714 = vmatprep.subr.mxu0 0.0
  %3715 = vmatpush1.msra.mxu0 0.0
  %3716 = vmatprep.subr.mxu0 0.0
  %3717 = vmatpush1.msra.mxu0 0.0
  %3718 = vmatprep.subr.mxu0 0.0
  %3719 = vmatpush1.msra.mxu0 0.0
  %3720 = vmatprep.subr.mxu0 0.0
  %3721 = vmatpush1.msra.mxu0 0.0
  %3722 = vmatprep.subr.mxu0 0.0
  %3723 = vmatpush1.msra.mxu0 0.0
  %3724 = vmatprep.subr.mxu0 0.0
  %3725 = vmatpush1.msra.mxu0 0.0
  %3726 = vmatprep.subr.mxu0 0.0
  %3727 = vmatpush1.msra.mxu0 0.0
  %3728 = vmatprep.subr.mxu0 0.0
  %3729 = vmatpush1.msra.mxu0 0.0
  %3730 = vmatprep.subr.mxu0 0.0
  %3731 = vmatpush1.msra.mxu0 0.0
  %3732 = vmatprep.subr.mxu0 0.0
  %3733 = vmatpush1.msra.mxu0 0.0
  %3734 = vmatprep.subr.mxu0 0.0
  %3735 = vmatpush1.msra.mxu0 0.0
  %3736 = vmatprep.subr.mxu0 0.0
  %3737 = vmatpush1.msra.mxu0 0.0
  %3738 = vmatprep.subr.mxu0 0.0
  %3739 = vmatpush1.msra.mxu0 0.0
  %3740 = vmatprep.subr.mxu0 0.0
  %3741 = vmatpush1.msra.mxu0 0.0
  %3742 = vmatprep.subr.mxu0 0.0
  %3743 = vmatpush1.msra.mxu0 0.0
  %3744 = vmatprep.subr.mxu0 0.0
  %3745 = vmatpush1.msra.mxu0 0.0
  %3746 = vmatprep.subr.mxu0 0.0
  %3747 = vmatpush1.msra.mxu0 0.0
  %3748 = vmatprep.subr.mxu0 0.0
  %3749 = vmatpush1.msra.mxu0 0.0
  %3750 = vmatprep.subr.mxu0 0.0
  %3751 = vmatpush1.msra.mxu0 0.0
  %3752 = vmatprep.subr.mxu0 0.0
  %3753 = vmatpush1.msra.mxu0 0.0
  %3754 = vmatprep.subr.mxu0 0.0
  %3755 = vmatpush1.msra.mxu0 0.0
  %3756 = vmatprep.subr.mxu0 0.0
  %3757 = vmatpush1.msra.mxu0 0.0
  %3758 = vmatprep.subr.mxu0 0.0
  %3759 = vmatpush1.msra.mxu0 0.0
  %3760 = vmatprep.subr.mxu0 0.0
  %3761 = vmatpush1.msra.mxu0 0.0
  %3762 = vmatprep.subr.mxu0 0.0
  %3763 = vmatpush1.msra.mxu0 0.0
  %3764 = vmatprep.subr.mxu0 0.0
  %3765 = vmatpush1.msra.mxu0 0.0
  %3766 = vmatprep.subr.mxu0 0.0
  %3767 = vmatpush1.msra.mxu0 0.0
  %3768 = vmatprep.mubr.f32.mxu0 0.0
  %3769 = vmatmul.mubr.f32.gmra.mrb[0].mxu0 %v3702
  %v3770 = vpop.f32.mrb[0].mxu0
  %v3771 = vadd.f32 0.0, %v3770
  %v3772 = vpop.f32.mrb[0].mxu0
  %3773 = vdwg.mxu0
  %v3774 = vlaneseq
  %v3775 = vshrl.u32 %v3774, 7
  %v3776 = vsub.s32 0, %v3775
  %v3777 = vrot.slane %v3771, %v3776
  %v3778 = vmul.f32 %v3314, %v3777
  %v3779 = vmul.f32 %v3315, %v3777
  %v3780 = vmul.f32 %v3316, %v3777
  %v3781 = vmul.f32 %v3317, %v3777
  %v3782 = vmul.f32 %v3318, %v3777
  %v3784 = vsel %vm1157, %v3700, 0
  %3786 = vmatprep.subr.mxu0 0.0
  %3787 = vmatpush1.msra.mxu0 %v1163
  %3788 = vmatprep.subr.mxu0 0.0
  %3789 = vmatpush1.msra.mxu0 0.0
  %3790 = vmatprep.subr.mxu0 0.0
  %3791 = vmatpush1.msra.mxu0 0.0
  %3792 = vmatprep.subr.mxu0 0.0
  %3793 = vmatpush1.msra.mxu0 0.0
  %3794 = vmatprep.subr.mxu0 0.0
  %3795 = vmatpush1.msra.mxu0 0.0
  %3796 = vmatprep.subr.mxu0 0.0
  %3797 = vmatpush1.msra.mxu0 0.0
  %3798 = vmatprep.subr.mxu0 0.0
  %3799 = vmatpush1.msra.mxu0 0.0
  %3800 = vmatprep.subr.mxu0 0.0
  %3801 = vmatpush1.msra.mxu0 0.0
  %3802 = vmatprep.subr.mxu0 0.0
  %3803 = vmatpush1.msra.mxu0 0.0
  %3804 = vmatprep.subr.mxu0 0.0
  %3805 = vmatpush1.msra.mxu0 0.0
  %3806 = vmatprep.subr.mxu0 0.0
  %3807 = vmatpush1.msra.mxu0 0.0
  %3808 = vmatprep.subr.mxu0 0.0
  %3809 = vmatpush1.msra.mxu0 0.0
  %3810 = vmatprep.subr.mxu0 0.0
  %3811 = vmatpush1.msra.mxu0 0.0
  %3812 = vmatprep.subr.mxu0 0.0
  %3813 = vmatpush1.msra.mxu0 0.0
  %3814 = vmatprep.subr.mxu0 0.0
  %3815 = vmatpush1.msra.mxu0 0.0
  %3816 = vmatprep.subr.mxu0 0.0
  %3817 = vmatpush1.msra.mxu0 0.0
  %3818 = vmatprep.subr.mxu0 0.0
  %3819 = vmatpush1.msra.mxu0 0.0
  %3820 = vmatprep.subr.mxu0 0.0
  %3821 = vmatpush1.msra.mxu0 0.0
  %3822 = vmatprep.subr.mxu0 0.0
  %3823 = vmatpush1.msra.mxu0 0.0
  %3824 = vmatprep.subr.mxu0 0.0
  %3825 = vmatpush1.msra.mxu0 0.0
  %3826 = vmatprep.subr.mxu0 0.0
  %3827 = vmatpush1.msra.mxu0 0.0
  %3828 = vmatprep.subr.mxu0 0.0
  %3829 = vmatpush1.msra.mxu0 0.0
  %3830 = vmatprep.subr.mxu0 0.0
  %3831 = vmatpush1.msra.mxu0 0.0
  %3832 = vmatprep.subr.mxu0 0.0
  %3833 = vmatpush1.msra.mxu0 0.0
  %3834 = vmatprep.subr.mxu0 0.0
  %3835 = vmatpush1.msra.mxu0 0.0
  %3836 = vmatprep.subr.mxu0 0.0
  %3837 = vmatpush1.msra.mxu0 0.0
  %3838 = vmatprep.subr.mxu0 0.0
  %3839 = vmatpush1.msra.mxu0 0.0
  %3840 = vmatprep.subr.mxu0 0.0
  %3841 = vmatpush1.msra.mxu0 0.0
  %3842 = vmatprep.subr.mxu0 0.0
  %3843 = vmatpush1.msra.mxu0 0.0
  %3844 = vmatprep.subr.mxu0 0.0
  %3845 = vmatpush1.msra.mxu0 0.0
  %3846 = vmatprep.subr.mxu0 0.0
  %3847 = vmatpush1.msra.mxu0 0.0
  %3848 = vmatprep.subr.mxu0 0.0
  %3849 = vmatpush1.msra.mxu0 0.0
  %3850 = vmatprep.mubr.f32.mxu0 0.0
  %3851 = vmatmul.mubr.f32.gmra.mrb[0].mxu0 %v3784
  %v3852 = vpop.f32.mrb[0].mxu0
  %v3853 = vadd.f32 0.0, %v3852
  %v3854 = vpop.f32.mrb[0].mxu0
  %3855 = vdwg.mxu0
  %v3856 = vlaneseq
  %v3857 = vshrl.u32 %v3856, 7
  %v3858 = vsub.s32 0, %v3857
  %v3859 = vrot.slane %v3853, %v3858
  %v3860 = vadd.f32 %v3778, %v3859
  %v3861 = vadd.f32 %v3779, %v3859
  %v3862 = vadd.f32 %v3780, %v3859
  %v3863 = vadd.f32 %v3781, %v3859
  %v3864 = vadd.f32 %v3782, %v3859
  %v3865 = vmul.f32 %v3860, 0.5
  %v3866 = vmul.f32 %v3861, 0.5
  %v3867 = vmul.f32 %v3862, 0.5
  %v3868 = vmul.f32 %v3863, 0.5
  %v3869 = vmul.f32 %v3864, 0.5
  %v3870 = vmul.f32 %v3860, 0.70710677
  %v3871 = vmul.f32 %v3861, 0.70710677
  %v3872 = vmul.f32 %v3862, 0.70710677
  %v3873 = vmul.f32 %v3863, 0.70710677
  %v3874 = vmul.f32 %v3864, 0.70710677
  %v3875 = vand.u32 2147483647, %v3870
  %v3876 = vand.u32 2147483647, %v3871
  %v3877 = vand.u32 2147483647, %v3872
  %v3878 = vand.u32 2147483647, %v3873
  %v3879 = vand.u32 2147483647, %v3874
  %v3880 = vmul.f32 %v3875, 0.3275911
  %v3881 = vmul.f32 %v3876, 0.3275911
  %v3882 = vmul.f32 %v3877, 0.3275911
  %v3883 = vmul.f32 %v3878, 0.3275911
  %v3884 = vmul.f32 %v3879, 0.3275911
  %v3885 = vadd.f32 %v3880, 1.0
  %v3886 = vadd.f32 %v3881, 1.0
  %v3887 = vadd.f32 %v3882, 1.0
  %v3888 = vadd.f32 %v3883, 1.0
  %v3889 = vadd.f32 %v3884, 1.0
  %v3890 = vrcp.pop %v3885
  %v3891 = vmul.f32 1.0, %v3890
  %v3892 = vrcp.pop %v3886
  %v3893 = vmul.f32 1.0, %v3892
  %v3894 = vrcp.pop %v3887
  %v3895 = vmul.f32 1.0, %v3894
  %v3896 = vrcp.pop %v3888
  %v3897 = vmul.f32 1.0, %v3896
  %v3898 = vrcp.pop %v3889
  %v3899 = vmul.f32 1.0, %v3898
  %v3900 = vmul.f32 %v3891, 1.0614054
  %v3901 = vmul.f32 %v3893, 1.0614054
  %v3902 = vmul.f32 %v3895, 1.0614054
  %v3903 = vmul.f32 %v3897, 1.0614054
  %v3904 = vmul.f32 %v3899, 1.0614054
  %v3905 = vadd.f32 %v3900, -1.4531521
  %v3906 = vadd.f32 %v3901, -1.4531521
  %v3907 = vadd.f32 %v3902, -1.4531521
  %v3908 = vadd.f32 %v3903, -1.4531521
  %v3909 = vadd.f32 %v3904, -1.4531521
  %v3910 = vmul.f32 %v3905, %v3891
  %v3911 = vmul.f32 %v3906, %v3893
  %v3912 = vmul.f32 %v3907, %v3895
  %v3913 = vmul.f32 %v3908, %v3897
  %v3914 = vmul.f32 %v3909, %v3899
  %v3915 = vadd.f32 %v3910, 1.4214138
  %v3916 = vadd.f32 %v3911, 1.4214138
  %v3917 = vadd.f32 %v3912, 1.4214138
  %v3918 = vadd.f32 %v3913, 1.4214138
  %v3919 = vadd.f32 %v3914, 1.4214138
  %v3920 = vmul.f32 %v3915, %v3891
  %v3921 = vmul.f32 %v3916, %v3893
  %v3922 = vmul.f32 %v3917, %v3895
  %v3923 = vmul.f32 %v3918, %v3897
  %v3924 = vmul.f32 %v3919, %v3899
  %v3925 = vadd.f32 %v3920, -0.28449672
  %v3926 = vadd.f32 %v3921, -0.28449672
  %v3927 = vadd.f32 %v3922, -0.28449672
  %v3928 = vadd.f32 %v3923, -0.28449672
  %v3929 = vadd.f32 %v3924, -0.28449672
  %v3930 = vmul.f32 %v3925, %v3891
  %v3931 = vmul.f32 %v3926, %v3893
  %v3932 = vmul.f32 %v3927, %v3895
  %v3933 = vmul.f32 %v3928, %v3897
  %v3934 = vmul.f32 %v3929, %v3899
  %v3935 = vadd.f32 %v3930, 0.2548296
  %v3936 = vadd.f32 %v3931, 0.2548296
  %v3937 = vadd.f32 %v3932, 0.2548296
  %v3938 = vadd.f32 %v3933, 0.2548296
  %v3939 = vadd.f32 %v3934, 0.2548296
  %v3940 = vmul.f32 %v3935, %v3891
  %v3941 = vmul.f32 %v3936, %v3893
  %v3942 = vmul.f32 %v3937, %v3895
  %v3943 = vmul.f32 %v3938, %v3897
  %v3944 = vmul.f32 %v3939, %v3899
  %v3945 = vsub.f32 0.0, %v3875
  %v3946 = vsub.f32 0.0, %v3876
  %v3947 = vsub.f32 0.0, %v3877
  %v3948 = vsub.f32 0.0, %v3878
  %v3949 = vsub.f32 0.0, %v3879
  %v3950 = vmul.f32 %v3945, %v3875
  %v3951 = vmul.f32 %v3946, %v3876
  %v3952 = vmul.f32 %v3947, %v3877
  %v3953 = vmul.f32 %v3948, %v3878
  %v3954 = vmul.f32 %v3949, %v3879
  %v3955 = vmul.f32 %v3950, 1.442695
  %v3956 = vpow.pop %v3955
  %v3957 = vmul.f32 %v3951, 1.442695
  %v3958 = vpow.pop %v3957
  %v3959 = vmul.f32 %v3952, 1.442695
  %v3960 = vpow.pop %v3959
  %v3961 = vmul.f32 %v3953, 1.442695
  %v3962 = vpow.pop %v3961
  %v3963 = vmul.f32 %v3954, 1.442695
  %v3964 = vpow.pop %v3963
  %v3965 = vmul.f32 %v3940, %v3956
  %v3966 = vmul.f32 %v3941, %v3958
  %v3967 = vmul.f32 %v3942, %v3960
  %v3968 = vmul.f32 %v3943, %v3962
  %v3969 = vmul.f32 %v3944, %v3964
  %v3970 = vsub.f32 1.0, %v3965
  %v3971 = vsub.f32 1.0, %v3966
  %v3972 = vsub.f32 1.0, %v3967
  %v3973 = vsub.f32 1.0, %v3968
  %v3974 = vsub.f32 1.0, %v3969
  %vm3975 = vcmp.lt.f32.partialorder %v3870, 0.0
  %vm3976 = vcmp.lt.f32.partialorder %v3871, 0.0
  %vm3977 = vcmp.lt.f32.partialorder %v3872, 0.0
  %vm3978 = vcmp.lt.f32.partialorder %v3873, 0.0
  %vm3979 = vcmp.lt.f32.partialorder %v3874, 0.0
  %v3980 = vsub.f32 0.0, %v3970
  %v3981 = vsub.f32 0.0, %v3971
  %v3982 = vsub.f32 0.0, %v3972
  %v3983 = vsub.f32 0.0, %v3973
  %v3984 = vsub.f32 0.0, %v3974
  %v3985 = vsel %vm3975, %v3980, %v3970
  %v3986 = vsel %vm3976, %v3981, %v3971
  %v3987 = vsel %vm3977, %v3982, %v3972
  %v3988 = vsel %vm3978, %v3983, %v3973
  %v3989 = vsel %vm3979, %v3984, %v3974
  %v3990 = vadd.f32 %v3985, 1.0
  %v3991 = vadd.f32 %v3986, 1.0
  %v3992 = vadd.f32 %v3987, 1.0
  %v3993 = vadd.f32 %v3988, 1.0
  %v3994 = vadd.f32 %v3989, 1.0
  %v3995 = vmul.f32 %v3865, %v3990
  %v3996 = vmul.f32 %v3866, %v3991
  %v3997 = vmul.f32 %v3867, %v3992
  %v3998 = vmul.f32 %v3868, %v3993
  %v3999 = vmul.f32 %v3869, %v3994
  %v4001 = vsel %vm1012, %v3999, 0
  %4003 = vmatprep.subr.mxu0 0.0
  %4004 = vmatpush1.msra.mxu0 %v3995
  %4005 = vmatprep.subr.mxu0 0.0
  %4006 = vmatpush1.msra.mxu0 %v3996
  %4007 = vmatprep.subr.mxu0 0.0
  %4008 = vmatpush1.msra.mxu0 %v3997
  %4009 = vmatprep.subr.mxu0 0.0
  %4010 = vmatpush1.msra.mxu0 %v3998
  %4011 = vmatprep.subr.mxu0 0.0
  %4012 = vmatpush1.msra.mxu0 %v4001
  %4013 = vmatprep.subr.mxu0 0.0
  %4014 = vmatpush1.msra.mxu0 0.0
  %4015 = vmatprep.subr.mxu0 0.0
  %4016 = vmatpush1.msra.mxu0 0.0
  %4017 = vmatprep.subr.mxu0 0.0
  %4018 = vmatpush1.msra.mxu0 0.0
  %4019 = vmatprep.subr.mxu0 0.0
  %4020 = vmatpush1.msra.mxu0 0.0
  %4021 = vmatprep.subr.mxu0 0.0
  %4022 = vmatpush1.msra.mxu0 0.0
  %4023 = vmatprep.subr.mxu0 0.0
  %4024 = vmatpush1.msra.mxu0 0.0
  %4025 = vmatprep.subr.mxu0 0.0
  %4026 = vmatpush1.msra.mxu0 0.0
  %4027 = vmatprep.subr.mxu0 0.0
  %4028 = vmatpush1.msra.mxu0 0.0
  %4029 = vmatprep.subr.mxu0 0.0
  %4030 = vmatpush1.msra.mxu0 0.0
  %4031 = vmatprep.subr.mxu0 0.0
  %4032 = vmatpush1.msra.mxu0 0.0
  %4033 = vmatprep.subr.mxu0 0.0
  %4034 = vmatpush1.msra.mxu0 0.0
  %4035 = vmatprep.subr.mxu0 0.0
  %4036 = vmatpush1.msra.mxu0 0.0
  %4037 = vmatprep.subr.mxu0 0.0
  %4038 = vmatpush1.msra.mxu0 0.0
  %4039 = vmatprep.subr.mxu0 0.0
  %4040 = vmatpush1.msra.mxu0 0.0
  %4041 = vmatprep.subr.mxu0 0.0
  %4042 = vmatpush1.msra.mxu0 0.0
  %4043 = vmatprep.subr.mxu0 0.0
  %4044 = vmatpush1.msra.mxu0 0.0
  %4045 = vmatprep.subr.mxu0 0.0
  %4046 = vmatpush1.msra.mxu0 0.0
  %4047 = vmatprep.subr.mxu0 0.0
  %4048 = vmatpush1.msra.mxu0 0.0
  %4049 = vmatprep.subr.mxu0 0.0
  %4050 = vmatpush1.msra.mxu0 0.0
  %4051 = vmatprep.subr.mxu0 0.0
  %4052 = vmatpush1.msra.mxu0 0.0
  %4053 = vmatprep.subr.mxu0 0.0
  %4054 = vmatpush1.msra.mxu0 0.0
  %4055 = vmatprep.subr.mxu0 0.0
  %4056 = vmatpush1.msra.mxu0 0.0
  %4057 = vmatprep.subr.mxu0 0.0
  %4058 = vmatpush1.msra.mxu0 0.0
  %4059 = vmatprep.subr.mxu0 0.0
  %4060 = vmatpush1.msra.mxu0 0.0
  %4061 = vmatprep.subr.mxu0 0.0
  %4062 = vmatpush1.msra.mxu0 0.0
  %4063 = vmatprep.subr.mxu0 0.0
  %4064 = vmatpush1.msra.mxu0 0.0
  %4065 = vmatprep.subr.mxu0 0.0
  %4066 = vmatpush1.msra.mxu0 0.0
  %4067 = vmatprep.mubr.f32.mxu0 0.0
  %4068 = vmatmul.mubr.f32.gmra.mrb[0].mxu0 %v1700
  %v4069 = vpop.f32.mrb[0].mxu0
  %v4070 = vadd.f32 0.0, %v4069
  %v4071 = vpop.f32.mrb[0].mxu0
  %4072 = vmatprep.mubr.f32.mxu0 0.0
  %4073 = vmatmul.mubr.f32.gmra.mrb[0].mxu0 %v1703
  %v4074 = vpop.f32.mrb[0].mxu0
  %v4075 = vadd.f32 0.0, %v4074
  %v4076 = vpop.f32.mrb[0].mxu0
  %4077 = vmatprep.mubr.f32.mxu0 0.0
  %4078 = vmatmul.mubr.f32.gmra.mrb[0].mxu0 %v1706
  %v4079 = vpop.f32.mrb[0].mxu0
  %v4080 = vadd.f32 0.0, %v4079
  %v4081 = vpop.f32.mrb[0].mxu0
  %4082 = vmatprep.mubr.f32.mxu0 0.0
  %4083 = vmatmul.mubr.f32.gmra.mrb[0].mxu0 %v1709
  %v4084 = vpop.f32.mrb[0].mxu0
  %v4085 = vadd.f32 0.0, %v4084
  %v4086 = vpop.f32.mrb[0].mxu0
  %4087 = vmatprep.mubr.f32.mxu0 0.0
  %4088 = vmatmul.mubr.f32.gmra.mrb[0].mxu0 %v1712
  %v4089 = vpop.f32.mrb[0].mxu0
  %v4090 = vadd.f32 0.0, %v4089
  %v4091 = vpop.f32.mrb[0].mxu0
  %4092 = vdwg.mxu0
  %s4093 = scalar_lea.vmem %s6, 1152
  %v4094 = vld [vmem:[%s4093] sm:$0xff]
  %v4095 = vld [vmem:[%s4093 + $0x8] sm:$0xff]
  %v4096 = vld [vmem:[%s4093 + $0x10] sm:$0xff]
  %v4097 = vld [vmem:[%s4093 + $0x18] sm:$0xff]
  %v4098 = vld [vmem:[%s4093 + $0x20] sm:$0xff]
  %v4099 = vld [vmem:[%s4093 + $0x28] sm:$0xff]
  %v4100 = vld [vmem:[%s4093 + $0x30] sm:$0xff]
  %v4101 = vld [vmem:[%s4093 + $0x38] sm:$0xff]
  %v4102 = vld [vmem:[%s4093 + $0x40] sm:$0xff]
  %v4103 = vld [vmem:[%s4093 + $0x48] sm:$0xff]
  %v4104 = vld [vmem:[%s4093 + $0x50] sm:$0xff]
  %v4105 = vld [vmem:[%s4093 + $0x58] sm:$0xff]
  %v4106 = vld [vmem:[%s4093 + $0x60] sm:$0xff]
  %v4107 = vld [vmem:[%s4093 + $0x68] sm:$0xff]
  %v4108 = vld [vmem:[%s4093 + $0x70] sm:$0xff]
  %v4109 = vld [vmem:[%s4093 + $0x78] sm:$0xff]
  %s4110 = scalar_lea.vmem %s6, 1280
  %v4111 = vld [vmem:[%s4110] sm:$0xff]
  %v4112 = vld [vmem:[%s4110 + $0x8] sm:$0xff]
  %v4113 = vld [vmem:[%s4110 + $0x10] sm:$0xff]
  %v4114 = vld [vmem:[%s4110 + $0x18] sm:$0xff]
  %v4115 = vld [vmem:[%s4110 + $0x20] sm:$0xff]
  %v4116 = vld [vmem:[%s4110 + $0x28] sm:$0xff]
  %v4117 = vld [vmem:[%s4110 + $0x30] sm:$0xff]
  %v4118 = vld [vmem:[%s4110 + $0x38] sm:$0xff]
  %v4119 = vld [vmem:[%s4110 + $0x40] sm:$0xff]
  %v4120 = vld [vmem:[%s4110 + $0x48] sm:$0xff]
  %v4121 = vld [vmem:[%s4110 + $0x50] sm:$0xff]
  %v4122 = vld [vmem:[%s4110 + $0x58] sm:$0xff]
  %v4123 = vld [vmem:[%s4110 + $0x60] sm:$0xff]
  %v4124 = vld [vmem:[%s4110 + $0x68] sm:$0xff]
  %v4125 = vld [vmem:[%s4110 + $0x70] sm:$0xff]
  %v4126 = vld [vmem:[%s4110 + $0x78] sm:$0xff]
  %v4132 = vrot.slane %v4070, 1
  %v4133 = vrot.slane %v4075, 1
  %v4134 = vsel %vm676, %v4132, %v4133
  %v4135 = vrot.slane %v4080, 1
  %v4136 = vsel %vm676, %v4133, %v4135
  %v4137 = vrot.slane %v4085, 1
  %v4138 = vsel %vm676, %v4135, %v4137
  %v4139 = vrot.slane %v4090, 1
  %v4140 = vsel %vm676, %v4137, %v4139
  %4146 = vmatprep.subr.mxu0 0.0
  %4147 = vmatpush1.msra.mxu0 %v4111
  %4148 = vmatprep.subr.mxu0 0.0
  %4149 = vmatpush1.msra.mxu0 %v4112
  %4150 = vmatprep.subr.mxu0 0.0
  %4151 = vmatpush1.msra.mxu0 %v4113
  %4152 = vmatprep.subr.mxu0 0.0
  %4153 = vmatpush1.msra.mxu0 %v4114
  %4154 = vmatprep.subr.mxu0 0.0
  %4155 = vmatpush1.msra.mxu0 %v4115
  %4156 = vmatprep.subr.mxu0 0.0
  %4157 = vmatpush1.msra.mxu0 %v4116
  %4158 = vmatprep.subr.mxu0 0.0
  %4159 = vmatpush1.msra.mxu0 %v4117
  %4160 = vmatprep.subr.mxu0 0.0
  %4161 = vmatpush1.msra.mxu0 %v4118
  %4162 = vmatprep.subr.mxu0 0.0
  %4163 = vmatpush1.msra.mxu0 %v4119
  %4164 = vmatprep.subr.mxu0 0.0
  %4165 = vmatpush1.msra.mxu0 %v4120
  %4166 = vmatprep.subr.mxu0 0.0
  %4167 = vmatpush1.msra.mxu0 %v4121
  %4168 = vmatprep.subr.mxu0 0.0
  %4169 = vmatpush1.msra.mxu0 %v4122
  %4170 = vmatprep.subr.mxu0 0.0
  %4171 = vmatpush1.msra.mxu0 %v4123
  %4172 = vmatprep.subr.mxu0 0.0
  %4173 = vmatpush1.msra.mxu0 %v4124
  %4174 = vmatprep.subr.mxu0 0.0
  %4175 = vmatpush1.msra.mxu0 %v4125
  %4176 = vmatprep.subr.mxu0 0.0
  %4177 = vmatpush1.msra.mxu0 %v4126
  %4178 = vmatprep.subr.mxu0 0.0
  %4179 = vmatpush1.msra.mxu0 0.0
  %4180 = vmatprep.subr.mxu0 0.0
  %4181 = vmatpush1.msra.mxu0 0.0
  %4182 = vmatprep.subr.mxu0 0.0
  %4183 = vmatpush1.msra.mxu0 0.0
  %4184 = vmatprep.subr.mxu0 0.0
  %4185 = vmatpush1.msra.mxu0 0.0
  %4186 = vmatprep.subr.mxu0 0.0
  %4187 = vmatpush1.msra.mxu0 0.0
  %4188 = vmatprep.subr.mxu0 0.0
  %4189 = vmatpush1.msra.mxu0 0.0
  %4190 = vmatprep.subr.mxu0 0.0
  %4191 = vmatpush1.msra.mxu0 0.0
  %4192 = vmatprep.subr.mxu0 0.0
  %4193 = vmatpush1.msra.mxu0 0.0
  %4194 = vmatprep.subr.mxu0 0.0
  %4195 = vmatpush1.msra.mxu0 0.0
  %4196 = vmatprep.subr.mxu0 0.0
  %4197 = vmatpush1.msra.mxu0 0.0
  %4198 = vmatprep.subr.mxu0 0.0
  %4199 = vmatpush1.msra.mxu0 0.0
  %4200 = vmatprep.subr.mxu0 0.0
  %4201 = vmatpush1.msra.mxu0 0.0
  %4202 = vmatprep.subr.mxu0 0.0
  %4203 = vmatpush1.msra.mxu0 0.0
  %4204 = vmatprep.subr.mxu0 0.0
  %4205 = vmatpush1.msra.mxu0 0.0
  %4206 = vmatprep.subr.mxu0 0.0
  %4207 = vmatpush1.msra.mxu0 0.0
  %4208 = vmatprep.subr.mxu0 0.0
  %4209 = vmatpush1.msra.mxu0 0.0
  %4210 = vmatprep.mubr.f32.mxu0 0.0
  %4211 = vmatmul.mubr.f32.gmra.mrb[0].mxu0 %v4134
  %v4212 = vpop.f32.mrb[0].mxu0
  %v4213 = vadd.f32 0.0, %v4212
  %v4214 = vpop.f32.mrb[0].mxu0
  %4215 = vmatprep.mubr.f32.mxu0 0.0
  %4216 = vmatmul.mubr.f32.gmra.mrb[0].mxu0 %v4136
  %v4217 = vpop.f32.mrb[0].mxu0
  %v4218 = vadd.f32 0.0, %v4217
  %v4219 = vpop.f32.mrb[0].mxu0
  %4220 = vmatprep.mubr.f32.mxu0 0.0
  %4221 = vmatmul.mubr.f32.gmra.mrb[0].mxu0 %v4138
  %v4222 = vpop.f32.mrb[0].mxu0
  %v4223 = vadd.f32 0.0, %v4222
  %v4224 = vpop.f32.mrb[0].mxu0
  %4225 = vmatprep.mubr.f32.mxu0 0.0
  %4226 = vmatmul.mubr.f32.gmra.mrb[0].mxu0 %v4140
  %v4227 = vpop.f32.mrb[0].mxu0
  %v4228 = vadd.f32 0.0, %v4227
  %v4229 = vpop.f32.mrb[0].mxu0
  %4230 = vmatprep.mubr.f32.mxu0 0.0
  %4231 = vmatmul.mubr.f32.gmra.mrb[0].mxu0 %v4139
  %v4232 = vpop.f32.mrb[0].mxu0
  %v4233 = vadd.f32 0.0, %v4232
  %v4234 = vpop.f32.mrb[0].mxu0
  %4235 = vdwg.mxu0
  %4236 = vmatprep.subr.mxu0 0.0
  %4237 = vmatpush1.msra.mxu0 %v4094
  %4238 = vmatprep.subr.mxu0 0.0
  %4239 = vmatpush1.msra.mxu0 %v4095
  %4240 = vmatprep.subr.mxu0 0.0
  %4241 = vmatpush1.msra.mxu0 %v4096
  %4242 = vmatprep.subr.mxu0 0.0
  %4243 = vmatpush1.msra.mxu0 %v4097
  %4244 = vmatprep.subr.mxu0 0.0
  %4245 = vmatpush1.msra.mxu0 %v4098
  %4246 = vmatprep.subr.mxu0 0.0
  %4247 = vmatpush1.msra.mxu0 %v4099
  %4248 = vmatprep.subr.mxu0 0.0
  %4249 = vmatpush1.msra.mxu0 %v4100
  %4250 = vmatprep.subr.mxu0 0.0
  %4251 = vmatpush1.msra.mxu0 %v4101
  %4252 = vmatprep.subr.mxu0 0.0
  %4253 = vmatpush1.msra.mxu0 %v4102
  %4254 = vmatprep.subr.mxu0 0.0
  %4255 = vmatpush1.msra.mxu0 %v4103
  %4256 = vmatprep.subr.mxu0 0.0
  %4257 = vmatpush1.msra.mxu0 %v4104
  %4258 = vmatprep.subr.mxu0 0.0
  %4259 = vmatpush1.msra.mxu0 %v4105
  %4260 = vmatprep.subr.mxu0 0.0
  %4261 = vmatpush1.msra.mxu0 %v4106
  %4262 = vmatprep.subr.mxu0 0.0
  %4263 = vmatpush1.msra.mxu0 %v4107
  %4264 = vmatprep.subr.mxu0 0.0
  %4265 = vmatpush1.msra.mxu0 %v4108
  %4266 = vmatprep.subr.mxu0 0.0
  %4267 = vmatpush1.msra.mxu0 %v4109
  %4268 = vmatprep.subr.mxu0 0.0
  %4269 = vmatpush1.msra.mxu0 0.0
  %4270 = vmatprep.subr.mxu0 0.0
  %4271 = vmatpush1.msra.mxu0 0.0
  %4272 = vmatprep.subr.mxu0 0.0
  %4273 = vmatpush1.msra.mxu0 0.0
  %4274 = vmatprep.subr.mxu0 0.0
  %4275 = vmatpush1.msra.mxu0 0.0
  %4276 = vmatprep.subr.mxu0 0.0
  %4277 = vmatpush1.msra.mxu0 0.0
  %4278 = vmatprep.subr.mxu0 0.0
  %4279 = vmatpush1.msra.mxu0 0.0
  %4280 = vmatprep.subr.mxu0 0.0
  %4281 = vmatpush1.msra.mxu0 0.0
  %4282 = vmatprep.subr.mxu0 0.0
  %4283 = vmatpush1.msra.mxu0 0.0
  %4284 = vmatprep.subr.mxu0 0.0
  %4285 = vmatpush1.msra.mxu0 0.0
  %4286 = vmatprep.subr.mxu0 0.0
  %4287 = vmatpush1.msra.mxu0 0.0
  %4288 = vmatprep.subr.mxu0 0.0
  %4289 = vmatpush1.msra.mxu0 0.0
  %4290 = vmatprep.subr.mxu0 0.0
  %4291 = vmatpush1.msra.mxu0 0.0
  %4292 = vmatprep.subr.mxu0 0.0
  %4293 = vmatpush1.msra.mxu0 0.0
  %4294 = vmatprep.subr.mxu0 0.0
  %4295 = vmatpush1.msra.mxu0 0.0
  %4296 = vmatprep.subr.mxu0 0.0
  %4297 = vmatpush1.msra.mxu0 0.0
  %4298 = vmatprep.subr.mxu0 0.0
  %4299 = vmatpush1.msra.mxu0 0.0
  %4300 = vmatprep.mubr.f32.mxu0 0.0
  %4301 = vmatmul.mubr.f32.gmra.mrb[0].mxu0 %v4070
  %v4302 = vpop.f32.mrb[0].mxu0
  %v4303 = vadd.f32 %v4213, %v4302
  %v4304 = vpop.f32.mrb[0].mxu0
  %4305 = vmatprep.mubr.f32.mxu0 0.0
  %4306 = vmatmul.mubr.f32.gmra.mrb[0].mxu0 %v4075
  %v4307 = vpop.f32.mrb[0].mxu0
  %v4308 = vadd.f32 %v4218, %v4307
  %v4309 = vpop.f32.mrb[0].mxu0
  %4310 = vmatprep.mubr.f32.mxu0 0.0
  %4311 = vmatmul.mubr.f32.gmra.mrb[0].mxu0 %v4080
  %v4312 = vpop.f32.mrb[0].mxu0
  %v4313 = vadd.f32 %v4223, %v4312
  %v4314 = vpop.f32.mrb[0].mxu0
  %4315 = vmatprep.mubr.f32.mxu0 0.0
  %4316 = vmatmul.mubr.f32.gmra.mrb[0].mxu0 %v4085
  %v4317 = vpop.f32.mrb[0].mxu0
  %v4318 = vadd.f32 %v4228, %v4317
  %v4319 = vpop.f32.mrb[0].mxu0
  %4320 = vmatprep.mubr.f32.mxu0 0.0
  %4321 = vmatmul.mubr.f32.gmra.mrb[0].mxu0 %v4090
  %v4322 = vpop.f32.mrb[0].mxu0
  %v4323 = vadd.f32 %v4233, %v4322
  %v4324 = vpop.f32.mrb[0].mxu0
  %4325 = vdwg.mxu0
  %s4326 = scalar_lea.vmem %s6, 1408
  %v4327 = vld [vmem:[%s4326] sm:$0xff]
  %v4328 = vld [vmem:[%s4326 + $0x8] sm:$0xff]
  %v4329 = vld [vmem:[%s4326 + $0x10] sm:$0xff]
  %v4330 = vld [vmem:[%s4326 + $0x18] sm:$0xff]
  %v4331 = vld [vmem:[%s4326 + $0x20] sm:$0xff]
  %v4332 = vld [vmem:[%s4326 + $0x28] sm:$0xff]
  %v4333 = vld [vmem:[%s4326 + $0x30] sm:$0xff]
  %v4334 = vld [vmem:[%s4326 + $0x38] sm:$0xff]
  %v4335 = vld [vmem:[%s4326 + $0x40] sm:$0xff]
  %v4336 = vld [vmem:[%s4326 + $0x48] sm:$0xff]
  %v4337 = vld [vmem:[%s4326 + $0x50] sm:$0xff]
  %v4338 = vld [vmem:[%s4326 + $0x58] sm:$0xff]
  %v4339 = vld [vmem:[%s4326 + $0x60] sm:$0xff]
  %v4340 = vld [vmem:[%s4326 + $0x68] sm:$0xff]
  %v4341 = vld [vmem:[%s4326 + $0x70] sm:$0xff]
  %v4342 = vld [vmem:[%s4326 + $0x78] sm:$0xff]
  %v4343 = vrot.slane %v4070, 2
  %v4344 = vrot.slane %v4075, 2
  %v4345 = vsel %vm888, %v4343, %v4344
  %v4346 = vrot.slane %v4080, 2
  %v4347 = vsel %vm888, %v4344, %v4346
  %v4348 = vrot.slane %v4085, 2
  %v4349 = vsel %vm888, %v4346, %v4348
  %v4350 = vrot.slane %v4090, 2
  %v4351 = vsel %vm888, %v4348, %v4350
  %4357 = vmatprep.subr.mxu0 0.0
  %4358 = vmatpush1.msra.mxu0 %v4327
  %4359 = vmatprep.subr.mxu0 0.0
  %4360 = vmatpush1.msra.mxu0 %v4328
  %4361 = vmatprep.subr.mxu0 0.0
  %4362 = vmatpush1.msra.mxu0 %v4329
  %4363 = vmatprep.subr.mxu0 0.0
  %4364 = vmatpush1.msra.mxu0 %v4330
  %4365 = vmatprep.subr.mxu0 0.0
  %4366 = vmatpush1.msra.mxu0 %v4331
  %4367 = vmatprep.subr.mxu0 0.0
  %4368 = vmatpush1.msra.mxu0 %v4332
  %4369 = vmatprep.subr.mxu0 0.0
  %4370 = vmatpush1.msra.mxu0 %v4333
  %4371 = vmatprep.subr.mxu0 0.0
  %4372 = vmatpush1.msra.mxu0 %v4334
  %4373 = vmatprep.subr.mxu0 0.0
  %4374 = vmatpush1.msra.mxu0 %v4335
  %4375 = vmatprep.subr.mxu0 0.0
  %4376 = vmatpush1.msra.mxu0 %v4336
  %4377 = vmatprep.subr.mxu0 0.0
  %4378 = vmatpush1.msra.mxu0 %v4337
  %4379 = vmatprep.subr.mxu0 0.0
  %4380 = vmatpush1.msra.mxu0 %v4338
  %4381 = vmatprep.subr.mxu0 0.0
  %4382 = vmatpush1.msra.mxu0 %v4339
  %4383 = vmatprep.subr.mxu0 0.0
  %4384 = vmatpush1.msra.mxu0 %v4340
  %4385 = vmatprep.subr.mxu0 0.0
  %4386 = vmatpush1.msra.mxu0 %v4341
  %4387 = vmatprep.subr.mxu0 0.0
  %4388 = vmatpush1.msra.mxu0 %v4342
  %4389 = vmatprep.subr.mxu0 0.0
  %4390 = vmatpush1.msra.mxu0 0.0
  %4391 = vmatprep.subr.mxu0 0.0
  %4392 = vmatpush1.msra.mxu0 0.0
  %4393 = vmatprep.subr.mxu0 0.0
  %4394 = vmatpush1.msra.mxu0 0.0
  %4395 = vmatprep.subr.mxu0 0.0
  %4396 = vmatpush1.msra.mxu0 0.0
  %4397 = vmatprep.subr.mxu0 0.0
  %4398 = vmatpush1.msra.mxu0 0.0
  %4399 = vmatprep.subr.mxu0 0.0
  %4400 = vmatpush1.msra.mxu0 0.0
  %4401 = vmatprep.subr.mxu0 0.0
  %4402 = vmatpush1.msra.mxu0 0.0
  %4403 = vmatprep.subr.mxu0 0.0
  %4404 = vmatpush1.msra.mxu0 0.0
  %4405 = vmatprep.subr.mxu0 0.0
  %4406 = vmatpush1.msra.mxu0 0.0
  %4407 = vmatprep.subr.mxu0 0.0
  %4408 = vmatpush1.msra.mxu0 0.0
  %4409 = vmatprep.subr.mxu0 0.0
  %4410 = vmatpush1.msra.mxu0 0.0
  %4411 = vmatprep.subr.mxu0 0.0
  %4412 = vmatpush1.msra.mxu0 0.0
  %4413 = vmatprep.subr.mxu0 0.0
  %4414 = vmatpush1.msra.mxu0 0.0
  %4415 = vmatprep.subr.mxu0 0.0
  %4416 = vmatpush1.msra.mxu0 0.0
  %4417 = vmatprep.subr.mxu0 0.0
  %4418 = vmatpush1.msra.mxu0 0.0
  %4419 = vmatprep.subr.mxu0 0.0
  %4420 = vmatpush1.msra.mxu0 0.0
  %4421 = vmatprep.mubr.f32.mxu0 0.0
  %4422 = vmatmul.mubr.f32.gmra.mrb[0].mxu0 %v4345
  %v4423 = vpop.f32.mrb[0].mxu0
  %v4424 = vadd.f32 0.0, %v4423
  %v4425 = vpop.f32.mrb[0].mxu0
  %4426 = vmatprep.mubr.f32.mxu0 0.0
  %4427 = vmatmul.mubr.f32.gmra.mrb[0].mxu0 %v4347
  %v4428 = vpop.f32.mrb[0].mxu0
  %v4429 = vadd.f32 0.0, %v4428
  %v4430 = vpop.f32.mrb[0].mxu0
  %4431 = vmatprep.mubr.f32.mxu0 0.0
  %4432 = vmatmul.mubr.f32.gmra.mrb[0].mxu0 %v4349
  %v4433 = vpop.f32.mrb[0].mxu0
  %v4434 = vadd.f32 0.0, %v4433
  %v4435 = vpop.f32.mrb[0].mxu0
  %4436 = vmatprep.mubr.f32.mxu0 0.0
  %4437 = vmatmul.mubr.f32.gmra.mrb[0].mxu0 %v4351
  %v4438 = vpop.f32.mrb[0].mxu0
  %v4439 = vadd.f32 0.0, %v4438
  %v4440 = vpop.f32.mrb[0].mxu0
  %4441 = vmatprep.mubr.f32.mxu0 0.0
  %4442 = vmatmul.mubr.f32.gmra.mrb[0].mxu0 %v4350
  %v4443 = vpop.f32.mrb[0].mxu0
  %v4444 = vadd.f32 0.0, %v4443
  %v4445 = vpop.f32.mrb[0].mxu0
  %4446 = vdwg.mxu0
  %v4447 = vadd.f32 %v4303, %v4424
  %v4448 = vadd.f32 %v4308, %v4429
  %v4449 = vadd.f32 %v4313, %v4434
  %v4450 = vadd.f32 %v4318, %v4439
  %v4451 = vadd.f32 %v4323, %v4444
  %v4452 = vld [vmem:[%s7 + $0x3] sm:$0x1]
  %v4453 = vlaneseq
  %v4454 = vshrl.u32 %v4453, 7
  %v4455 = vsub.s32 0, %v4454
  %v4456 = vrot.slane %v4452, %v4455
  %v4457 = vadd.f32 %v4447, %v4456
  %v4458 = vadd.f32 %v4448, %v4456
  %v4459 = vadd.f32 %v4449, %v4456
  %v4460 = vadd.f32 %v4450, %v4456
  %v4461 = vadd.f32 %v4451, %v4456
  %v4463 = vsel %vm1012, %v4461, 0
  %4465 = vmatprep.subr.mxu0 0.0
  %4466 = vmatpush1.msra.mxu0 %v4457
  %4467 = vmatprep.subr.mxu0 0.0
  %4468 = vmatpush1.msra.mxu0 %v4458
  %4469 = vmatprep.subr.mxu0 0.0
  %4470 = vmatpush1.msra.mxu0 %v4459
  %4471 = vmatprep.subr.mxu0 0.0
  %4472 = vmatpush1.msra.mxu0 %v4460
  %4473 = vmatprep.subr.mxu0 0.0
  %4474 = vmatpush1.msra.mxu0 %v4463
  %4475 = vmatprep.subr.mxu0 0.0
  %4476 = vmatpush1.msra.mxu0 0.0
  %4477 = vmatprep.subr.mxu0 0.0
  %4478 = vmatpush1.msra.mxu0 0.0
  %4479 = vmatprep.subr.mxu0 0.0
  %4480 = vmatpush1.msra.mxu0 0.0
  %4481 = vmatprep.subr.mxu0 0.0
  %4482 = vmatpush1.msra.mxu0 0.0
  %4483 = vmatprep.subr.mxu0 0.0
  %4484 = vmatpush1.msra.mxu0 0.0
  %4485 = vmatprep.subr.mxu0 0.0
  %4486 = vmatpush1.msra.mxu0 0.0
  %4487 = vmatprep.subr.mxu0 0.0
  %4488 = vmatpush1.msra.mxu0 0.0
  %4489 = vmatprep.subr.mxu0 0.0
  %4490 = vmatpush1.msra.mxu0 0.0
  %4491 = vmatprep.subr.mxu0 0.0
  %4492 = vmatpush1.msra.mxu0 0.0
  %4493 = vmatprep.subr.mxu0 0.0
  %4494 = vmatpush1.msra.mxu0 0.0
  %4495 = vmatprep.subr.mxu0 0.0
  %4496 = vmatpush1.msra.mxu0 0.0
  %4497 = vmatprep.subr.mxu0 0.0
  %4498 = vmatpush1.msra.mxu0 0.0
  %4499 = vmatprep.subr.mxu0 0.0
  %4500 = vmatpush1.msra.mxu0 0.0
  %4501 = vmatprep.subr.mxu0 0.0
  %4502 = vmatpush1.msra.mxu0 0.0
  %4503 = vmatprep.subr.mxu0 0.0
  %4504 = vmatpush1.msra.mxu0 0.0
  %4505 = vmatprep.subr.mxu0 0.0
  %4506 = vmatpush1.msra.mxu0 0.0
  %4507 = vmatprep.subr.mxu0 0.0
  %4508 = vmatpush1.msra.mxu0 0.0
  %4509 = vmatprep.subr.mxu0 0.0
  %4510 = vmatpush1.msra.mxu0 0.0
  %4511 = vmatprep.subr.mxu0 0.0
  %4512 = vmatpush1.msra.mxu0 0.0
  %4513 = vmatprep.subr.mxu0 0.0
  %4514 = vmatpush1.msra.mxu0 0.0
  %4515 = vmatprep.subr.mxu0 0.0
  %4516 = vmatpush1.msra.mxu0 0.0
  %4517 = vmatprep.subr.mxu0 0.0
  %4518 = vmatpush1.msra.mxu0 0.0
  %4519 = vmatprep.subr.mxu0 0.0
  %4520 = vmatpush1.msra.mxu0 0.0
  %4521 = vmatprep.subr.mxu0 0.0
  %4522 = vmatpush1.msra.mxu0 0.0
  %4523 = vmatprep.subr.mxu0 0.0
  %4524 = vmatpush1.msra.mxu0 0.0
  %4525 = vmatprep.subr.mxu0 0.0
  %4526 = vmatpush1.msra.mxu0 0.0
  %4527 = vmatprep.subr.mxu0 0.0
  %4528 = vmatpush1.msra.mxu0 0.0
  %4529 = vmatprep.mubr.f32.mxu0 0.0
  %4530 = vmatmul.mubr.f32.gmra.mrb[0].mxu0 %v1010
  %v4531 = vpop.f32.mrb[0].mxu0
  %v4532 = vadd.f32 0.0, %v4531
  %v4533 = vpop.f32.mrb[0].mxu0
  %4534 = vdwg.mxu0
  %4535 = vmatprep.subr.mxu0 0.0
  %4536 = vmatpush1.msra.mxu0 %v51
  %4537 = vmatprep.subr.mxu0 0.0
  %4538 = vmatpush1.msra.mxu0 %v52
  %4539 = vmatprep.subr.mxu0 0.0
  %4540 = vmatpush1.msra.mxu0 %v53
  %4541 = vmatprep.subr.mxu0 0.0
  %4542 = vmatpush1.msra.mxu0 %v54
  %4543 = vmatprep.subr.mxu0 0.0
  %4544 = vmatpush1.msra.mxu0 %v55
  %4545 = vmatprep.subr.mxu0 0.0
  %4546 = vmatpush1.msra.mxu0 %v56
  %4547 = vmatprep.subr.mxu0 0.0
  %4548 = vmatpush1.msra.mxu0 %v57
  %4549 = vmatprep.subr.mxu0 0.0
  %4550 = vmatpush1.msra.mxu0 %v58
  %4551 = vmatprep.subr.mxu0 0.0
  %4552 = vmatpush1.msra.mxu0 %v59
  %4553 = vmatprep.subr.mxu0 0.0
  %4554 = vmatpush1.msra.mxu0 %v60
  %4555 = vmatprep.subr.mxu0 0.0
  %4556 = vmatpush1.msra.mxu0 %v61
  %4557 = vmatprep.subr.mxu0 0.0
  %4558 = vmatpush1.msra.mxu0 %v62
  %4559 = vmatprep.subr.mxu0 0.0
  %4560 = vmatpush1.msra.mxu0 %v63
  %4561 = vmatprep.subr.mxu0 0.0
  %4562 = vmatpush1.msra.mxu0 %v64
  %4563 = vmatprep.subr.mxu0 0.0
  %4564 = vmatpush1.msra.mxu0 %v65
  %4565 = vmatprep.subr.mxu0 0.0
  %4566 = vmatpush1.msra.mxu0 %v66
  %4567 = vmatprep.subr.mxu0 0.0
  %4568 = vmatpush1.msra.mxu0 0.0
  %4569 = vmatprep.subr.mxu0 0.0
  %4570 = vmatpush1.msra.mxu0 0.0
  %4571 = vmatprep.subr.mxu0 0.0
  %4572 = vmatpush1.msra.mxu0 0.0
  %4573 = vmatprep.subr.mxu0 0.0
  %4574 = vmatpush1.msra.mxu0 0.0
  %4575 = vmatprep.subr.mxu0 0.0
  %4576 = vmatpush1.msra.mxu0 0.0
  %4577 = vmatprep.subr.mxu0 0.0
  %4578 = vmatpush1.msra.mxu0 0.0
  %4579 = vmatprep.subr.mxu0 0.0
  %4580 = vmatpush1.msra.mxu0 0.0
  %4581 = vmatprep.subr.mxu0 0.0
  %4582 = vmatpush1.msra.mxu0 0.0
  %4583 = vmatprep.subr.mxu0 0.0
  %4584 = vmatpush1.msra.mxu0 0.0
  %4585 = vmatprep.subr.mxu0 0.0
  %4586 = vmatpush1.msra.mxu0 0.0
  %4587 = vmatprep.subr.mxu0 0.0
  %4588 = vmatpush1.msra.mxu0 0.0
  %4589 = vmatprep.subr.mxu0 0.0
  %4590 = vmatpush1.msra.mxu0 0.0
  %4591 = vmatprep.subr.mxu0 0.0
  %4592 = vmatpush1.msra.mxu0 0.0
  %4593 = vmatprep.subr.mxu0 0.0
  %4594 = vmatpush1.msra.mxu0 0.0
  %4595 = vmatprep.subr.mxu0 0.0
  %4596 = vmatpush1.msra.mxu0 0.0
  %4597 = vmatprep.subr.mxu0 0.0
  %4598 = vmatpush1.msra.mxu0 0.0
  %4599 = vmatprep.mubr.f32.mxu0 0.0
  %4600 = vmatmul.mubr.f32.gmra.mrb[0].mxu0 %v4532
  %v4601 = vpop.f32.mrb[0].mxu0
  %v4602 = vadd.f32 0.0, %v4601
  %v4603 = vpop.f32.mrb[0].mxu0
  %4604 = vdwg.mxu0
  %v4605 = vmul.f32 %v4602, 0.001953125
  %v4607 = vsel %vm1157, %v4605, 0
  %4609 = vmatprep.subr.mxu0 0.0
  %4610 = vmatpush1.msra.mxu0 %v1163
  %4611 = vmatprep.subr.mxu0 0.0
  %4612 = vmatpush1.msra.mxu0 0.0
  %4613 = vmatprep.subr.mxu0 0.0
  %4614 = vmatpush1.msra.mxu0 0.0
  %4615 = vmatprep.subr.mxu0 0.0
  %4616 = vmatpush1.msra.mxu0 0.0
  %4617 = vmatprep.subr.mxu0 0.0
  %4618 = vmatpush1.msra.mxu0 0.0
  %4619 = vmatprep.subr.mxu0 0.0
  %4620 = vmatpush1.msra.mxu0 0.0
  %4621 = vmatprep.subr.mxu0 0.0
  %4622 = vmatpush1.msra.mxu0 0.0
  %4623 = vmatprep.subr.mxu0 0.0
  %4624 = vmatpush1.msra.mxu0 0.0
  %4625 = vmatprep.subr.mxu0 0.0
  %4626 = vmatpush1.msra.mxu0 0.0
  %4627 = vmatprep.subr.mxu0 0.0
  %4628 = vmatpush1.msra.mxu0 0.0
  %4629 = vmatprep.subr.mxu0 0.0
  %4630 = vmatpush1.msra.mxu0 0.0
  %4631 = vmatprep.subr.mxu0 0.0
  %4632 = vmatpush1.msra.mxu0 0.0
  %4633 = vmatprep.subr.mxu0 0.0
  %4634 = vmatpush1.msra.mxu0 0.0
  %4635 = vmatprep.subr.mxu0 0.0
  %4636 = vmatpush1.msra.mxu0 0.0
  %4637 = vmatprep.subr.mxu0 0.0
  %4638 = vmatpush1.msra.mxu0 0.0
  %4639 = vmatprep.subr.mxu0 0.0
  %4640 = vmatpush1.msra.mxu0 0.0
  %4641 = vmatprep.subr.mxu0 0.0
  %4642 = vmatpush1.msra.mxu0 0.0
  %4643 = vmatprep.subr.mxu0 0.0
  %4644 = vmatpush1.msra.mxu0 0.0
  %4645 = vmatprep.subr.mxu0 0.0
  %4646 = vmatpush1.msra.mxu0 0.0
  %4647 = vmatprep.subr.mxu0 0.0
  %4648 = vmatpush1.msra.mxu0 0.0
  %4649 = vmatprep.subr.mxu0 0.0
  %4650 = vmatpush1.msra.mxu0 0.0
  %4651 = vmatprep.subr.mxu0 0.0
  %4652 = vmatpush1.msra.mxu0 0.0
  %4653 = vmatprep.subr.mxu0 0.0
  %4654 = vmatpush1.msra.mxu0 0.0
  %4655 = vmatprep.subr.mxu0 0.0
  %4656 = vmatpush1.msra.mxu0 0.0
  %4657 = vmatprep.subr.mxu0 0.0
  %4658 = vmatpush1.msra.mxu0 0.0
  %4659 = vmatprep.subr.mxu0 0.0
  %4660 = vmatpush1.msra.mxu0 0.0
  %4661 = vmatprep.subr.mxu0 0.0
  %4662 = vmatpush1.msra.mxu0 0.0
  %4663 = vmatprep.subr.mxu0 0.0
  %4664 = vmatpush1.msra.mxu0 0.0
  %4665 = vmatprep.subr.mxu0 0.0
  %4666 = vmatpush1.msra.mxu0 0.0
  %4667 = vmatprep.subr.mxu0 0.0
  %4668 = vmatpush1.msra.mxu0 0.0
  %4669 = vmatprep.subr.mxu0 0.0
  %4670 = vmatpush1.msra.mxu0 0.0
  %4671 = vmatprep.subr.mxu0 0.0
  %4672 = vmatpush1.msra.mxu0 0.0
  %4673 = vmatprep.mubr.f32.mxu0 0.0
  %4674 = vmatmul.mubr.f32.gmra.mrb[0].mxu0 %v4607
  %v4675 = vpop.f32.mrb[0].mxu0
  %v4676 = vadd.f32 0.0, %v4675
  %v4677 = vpop.f32.mrb[0].mxu0
  %4678 = vdwg.mxu0
  %v4679 = vlaneseq
  %v4680 = vshrl.u32 %v4679, 7
  %v4681 = vsub.s32 0, %v4680
  %v4682 = vrot.slane %v4676, %v4681
  %v4683 = vsub.f32 %v4457, %v4682
  %v4684 = vsub.f32 %v4458, %v4682
  %v4685 = vsub.f32 %v4459, %v4682
  %v4686 = vsub.f32 %v4460, %v4682
  %v4687 = vsub.f32 %v4461, %v4682
  %v4688 = vmul.f32 %v4683, %v4683
  %v4689 = vmul.f32 %v4684, %v4684
  %v4690 = vmul.f32 %v4685, %v4685
  %v4691 = vmul.f32 %v4686, %v4686
  %v4692 = vmul.f32 %v4687, %v4687
  %v4694 = vsel %vm1012, %v4692, 0
  %4696 = vmatprep.subr.mxu0 0.0
  %4697 = vmatpush1.msra.mxu0 %v4688
  %4698 = vmatprep.subr.mxu0 0.0
  %4699 = vmatpush1.msra.mxu0 %v4689
  %4700 = vmatprep.subr.mxu0 0.0
  %4701 = vmatpush1.msra.mxu0 %v4690
  %4702 = vmatprep.subr.mxu0 0.0
  %4703 = vmatpush1.msra.mxu0 %v4691
  %4704 = vmatprep.subr.mxu0 0.0
  %4705 = vmatpush1.msra.mxu0 %v4694
  %4706 = vmatprep.subr.mxu0 0.0
  %4707 = vmatpush1.msra.mxu0 0.0
  %4708 = vmatprep.subr.mxu0 0.0
  %4709 = vmatpush1.msra.mxu0 0.0
  %4710 = vmatprep.subr.mxu0 0.0
  %4711 = vmatpush1.msra.mxu0 0.0
  %4712 = vmatprep.subr.mxu0 0.0
  %4713 = vmatpush1.msra.mxu0 0.0
  %4714 = vmatprep.subr.mxu0 0.0
  %4715 = vmatpush1.msra.mxu0 0.0
  %4716 = vmatprep.subr.mxu0 0.0
  %4717 = vmatpush1.msra.mxu0 0.0
  %4718 = vmatprep.subr.mxu0 0.0
  %4719 = vmatpush1.msra.mxu0 0.0
  %4720 = vmatprep.subr.mxu0 0.0
  %4721 = vmatpush1.msra.mxu0 0.0
  %4722 = vmatprep.subr.mxu0 0.0
  %4723 = vmatpush1.msra.mxu0 0.0
  %4724 = vmatprep.subr.mxu0 0.0
  %4725 = vmatpush1.msra.mxu0 0.0
  %4726 = vmatprep.subr.mxu0 0.0
  %4727 = vmatpush1.msra.mxu0 0.0
  %4728 = vmatprep.subr.mxu0 0.0
  %4729 = vmatpush1.msra.mxu0 0.0
  %4730 = vmatprep.subr.mxu0 0.0
  %4731 = vmatpush1.msra.mxu0 0.0
  %4732 = vmatprep.subr.mxu0 0.0
  %4733 = vmatpush1.msra.mxu0 0.0
  %4734 = vmatprep.subr.mxu0 0.0
  %4735 = vmatpush1.msra.mxu0 0.0
  %4736 = vmatprep.subr.mxu0 0.0
  %4737 = vmatpush1.msra.mxu0 0.0
  %4738 = vmatprep.subr.mxu0 0.0
  %4739 = vmatpush1.msra.mxu0 0.0
  %4740 = vmatprep.subr.mxu0 0.0
  %4741 = vmatpush1.msra.mxu0 0.0
  %4742 = vmatprep.subr.mxu0 0.0
  %4743 = vmatpush1.msra.mxu0 0.0
  %4744 = vmatprep.subr.mxu0 0.0
  %4745 = vmatpush1.msra.mxu0 0.0
  %4746 = vmatprep.subr.mxu0 0.0
  %4747 = vmatpush1.msra.mxu0 0.0
  %4748 = vmatprep.subr.mxu0 0.0
  %4749 = vmatpush1.msra.mxu0 0.0
  %4750 = vmatprep.subr.mxu0 0.0
  %4751 = vmatpush1.msra.mxu0 0.0
  %4752 = vmatprep.subr.mxu0 0.0
  %4753 = vmatpush1.msra.mxu0 0.0
  %4754 = vmatprep.subr.mxu0 0.0
  %4755 = vmatpush1.msra.mxu0 0.0
  %4756 = vmatprep.subr.mxu0 0.0
  %4757 = vmatpush1.msra.mxu0 0.0
  %4758 = vmatprep.subr.mxu0 0.0
  %4759 = vmatpush1.msra.mxu0 0.0
  %4760 = vmatprep.mubr.f32.mxu0 0.0
  %4761 = vmatmul.mubr.f32.gmra.mrb[0].mxu0 %v1010
  %v4762 = vpop.f32.mrb[0].mxu0
  %v4763 = vadd.f32 0.0, %v4762
  %v4764 = vpop.f32.mrb[0].mxu0
  %4765 = vdwg.mxu0
  %4766 = vmatprep.subr.mxu0 0.0
  %4767 = vmatpush1.msra.mxu0 %v51
  %4768 = vmatprep.subr.mxu0 0.0
  %4769 = vmatpush1.msra.mxu0 %v52
  %4770 = vmatprep.subr.mxu0 0.0
  %4771 = vmatpush1.msra.mxu0 %v53
  %4772 = vmatprep.subr.mxu0 0.0
  %4773 = vmatpush1.msra.mxu0 %v54
  %4774 = vmatprep.subr.mxu0 0.0
  %4775 = vmatpush1.msra.mxu0 %v55
  %4776 = vmatprep.subr.mxu0 0.0
  %4777 = vmatpush1.msra.mxu0 %v56
  %4778 = vmatprep.subr.mxu0 0.0
  %4779 = vmatpush1.msra.mxu0 %v57
  %4780 = vmatprep.subr.mxu0 0.0
  %4781 = vmatpush1.msra.mxu0 %v58
  %4782 = vmatprep.subr.mxu0 0.0
  %4783 = vmatpush1.msra.mxu0 %v59
  %4784 = vmatprep.subr.mxu0 0.0
  %4785 = vmatpush1.msra.mxu0 %v60
  %4786 = vmatprep.subr.mxu0 0.0
  %4787 = vmatpush1.msra.mxu0 %v61
  %4788 = vmatprep.subr.mxu0 0.0
  %4789 = vmatpush1.msra.mxu0 %v62
  %4790 = vmatprep.subr.mxu0 0.0
  %4791 = vmatpush1.msra.mxu0 %v63
  %4792 = vmatprep.subr.mxu0 0.0
  %4793 = vmatpush1.msra.mxu0 %v64
  %4794 = vmatprep.subr.mxu0 0.0
  %4795 = vmatpush1.msra.mxu0 %v65
  %4796 = vmatprep.subr.mxu0 0.0
  %4797 = vmatpush1.msra.mxu0 %v66
  %4798 = vmatprep.subr.mxu0 0.0
  %4799 = vmatpush1.msra.mxu0 0.0
  %4800 = vmatprep.subr.mxu0 0.0
  %4801 = vmatpush1.msra.mxu0 0.0
  %4802 = vmatprep.subr.mxu0 0.0
  %4803 = vmatpush1.msra.mxu0 0.0
  %4804 = vmatprep.subr.mxu0 0.0
  %4805 = vmatpush1.msra.mxu0 0.0
  %4806 = vmatprep.subr.mxu0 0.0
  %4807 = vmatpush1.msra.mxu0 0.0
  %4808 = vmatprep.subr.mxu0 0.0
  %4809 = vmatpush1.msra.mxu0 0.0
  %4810 = vmatprep.subr.mxu0 0.0
  %4811 = vmatpush1.msra.mxu0 0.0
  %4812 = vmatprep.subr.mxu0 0.0
  %4813 = vmatpush1.msra.mxu0 0.0
  %4814 = vmatprep.subr.mxu0 0.0
  %4815 = vmatpush1.msra.mxu0 0.0
  %4816 = vmatprep.subr.mxu0 0.0
  %4817 = vmatpush1.msra.mxu0 0.0
  %4818 = vmatprep.subr.mxu0 0.0
  %4819 = vmatpush1.msra.mxu0 0.0
  %4820 = vmatprep.subr.mxu0 0.0
  %4821 = vmatpush1.msra.mxu0 0.0
  %4822 = vmatprep.subr.mxu0 0.0
  %4823 = vmatpush1.msra.mxu0 0.0
  %4824 = vmatprep.subr.mxu0 0.0
  %4825 = vmatpush1.msra.mxu0 0.0
  %4826 = vmatprep.subr.mxu0 0.0
  %4827 = vmatpush1.msra.mxu0 0.0
  %4828 = vmatprep.subr.mxu0 0.0
  %4829 = vmatpush1.msra.mxu0 0.0
  %4830 = vmatprep.mubr.f32.mxu0 0.0
  %4831 = vmatmul.mubr.f32.gmra.mrb[0].mxu0 %v4763
  %v4832 = vpop.f32.mrb[0].mxu0
  %v4833 = vadd.f32 0.0, %v4832
  %v4834 = vpop.f32.mrb[0].mxu0
  %4835 = vdwg.mxu0
  %v4836 = vmul.f32 %v4833, 0.001953125
  %v4837 = vld [vmem:[%s8 + $0x3] sm:$0x1]
  %v4838 = vadd.f32 %v4836, 1e-05
  %v4839 = vrsqrt.pop %v4838
  %v4840 = vmul.f32 %v4837, %v4839
  %v4841 = vld [vmem:[%s9 + $0x3] sm:$0x1]
  %v4842 = vmul.f32 %v4605, %v4840
  %v4843 = vsub.f32 %v4841, %v4842
  %v4845 = vsel %vm1157, %v4840, 0
  %4847 = vmatprep.subr.mxu0 0.0
  %4848 = vmatpush1.msra.mxu0 %v1163
  %4849 = vmatprep.subr.mxu0 0.0
  %4850 = vmatpush1.msra.mxu0 0.0
  %4851 = vmatprep.subr.mxu0 0.0
  %4852 = vmatpush1.msra.mxu0 0.0
  %4853 = vmatprep.subr.mxu0 0.0
  %4854 = vmatpush1.msra.mxu0 0.0
  %4855 = vmatprep.subr.mxu0 0.0
  %4856 = vmatpush1.msra.mxu0 0.0
  %4857 = vmatprep.subr.mxu0 0.0
  %4858 = vmatpush1.msra.mxu0 0.0
  %4859 = vmatprep.subr.mxu0 0.0
  %4860 = vmatpush1.msra.mxu0 0.0
  %4861 = vmatprep.subr.mxu0 0.0
  %4862 = vmatpush1.msra.mxu0 0.0
  %4863 = vmatprep.subr.mxu0 0.0
  %4864 = vmatpush1.msra.mxu0 0.0
  %4865 = vmatprep.subr.mxu0 0.0
  %4866 = vmatpush1.msra.mxu0 0.0
  %4867 = vmatprep.subr.mxu0 0.0
  %4868 = vmatpush1.msra.mxu0 0.0
  %4869 = vmatprep.subr.mxu0 0.0
  %4870 = vmatpush1.msra.mxu0 0.0
  %4871 = vmatprep.subr.mxu0 0.0
  %4872 = vmatpush1.msra.mxu0 0.0
  %4873 = vmatprep.subr.mxu0 0.0
  %4874 = vmatpush1.msra.mxu0 0.0
  %4875 = vmatprep.subr.mxu0 0.0
  %4876 = vmatpush1.msra.mxu0 0.0
  %4877 = vmatprep.subr.mxu0 0.0
  %4878 = vmatpush1.msra.mxu0 0.0
  %4879 = vmatprep.subr.mxu0 0.0
  %4880 = vmatpush1.msra.mxu0 0.0
  %4881 = vmatprep.subr.mxu0 0.0
  %4882 = vmatpush1.msra.mxu0 0.0
  %4883 = vmatprep.subr.mxu0 0.0
  %4884 = vmatpush1.msra.mxu0 0.0
  %4885 = vmatprep.subr.mxu0 0.0
  %4886 = vmatpush1.msra.mxu0 0.0
  %4887 = vmatprep.subr.mxu0 0.0
  %4888 = vmatpush1.msra.mxu0 0.0
  %4889 = vmatprep.subr.mxu0 0.0
  %4890 = vmatpush1.msra.mxu0 0.0
  %4891 = vmatprep.subr.mxu0 0.0
  %4892 = vmatpush1.msra.mxu0 0.0
  %4893 = vmatprep.subr.mxu0 0.0
  %4894 = vmatpush1.msra.mxu0 0.0
  %4895 = vmatprep.subr.mxu0 0.0
  %4896 = vmatpush1.msra.mxu0 0.0
  %4897 = vmatprep.subr.mxu0 0.0
  %4898 = vmatpush1.msra.mxu0 0.0
  %4899 = vmatprep.subr.mxu0 0.0
  %4900 = vmatpush1.msra.mxu0 0.0
  %4901 = vmatprep.subr.mxu0 0.0
  %4902 = vmatpush1.msra.mxu0 0.0
  %4903 = vmatprep.subr.mxu0 0.0
  %4904 = vmatpush1.msra.mxu0 0.0
  %4905 = vmatprep.subr.mxu0 0.0
  %4906 = vmatpush1.msra.mxu0 0.0
  %4907 = vmatprep.subr.mxu0 0.0
  %4908 = vmatpush1.msra.mxu0 0.0
  %4909 = vmatprep.subr.mxu0 0.0
  %4910 = vmatpush1.msra.mxu0 0.0
  %4911 = vmatprep.mubr.f32.mxu0 0.0
  %4912 = vmatmul.mubr.f32.gmra.mrb[0].mxu0 %v4845
  %v4913 = vpop.f32.mrb[0].mxu0
  %v4914 = vadd.f32 0.0, %v4913
  %v4915 = vpop.f32.mrb[0].mxu0
  %4916 = vdwg.mxu0
  %v4917 = vlaneseq
  %v4918 = vshrl.u32 %v4917, 7
  %v4919 = vsub.s32 0, %v4918
  %v4920 = vrot.slane %v4914, %v4919
  %v4921 = vmul.f32 %v4457, %v4920
  %v4922 = vmul.f32 %v4458, %v4920
  %v4923 = vmul.f32 %v4459, %v4920
  %v4924 = vmul.f32 %v4460, %v4920
  %v4925 = vmul.f32 %v4461, %v4920
  %v4927 = vsel %vm1157, %v4843, 0
  %4929 = vmatprep.subr.mxu0 0.0
  %4930 = vmatpush1.msra.mxu0 %v1163
  %4931 = vmatprep.subr.mxu0 0.0
  %4932 = vmatpush1.msra.mxu0 0.0
  %4933 = vmatprep.subr.mxu0 0.0
  %4934 = vmatpush1.msra.mxu0 0.0
  %4935 = vmatprep.subr.mxu0 0.0
  %4936 = vmatpush1.msra.mxu0 0.0
  %4937 = vmatprep.subr.mxu0 0.0
  %4938 = vmatpush1.msra.mxu0 0.0
  %4939 = vmatprep.subr.mxu0 0.0
  %4940 = vmatpush1.msra.mxu0 0.0
  %4941 = vmatprep.subr.mxu0 0.0
  %4942 = vmatpush1.msra.mxu0 0.0
  %4943 = vmatprep.subr.mxu0 0.0
  %4944 = vmatpush1.msra.mxu0 0.0
  %4945 = vmatprep.subr.mxu0 0.0
  %4946 = vmatpush1.msra.mxu0 0.0
  %4947 = vmatprep.subr.mxu0 0.0
  %4948 = vmatpush1.msra.mxu0 0.0
  %4949 = vmatprep.subr.mxu0 0.0
  %4950 = vmatpush1.msra.mxu0 0.0
  %4951 = vmatprep.subr.mxu0 0.0
  %4952 = vmatpush1.msra.mxu0 0.0
  %4953 = vmatprep.subr.mxu0 0.0
  %4954 = vmatpush1.msra.mxu0 0.0
  %4955 = vmatprep.subr.mxu0 0.0
  %4956 = vmatpush1.msra.mxu0 0.0
  %4957 = vmatprep.subr.mxu0 0.0
  %4958 = vmatpush1.msra.mxu0 0.0
  %4959 = vmatprep.subr.mxu0 0.0
  %4960 = vmatpush1.msra.mxu0 0.0
  %4961 = vmatprep.subr.mxu0 0.0
  %4962 = vmatpush1.msra.mxu0 0.0
  %4963 = vmatprep.subr.mxu0 0.0
  %4964 = vmatpush1.msra.mxu0 0.0
  %4965 = vmatprep.subr.mxu0 0.0
  %4966 = vmatpush1.msra.mxu0 0.0
  %4967 = vmatprep.subr.mxu0 0.0
  %4968 = vmatpush1.msra.mxu0 0.0
  %4969 = vmatprep.subr.mxu0 0.0
  %4970 = vmatpush1.msra.mxu0 0.0
  %4971 = vmatprep.subr.mxu0 0.0
  %4972 = vmatpush1.msra.mxu0 0.0
  %4973 = vmatprep.subr.mxu0 0.0
  %4974 = vmatpush1.msra.mxu0 0.0
  %4975 = vmatprep.subr.mxu0 0.0
  %4976 = vmatpush1.msra.mxu0 0.0
  %4977 = vmatprep.subr.mxu0 0.0
  %4978 = vmatpush1.msra.mxu0 0.0
  %4979 = vmatprep.subr.mxu0 0.0
  %4980 = vmatpush1.msra.mxu0 0.0
  %4981 = vmatprep.subr.mxu0 0.0
  %4982 = vmatpush1.msra.mxu0 0.0
  %4983 = vmatprep.subr.mxu0 0.0
  %4984 = vmatpush1.msra.mxu0 0.0
  %4985 = vmatprep.subr.mxu0 0.0
  %4986 = vmatpush1.msra.mxu0 0.0
  %4987 = vmatprep.subr.mxu0 0.0
  %4988 = vmatpush1.msra.mxu0 0.0
  %4989 = vmatprep.subr.mxu0 0.0
  %4990 = vmatpush1.msra.mxu0 0.0
  %4991 = vmatprep.subr.mxu0 0.0
  %4992 = vmatpush1.msra.mxu0 0.0
  %4993 = vmatprep.mubr.f32.mxu0 0.0
  %4994 = vmatmul.mubr.f32.gmra.mrb[0].mxu0 %v4927
  %v4995 = vpop.f32.mrb[0].mxu0
  %v4996 = vadd.f32 0.0, %v4995
  %v4997 = vpop.f32.mrb[0].mxu0
  %4998 = vdwg.mxu0
  %v4999 = vlaneseq
  %v5000 = vshrl.u32 %v4999, 7
  %v5001 = vsub.s32 0, %v5000
  %v5002 = vrot.slane %v4996, %v5001
  %v5003 = vadd.f32 %v4921, %v5002
  %v5004 = vadd.f32 %v4922, %v5002
  %v5005 = vadd.f32 %v4923, %v5002
  %v5006 = vadd.f32 %v4924, %v5002
  %v5007 = vadd.f32 %v4925, %v5002
  %v5008 = vmul.f32 %v5003, 0.5
  %v5009 = vmul.f32 %v5004, 0.5
  %v5010 = vmul.f32 %v5005, 0.5
  %v5011 = vmul.f32 %v5006, 0.5
  %v5012 = vmul.f32 %v5007, 0.5
  %v5013 = vmul.f32 %v5003, 0.70710677
  %v5014 = vmul.f32 %v5004, 0.70710677
  %v5015 = vmul.f32 %v5005, 0.70710677
  %v5016 = vmul.f32 %v5006, 0.70710677
  %v5017 = vmul.f32 %v5007, 0.70710677
  %v5018 = vand.u32 2147483647, %v5013
  %v5019 = vand.u32 2147483647, %v5014
  %v5020 = vand.u32 2147483647, %v5015
  %v5021 = vand.u32 2147483647, %v5016
  %v5022 = vand.u32 2147483647, %v5017
  %v5023 = vmul.f32 %v5018, 0.3275911
  %v5024 = vmul.f32 %v5019, 0.3275911
  %v5025 = vmul.f32 %v5020, 0.3275911
  %v5026 = vmul.f32 %v5021, 0.3275911
  %v5027 = vmul.f32 %v5022, 0.3275911
  %v5028 = vadd.f32 %v5023, 1.0
  %v5029 = vadd.f32 %v5024, 1.0
  %v5030 = vadd.f32 %v5025, 1.0
  %v5031 = vadd.f32 %v5026, 1.0
  %v5032 = vadd.f32 %v5027, 1.0
  %v5033 = vrcp.pop %v5028
  %v5034 = vmul.f32 1.0, %v5033
  %v5035 = vrcp.pop %v5029
  %v5036 = vmul.f32 1.0, %v5035
  %v5037 = vrcp.pop %v5030
  %v5038 = vmul.f32 1.0, %v5037
  %v5039 = vrcp.pop %v5031
  %v5040 = vmul.f32 1.0, %v5039
  %v5041 = vrcp.pop %v5032
  %v5042 = vmul.f32 1.0, %v5041
  %v5043 = vmul.f32 %v5034, 1.0614054
  %v5044 = vmul.f32 %v5036, 1.0614054
  %v5045 = vmul.f32 %v5038, 1.0614054
  %v5046 = vmul.f32 %v5040, 1.0614054
  %v5047 = vmul.f32 %v5042, 1.0614054
  %v5048 = vadd.f32 %v5043, -1.4531521
  %v5049 = vadd.f32 %v5044, -1.4531521
  %v5050 = vadd.f32 %v5045, -1.4531521
  %v5051 = vadd.f32 %v5046, -1.4531521
  %v5052 = vadd.f32 %v5047, -1.4531521
  %v5053 = vmul.f32 %v5048, %v5034
  %v5054 = vmul.f32 %v5049, %v5036
  %v5055 = vmul.f32 %v5050, %v5038
  %v5056 = vmul.f32 %v5051, %v5040
  %v5057 = vmul.f32 %v5052, %v5042
  %v5058 = vadd.f32 %v5053, 1.4214138
  %v5059 = vadd.f32 %v5054, 1.4214138
  %v5060 = vadd.f32 %v5055, 1.4214138
  %v5061 = vadd.f32 %v5056, 1.4214138
  %v5062 = vadd.f32 %v5057, 1.4214138
  %v5063 = vmul.f32 %v5058, %v5034
  %v5064 = vmul.f32 %v5059, %v5036
  %v5065 = vmul.f32 %v5060, %v5038
  %v5066 = vmul.f32 %v5061, %v5040
  %v5067 = vmul.f32 %v5062, %v5042
  %v5068 = vadd.f32 %v5063, -0.28449672
  %v5069 = vadd.f32 %v5064, -0.28449672
  %v5070 = vadd.f32 %v5065, -0.28449672
  %v5071 = vadd.f32 %v5066, -0.28449672
  %v5072 = vadd.f32 %v5067, -0.28449672
  %v5073 = vmul.f32 %v5068, %v5034
  %v5074 = vmul.f32 %v5069, %v5036
  %v5075 = vmul.f32 %v5070, %v5038
  %v5076 = vmul.f32 %v5071, %v5040
  %v5077 = vmul.f32 %v5072, %v5042
  %v5078 = vadd.f32 %v5073, 0.2548296
  %v5079 = vadd.f32 %v5074, 0.2548296
  %v5080 = vadd.f32 %v5075, 0.2548296
  %v5081 = vadd.f32 %v5076, 0.2548296
  %v5082 = vadd.f32 %v5077, 0.2548296
  %v5083 = vmul.f32 %v5078, %v5034
  %v5084 = vmul.f32 %v5079, %v5036
  %v5085 = vmul.f32 %v5080, %v5038
  %v5086 = vmul.f32 %v5081, %v5040
  %v5087 = vmul.f32 %v5082, %v5042
  %v5088 = vsub.f32 0.0, %v5018
  %v5089 = vsub.f32 0.0, %v5019
  %v5090 = vsub.f32 0.0, %v5020
  %v5091 = vsub.f32 0.0, %v5021
  %v5092 = vsub.f32 0.0, %v5022
  %v5093 = vmul.f32 %v5088, %v5018
  %v5094 = vmul.f32 %v5089, %v5019
  %v5095 = vmul.f32 %v5090, %v5020
  %v5096 = vmul.f32 %v5091, %v5021
  %v5097 = vmul.f32 %v5092, %v5022
  %v5098 = vmul.f32 %v5093, 1.442695
  %v5099 = vpow.pop %v5098
  %v5100 = vmul.f32 %v5094, 1.442695
  %v5101 = vpow.pop %v5100
  %v5102 = vmul.f32 %v5095, 1.442695
  %v5103 = vpow.pop %v5102
  %v5104 = vmul.f32 %v5096, 1.442695
  %v5105 = vpow.pop %v5104
  %v5106 = vmul.f32 %v5097, 1.442695
  %v5107 = vpow.pop %v5106
  %v5108 = vmul.f32 %v5083, %v5099
  %v5109 = vmul.f32 %v5084, %v5101
  %v5110 = vmul.f32 %v5085, %v5103
  %v5111 = vmul.f32 %v5086, %v5105
  %v5112 = vmul.f32 %v5087, %v5107
  %v5113 = vsub.f32 1.0, %v5108
  %v5114 = vsub.f32 1.0, %v5109
  %v5115 = vsub.f32 1.0, %v5110
  %v5116 = vsub.f32 1.0, %v5111
  %v5117 = vsub.f32 1.0, %v5112
  %vm5118 = vcmp.lt.f32.partialorder %v5013, 0.0
  %vm5119 = vcmp.lt.f32.partialorder %v5014, 0.0
  %vm5120 = vcmp.lt.f32.partialorder %v5015, 0.0
  %vm5121 = vcmp.lt.f32.partialorder %v5016, 0.0
  %vm5122 = vcmp.lt.f32.partialorder %v5017, 0.0
  %v5123 = vsub.f32 0.0, %v5113
  %v5124 = vsub.f32 0.0, %v5114
  %v5125 = vsub.f32 0.0, %v5115
  %v5126 = vsub.f32 0.0, %v5116
  %v5127 = vsub.f32 0.0, %v5117
  %v5128 = vsel %vm5118, %v5123, %v5113
  %v5129 = vsel %vm5119, %v5124, %v5114
  %v5130 = vsel %vm5120, %v5125, %v5115
  %v5131 = vsel %vm5121, %v5126, %v5116
  %v5132 = vsel %vm5122, %v5127, %v5117
  %v5133 = vadd.f32 %v5128, 1.0
  %v5134 = vadd.f32 %v5129, 1.0
  %v5135 = vadd.f32 %v5130, 1.0
  %v5136 = vadd.f32 %v5131, 1.0
  %v5137 = vadd.f32 %v5132, 1.0
  %v5138 = vmul.f32 %v5008, %v5133
  %v5139 = vmul.f32 %v5009, %v5134
  %v5140 = vmul.f32 %v5010, %v5135
  %v5141 = vmul.f32 %v5011, %v5136
  %v5142 = vmul.f32 %v5012, %v5137
  %v5144 = vsel %vm1012, %v5142, 0
  %5146 = vmatprep.subr.mxu0 0.0
  %5147 = vmatpush1.msra.mxu0 %v5138
  %5148 = vmatprep.subr.mxu0 0.0
  %5149 = vmatpush1.msra.mxu0 %v5139
  %5150 = vmatprep.subr.mxu0 0.0
  %5151 = vmatpush1.msra.mxu0 %v5140
  %5152 = vmatprep.subr.mxu0 0.0
  %5153 = vmatpush1.msra.mxu0 %v5141
  %5154 = vmatprep.subr.mxu0 0.0
  %5155 = vmatpush1.msra.mxu0 %v5144
  %5156 = vmatprep.subr.mxu0 0.0
  %5157 = vmatpush1.msra.mxu0 0.0
  %5158 = vmatprep.subr.mxu0 0.0
  %5159 = vmatpush1.msra.mxu0 0.0
  %5160 = vmatprep.subr.mxu0 0.0
  %5161 = vmatpush1.msra.mxu0 0.0
  %5162 = vmatprep.subr.mxu0 0.0
  %5163 = vmatpush1.msra.mxu0 0.0
  %5164 = vmatprep.subr.mxu0 0.0
  %5165 = vmatpush1.msra.mxu0 0.0
  %5166 = vmatprep.subr.mxu0 0.0
  %5167 = vmatpush1.msra.mxu0 0.0
  %5168 = vmatprep.subr.mxu0 0.0
  %5169 = vmatpush1.msra.mxu0 0.0
  %5170 = vmatprep.subr.mxu0 0.0
  %5171 = vmatpush1.msra.mxu0 0.0
  %5172 = vmatprep.subr.mxu0 0.0
  %5173 = vmatpush1.msra.mxu0 0.0
  %5174 = vmatprep.subr.mxu0 0.0
  %5175 = vmatpush1.msra.mxu0 0.0
  %5176 = vmatprep.subr.mxu0 0.0
  %5177 = vmatpush1.msra.mxu0 0.0
  %5178 = vmatprep.subr.mxu0 0.0
  %5179 = vmatpush1.msra.mxu0 0.0
  %5180 = vmatprep.subr.mxu0 0.0
  %5181 = vmatpush1.msra.mxu0 0.0
  %5182 = vmatprep.subr.mxu0 0.0
  %5183 = vmatpush1.msra.mxu0 0.0
  %5184 = vmatprep.subr.mxu0 0.0
  %5185 = vmatpush1.msra.mxu0 0.0
  %5186 = vmatprep.subr.mxu0 0.0
  %5187 = vmatpush1.msra.mxu0 0.0
  %5188 = vmatprep.subr.mxu0 0.0
  %5189 = vmatpush1.msra.mxu0 0.0
  %5190 = vmatprep.subr.mxu0 0.0
  %5191 = vmatpush1.msra.mxu0 0.0
  %5192 = vmatprep.subr.mxu0 0.0
  %5193 = vmatpush1.msra.mxu0 0.0
  %5194 = vmatprep.subr.mxu0 0.0
  %5195 = vmatpush1.msra.mxu0 0.0
  %5196 = vmatprep.subr.mxu0 0.0
  %5197 = vmatpush1.msra.mxu0 0.0
  %5198 = vmatprep.subr.mxu0 0.0
  %5199 = vmatpush1.msra.mxu0 0.0
  %5200 = vmatprep.subr.mxu0 0.0
  %5201 = vmatpush1.msra.mxu0 0.0
  %5202 = vmatprep.subr.mxu0 0.0
  %5203 = vmatpush1.msra.mxu0 0.0
  %5204 = vmatprep.subr.mxu0 0.0
  %5205 = vmatpush1.msra.mxu0 0.0
  %5206 = vmatprep.subr.mxu0 0.0
  %5207 = vmatpush1.msra.mxu0 0.0
  %5208 = vmatprep.subr.mxu0 0.0
  %5209 = vmatpush1.msra.mxu0 0.0
  %5210 = vmatprep.mubr.f32.mxu0 0.0
  %5211 = vmatmul.mubr.f32.gmra.mrb[0].mxu0 %v1700
  %v5212 = vpop.f32.mrb[0].mxu0
  %v5213 = vadd.f32 0.0, %v5212
  %v5214 = vpop.f32.mrb[0].mxu0
  %5215 = vmatprep.mubr.f32.mxu0 0.0
  %5216 = vmatmul.mubr.f32.gmra.mrb[0].mxu0 %v1703
  %v5217 = vpop.f32.mrb[0].mxu0
  %v5218 = vadd.f32 0.0, %v5217
  %v5219 = vpop.f32.mrb[0].mxu0
  %5220 = vmatprep.mubr.f32.mxu0 0.0
  %5221 = vmatmul.mubr.f32.gmra.mrb[0].mxu0 %v1706
  %v5222 = vpop.f32.mrb[0].mxu0
  %v5223 = vadd.f32 0.0, %v5222
  %v5224 = vpop.f32.mrb[0].mxu0
  %5225 = vmatprep.mubr.f32.mxu0 0.0
  %5226 = vmatmul.mubr.f32.gmra.mrb[0].mxu0 %v1709
  %v5227 = vpop.f32.mrb[0].mxu0
  %v5228 = vadd.f32 0.0, %v5227
  %v5229 = vpop.f32.mrb[0].mxu0
  %5230 = vmatprep.mubr.f32.mxu0 0.0
  %5231 = vmatmul.mubr.f32.gmra.mrb[0].mxu0 %v1712
  %v5232 = vpop.f32.mrb[0].mxu0
  %v5233 = vadd.f32 0.0, %v5232
  %v5234 = vpop.f32.mrb[0].mxu0
  %5235 = vdwg.mxu0
  %5236 = vst [vmem:[%s14] sm:$0xff] %v5213
  %5237 = vst [vmem:[%s14 + $0x8] sm:$0xff] %v5218
  %5238 = vst [vmem:[%s14 + $0x10] sm:$0xff] %v5223
  %5239 = vst [vmem:[%s14 + $0x18] sm:$0xff] %v5228
  %5240 = vst [vmem:[%s14 + $0x20] sm:$0xf] %v5233
  // Predicated region
  $region58: #{unet_up_forward.1} parent=0 // pred_check
    _
  $region59: #{unet_up_forward.1} parent=0 // pred_check_branch
    %5242 = sbr.rel (0) target = $region61
  $region60: #{unet_up_forward.1} parent=0 // pred_region
    _
  $region61: #{unet_up_forward.1} parent=0 // pred_fallthru
    _
  // Predicated region
  $region62: #{unet_up_forward.1} parent=0 // pred_check
    _
  $region63: #{unet_up_forward.1} parent=0 // pred_check_branch
    %5244 = sbr.rel (0) target = $region65
  $region64: #{unet_up_forward.1} parent=0 // pred_region
    _
  $region65: #{unet_up_forward.1} parent=0 // pred_fallthru
    _

</llo_original>
